<compile_context>
chip_gen: v7x
topology: tpu7x:2x2x1
jax: 0.10.0
libtpu: 0.0.40
codegen_flags: <defaults>
</compile_context>

<pallas_src>
import functools

import jax
import jax.numpy as jnp
import numpy as np
from jax.experimental import pallas as pl
from jax.experimental.pallas import tpu as pltpu


# Full-f32 MXU matmul (explicit precision so nothing silently drops to bf16).
_MM = functools.partial(jnp.dot, precision=jax.lax.Precision.HIGHEST,
                        preferred_element_type=jnp.float32)


def _conv_mask_kernel(sw_ref, x_ref, shift_ref, toep_ref, o_ref, *, K):
    # sw_ref:    SMEM (1,)          soft_weight scalar
    # x_ref:     VMEM (1, H, L)     batch block packed along lanes (L = Nb*W)
    # shift_ref: VMEM (K, H, H)     vertical shift matrices  A_i = eye(H, k=i-p)
    # toep_ref:  VMEM (K, L, L)     block-diag banded Toeplitz built from weight row i
    # o_ref:     VMEM (1, H, L)
    x = x_ref[0].astype(jnp.float32)               # (H, L)
    acc = jnp.zeros(x.shape, jnp.float32)
    for i in range(K):                             # static unroll; K is small
        sx = _MM(shift_ref[i], x)                  # vertical tap   (MXU)
        acc = acc + _MM(sx, toep_ref[i])           # horizontal tap (MXU, banded Toeplitz)
    sw = sw_ref[0]                                 # read once (hoisted)
    y = 1.0 / (1.0 + jnp.exp(-acc))                # sigmoid (EUP exp + divide)
    o_ref[0] = (y * sw + (1.0 - sw)).astype(o_ref.dtype)


def make_pyramid_weight(kernel_size: int) -> np.ndarray:
    """Deterministic weight init, identical to the PyTorch __init__."""
    kx = np.arange(0, kernel_size, 1)
    ky = np.arange(0, kernel_size, 1)
    kx, ky = np.meshgrid(kx, ky)
    kernel = np.stack([kx, ky], axis=0)                       # (2, K, K)
    padding = int(kernel_size // 2)
    dist = np.max(np.abs(padding - kernel), axis=0)           # (K, K)
    weight = 1.0 - dist.astype(np.float32) / (padding + 1)    # (K, K)
    return weight.astype(np.float32)


def _pick_batch_block(N: int, W: int, max_lanes: int = 512) -> int:
    """Images per grid step.  Prefer a divisor of N whose packed lane width is a
    multiple of 128 (unmasked stores); otherwise the largest divisor that fits the
    lane budget.  Correctness never depends on 128-alignment because the packed
    slab is stored 3-D and each block covers the full lane extent."""
    divisors = [d for d in range(1, N + 1) if N % d == 0 and d * W <= max_lanes]
    if not divisors:
        return 1
    lane_aligned = [d for d in divisors if (d * W) % 128 == 0]
    return max(lane_aligned) if lane_aligned else max(divisors)


def _build_operator_mats(weight, H, W, Nb, kernel_size):
    """Build the vertical shift matrices and horizontal banded-Toeplitz matrices that
    implement conv2d(padding=K//2, zero padding) as MXU matmuls on the packed slab."""
    K = kernel_size
    p = K // 2
    w = jnp.asarray(weight, jnp.float32).reshape(K, K)

    # Horizontal taps: T_i[src, x] = w[i, src - x + p] for |src - x| <= p, else 0.
    r = jnp.arange(W)[:, None]
    c = jnp.arange(W)[None, :]
    d = r - c + p
    valid = (d >= 0) & (d < K)
    idx = jnp.clip(d, 0, K - 1)
    toep = jnp.where(valid[None, :, :], w[:, idx], 0.0)       # (K, W, W)
    # Block-diagonal over the Nb images packed along the lane axis (no cross-image mix).
    eye_nb = jnp.eye(Nb, dtype=jnp.float32)
    toep_bd = jnp.stack([jnp.kron(eye_nb, toep[i]) for i in range(K)])   # (K, Nb*W, Nb*W)

    # Vertical taps: pure shift matrices; zero-padding at the image border is implicit
    # (shifted-out rows read as zero because the off-diagonal runs off the matrix).
    shift = jnp.stack([jnp.eye(H, k=i - p, dtype=jnp.float32) for i in range(K)])  # (K, H, H)
    return shift, toep_bd


def conv_mask_2d_trainable_soft(x, weight, soft_weight, kernel_size: int):
    """x: (N, 1, H, W) f32; weight: (K, K) f32; soft_weight: scalar f32."""
    N, C, H, W = x.shape
    assert C == 1, "module is Conv2d(1, 1, ...)"
    K = kernel_size

    Nb = _pick_batch_block(N, W)
    num_blocks = N // Nb
    L = Nb * W
    # TODO(synk): for very large images, also tile H (with a p-row halo) and W (splitting
    # the Toeplitz band across lane tiles) instead of holding a full (H, L) slab in VMEM.

    # Pack batch along the lane axis: (N,1,H,W) -> (num_blocks, H, Nb*W).  Pure layout
    # plumbing; no zero-padded copy of the image is ever materialised in HBM.
    x_packed = jnp.transpose(
        x.reshape(num_blocks, Nb, H, W), (0, 2, 1, 3)).reshape(num_blocks, H, L)

    shift_mats, toep_mats = _build_operator_mats(weight, H, W, Nb, K)
    sw = jnp.reshape(jnp.asarray(soft_weight, jnp.float32), (1,))

    out_packed = pl.pallas_call(
        functools.partial(_conv_mask_kernel, K=K),
        out_shape=jax.ShapeDtypeStruct((num_blocks, H, L), x.dtype),
        grid=(num_blocks,),
        in_specs=[
            pl.BlockSpec(memory_space=pltpu.MemorySpace.SMEM),     # soft_weight scalar
            pl.BlockSpec((1, H, L), lambda b: (b, 0, 0)),          # packed batch block
            pl.BlockSpec((K, H, H), lambda b: (0, 0, 0)),          # shift mats (shared)
            pl.BlockSpec((K, L, L), lambda b: (0, 0, 0)),          # Toeplitz mats (shared)
        ],
        out_specs=pl.BlockSpec((1, H, L), lambda b: (b, 0, 0)),
        compiler_params=pltpu.CompilerParams(
            dimension_semantics=("parallel",),        # shard batch blocks across TCs (v7x)
            vmem_limit_bytes=32 * 1024 * 1024,        # safe on v5e/v6e (128 MiB) & v7x (64 MiB)
        ),
    )(sw, x_packed, shift_mats, toep_mats)

    # Unpack lanes back to NCHW.
    out = jnp.transpose(
        out_packed.reshape(num_blocks, H, Nb, W), (0, 2, 1, 3)).reshape(N, 1, H, W)
    return out


def _reference_numpy(x, weight, soft_weight, kernel_size):
    """Independent float64 numpy reference (direct conv + sigmoid + soft blend)."""
    x = np.asarray(x, np.float64)[:, 0]                        # (N, H, W)
    w = np.asarray(weight, np.float64).reshape(kernel_size, kernel_size)
    p = kernel_size // 2
    N, H, W = x.shape
    xp = np.pad(x, ((0, 0), (p, p), (p, p)))
    out = np.zeros_like(x)
    for i in range(kernel_size):
        for j in range(kernel_size):
            out += w[i, j] * xp[:, i:i + H, j:j + W]
    out = 1.0 / (1.0 + np.exp(-out))
    sw = float(soft_weight)
    out = out * sw + (1.0 - sw)
    return out.reshape(N, 1, H, W)


if __name__ == "__main__":
    kernel_size = 5
    N, C, H, W = 2, 1, 16, 16

    key = jax.random.PRNGKey(0)
    x = jax.random.normal(key, (N, C, H, W), dtype=jnp.float32)

    weight = jnp.asarray(make_pyramid_weight(kernel_size))
    soft_weight = jnp.float32(0.5)   # deterministic init, as in the module

    out = conv_mask_2d_trainable_soft(x, weight, soft_weight, kernel_size)
    out = jax.block_until_ready(out)

    ref = _reference_numpy(np.asarray(x), np.asarray(weight), 0.5, kernel_size)
    assert out.shape == (N, C, H, W)
    np.testing.assert_allclose(np.asarray(out), ref, rtol=2e-5, atol=2e-5)

    print("KERNEL_OK")
</pallas_src>

<mosaic_0001>
module attributes {stable_mosaic.version = 11 : i64} {
  func.func @_conv_mask_kernel(%arg0: i32, %arg1: memref<1xf32, #tpu.memory_space<smem>>, %arg2: memref<1x16x32xf32, #tpu.memory_space<vmem>>, %arg3: memref<5x16x16xf32, #tpu.memory_space<vmem>>, %arg4: memref<5x32x32xf32, #tpu.memory_space<vmem>>, %arg5: memref<1x16x32xf32, #tpu.memory_space<vmem>>) attributes {dimension_semantics = [#tpu.dimension_semantics<parallel>], iteration_bounds = array<i64: 1>, scalar_prefetch = 0 : i64, scratch_operands = 0 : i64, tpu.core_type = #tpu.core_type<tc>, window_params = [{transform_indices = @transform_0, window_bounds = array<i64: 1>}, {transform_indices = @transform_1, window_bounds = array<i64: 1, 16, 32>}, {pipeline_mode = #tpu.pipeline_mode<synchronous>, transform_indices = @transform_2, window_bounds = array<i64: 5, 16, 16>}, {pipeline_mode = #tpu.pipeline_mode<synchronous>, transform_indices = @transform_3, window_bounds = array<i64: 5, 32, 32>}, {transform_indices = @transform_4, window_bounds = array<i64: 1, 16, 32>}]} {
    %c0 = arith.constant 0 : index
    %c0_0 = arith.constant 0 : index
    %c0_1 = arith.constant 0 : index
    %0 = vector.load %arg2[%c0, %c0_0, %c0_1] : memref<1x16x32xf32, #tpu.memory_space<vmem>>, vector<1x16x32xf32>
    %1 = vector.shape_cast %0 : vector<1x16x32xf32> to vector<16x32xf32>
    %cst = arith.constant 0.000000e+00 : f32
    %2 = vector.broadcast %cst : f32 to vector<16x32xf32>
    %c0_2 = arith.constant 0 : index
    %c0_3 = arith.constant 0 : index
    %c0_4 = arith.constant 0 : index
    %3 = vector.load %arg3[%c0_2, %c0_3, %c0_4] : memref<5x16x16xf32, #tpu.memory_space<vmem>>, vector<1x16x16xf32>
    %4 = vector.shape_cast %3 : vector<1x16x16xf32> to vector<16x16xf32>
    %cst_5 = arith.constant dense<0.000000e+00> : vector<16x32xf32>
    %5 = tpu.matmul %4, %1, %cst_5 {dimension_numbers = #tpu.dot_dimension_numbers<[1], [0], [0], [1], [0, 0, 1, 1], [], []>, precision = #tpu.contract_precision<fp32>} : vector<16x16xf32>, vector<16x32xf32>, vector<16x32xf32> -> vector<16x32xf32>
    %c0_6 = arith.constant 0 : index
    %c0_7 = arith.constant 0 : index
    %c0_8 = arith.constant 0 : index
    %6 = vector.load %arg4[%c0_6, %c0_7, %c0_8] : memref<5x32x32xf32, #tpu.memory_space<vmem>>, vector<1x32x32xf32>
    %7 = vector.shape_cast %6 : vector<1x32x32xf32> to vector<32x32xf32>
    %cst_9 = arith.constant dense<0.000000e+00> : vector<16x32xf32>
    %8 = tpu.matmul %5, %7, %cst_9 {dimension_numbers = #tpu.dot_dimension_numbers<[1], [0], [0], [1], [0, 0, 1, 1], [], []>, precision = #tpu.contract_precision<fp32>} : vector<16x32xf32>, vector<32x32xf32>, vector<16x32xf32> -> vector<16x32xf32>
    %9 = arith.addf %2, %8 : vector<16x32xf32>
    %c1 = arith.constant 1 : index
    %c0_10 = arith.constant 0 : index
    %c0_11 = arith.constant 0 : index
    %10 = vector.load %arg3[%c1, %c0_10, %c0_11] : memref<5x16x16xf32, #tpu.memory_space<vmem>>, vector<1x16x16xf32>
    %11 = vector.shape_cast %10 : vector<1x16x16xf32> to vector<16x16xf32>
    %cst_12 = arith.constant dense<0.000000e+00> : vector<16x32xf32>
    %12 = tpu.matmul %11, %1, %cst_12 {dimension_numbers = #tpu.dot_dimension_numbers<[1], [0], [0], [1], [0, 0, 1, 1], [], []>, precision = #tpu.contract_precision<fp32>} : vector<16x16xf32>, vector<16x32xf32>, vector<16x32xf32> -> vector<16x32xf32>
    %c1_13 = arith.constant 1 : index
    %c0_14 = arith.constant 0 : index
    %c0_15 = arith.constant 0 : index
    %13 = vector.load %arg4[%c1_13, %c0_14, %c0_15] : memref<5x32x32xf32, #tpu.memory_space<vmem>>, vector<1x32x32xf32>
    %14 = vector.shape_cast %13 : vector<1x32x32xf32> to vector<32x32xf32>
    %cst_16 = arith.constant dense<0.000000e+00> : vector<16x32xf32>
    %15 = tpu.matmul %12, %14, %cst_16 {dimension_numbers = #tpu.dot_dimension_numbers<[1], [0], [0], [1], [0, 0, 1, 1], [], []>, precision = #tpu.contract_precision<fp32>} : vector<16x32xf32>, vector<32x32xf32>, vector<16x32xf32> -> vector<16x32xf32>
    %16 = arith.addf %9, %15 : vector<16x32xf32>
    %c2 = arith.constant 2 : index
    %c0_17 = arith.constant 0 : index
    %c0_18 = arith.constant 0 : index
    %17 = vector.load %arg3[%c2, %c0_17, %c0_18] : memref<5x16x16xf32, #tpu.memory_space<vmem>>, vector<1x16x16xf32>
    %18 = vector.shape_cast %17 : vector<1x16x16xf32> to vector<16x16xf32>
    %cst_19 = arith.constant dense<0.000000e+00> : vector<16x32xf32>
    %19 = tpu.matmul %18, %1, %cst_19 {dimension_numbers = #tpu.dot_dimension_numbers<[1], [0], [0], [1], [0, 0, 1, 1], [], []>, precision = #tpu.contract_precision<fp32>} : vector<16x16xf32>, vector<16x32xf32>, vector<16x32xf32> -> vector<16x32xf32>
    %c2_20 = arith.constant 2 : index
    %c0_21 = arith.constant 0 : index
    %c0_22 = arith.constant 0 : index
    %20 = vector.load %arg4[%c2_20, %c0_21, %c0_22] : memref<5x32x32xf32, #tpu.memory_space<vmem>>, vector<1x32x32xf32>
    %21 = vector.shape_cast %20 : vector<1x32x32xf32> to vector<32x32xf32>
    %cst_23 = arith.constant dense<0.000000e+00> : vector<16x32xf32>
    %22 = tpu.matmul %19, %21, %cst_23 {dimension_numbers = #tpu.dot_dimension_numbers<[1], [0], [0], [1], [0, 0, 1, 1], [], []>, precision = #tpu.contract_precision<fp32>} : vector<16x32xf32>, vector<32x32xf32>, vector<16x32xf32> -> vector<16x32xf32>
    %23 = arith.addf %16, %22 : vector<16x32xf32>
    %c3 = arith.constant 3 : index
    %c0_24 = arith.constant 0 : index
    %c0_25 = arith.constant 0 : index
    %24 = vector.load %arg3[%c3, %c0_24, %c0_25] : memref<5x16x16xf32, #tpu.memory_space<vmem>>, vector<1x16x16xf32>
    %25 = vector.shape_cast %24 : vector<1x16x16xf32> to vector<16x16xf32>
    %cst_26 = arith.constant dense<0.000000e+00> : vector<16x32xf32>
    %26 = tpu.matmul %25, %1, %cst_26 {dimension_numbers = #tpu.dot_dimension_numbers<[1], [0], [0], [1], [0, 0, 1, 1], [], []>, precision = #tpu.contract_precision<fp32>} : vector<16x16xf32>, vector<16x32xf32>, vector<16x32xf32> -> vector<16x32xf32>
    %c3_27 = arith.constant 3 : index
    %c0_28 = arith.constant 0 : index
    %c0_29 = arith.constant 0 : index
    %27 = vector.load %arg4[%c3_27, %c0_28, %c0_29] : memref<5x32x32xf32, #tpu.memory_space<vmem>>, vector<1x32x32xf32>
    %28 = vector.shape_cast %27 : vector<1x32x32xf32> to vector<32x32xf32>
    %cst_30 = arith.constant dense<0.000000e+00> : vector<16x32xf32>
    %29 = tpu.matmul %26, %28, %cst_30 {dimension_numbers = #tpu.dot_dimension_numbers<[1], [0], [0], [1], [0, 0, 1, 1], [], []>, precision = #tpu.contract_precision<fp32>} : vector<16x32xf32>, vector<32x32xf32>, vector<16x32xf32> -> vector<16x32xf32>
    %30 = arith.addf %23, %29 : vector<16x32xf32>
    %c4 = arith.constant 4 : index
    %c0_31 = arith.constant 0 : index
    %c0_32 = arith.constant 0 : index
    %31 = vector.load %arg3[%c4, %c0_31, %c0_32] : memref<5x16x16xf32, #tpu.memory_space<vmem>>, vector<1x16x16xf32>
    %32 = vector.shape_cast %31 : vector<1x16x16xf32> to vector<16x16xf32>
    %cst_33 = arith.constant dense<0.000000e+00> : vector<16x32xf32>
    %33 = tpu.matmul %32, %1, %cst_33 {dimension_numbers = #tpu.dot_dimension_numbers<[1], [0], [0], [1], [0, 0, 1, 1], [], []>, precision = #tpu.contract_precision<fp32>} : vector<16x16xf32>, vector<16x32xf32>, vector<16x32xf32> -> vector<16x32xf32>
    %c4_34 = arith.constant 4 : index
    %c0_35 = arith.constant 0 : index
    %c0_36 = arith.constant 0 : index
    %34 = vector.load %arg4[%c4_34, %c0_35, %c0_36] : memref<5x32x32xf32, #tpu.memory_space<vmem>>, vector<1x32x32xf32>
    %35 = vector.shape_cast %34 : vector<1x32x32xf32> to vector<32x32xf32>
    %cst_37 = arith.constant dense<0.000000e+00> : vector<16x32xf32>
    %36 = tpu.matmul %33, %35, %cst_37 {dimension_numbers = #tpu.dot_dimension_numbers<[1], [0], [0], [1], [0, 0, 1, 1], [], []>, precision = #tpu.contract_precision<fp32>} : vector<16x32xf32>, vector<32x32xf32>, vector<16x32xf32> -> vector<16x32xf32>
    %37 = arith.addf %30, %36 : vector<16x32xf32>
    %c0_38 = arith.constant 0 : index
    %38 = memref.load %arg1[%c0_38] : memref<1xf32, #tpu.memory_space<smem>>
    %cst_39 = arith.constant 0.000000e+00 : f32
    %39 = vector.broadcast %cst_39 : f32 to vector<16x32xf32>
    %40 = arith.subf %39, %37 : vector<16x32xf32>
    %41 = math.exp %40 : vector<16x32xf32>
    %cst_40 = arith.constant 1.000000e+00 : f32
    %42 = vector.broadcast %cst_40 : f32 to vector<16x32xf32>
    %43 = arith.addf %42, %41 : vector<16x32xf32>
    %cst_41 = arith.constant 1.000000e+00 : f32
    %44 = vector.broadcast %cst_41 : f32 to vector<16x32xf32>
    %45 = arith.divf %44, %43 : vector<16x32xf32>
    %46 = vector.broadcast %38 : f32 to vector<16x32xf32>
    %47 = arith.mulf %45, %46 : vector<16x32xf32>
    %cst_42 = arith.constant 1.000000e+00 : f32
    %48 = arith.subf %cst_42, %38 : f32
    %49 = vector.broadcast %48 : f32 to vector<16x32xf32>
    %50 = arith.addf %47, %49 : vector<16x32xf32>
    %c0_43 = arith.constant 0 : index
    %c0_44 = arith.constant 0 : index
    %c0_45 = arith.constant 0 : index
    %51 = vector.load %arg5[%c0_43, %c0_44, %c0_45] : memref<1x16x32xf32, #tpu.memory_space<vmem>>, vector<1x16x32xf32>
    %52 = vector.shape_cast %51 : vector<1x16x32xf32> to vector<16x32xf32>
    %53 = vector.shape_cast %50 : vector<16x32xf32> to vector<1x16x32xf32>
    tpu.vector_store %arg5[%c0_43, %c0_44, %c0_45], %53 {strides = array<i32>} : memref<1x16x32xf32, #tpu.memory_space<vmem>>, vector<1x16x32xf32>,
    return
  }
  func.func @transform_0(%arg0: i32) -> i32 {
    %c0_i32 = arith.constant 0 : i32
    %c0_i32_0 = arith.constant 0 : i32
    return %c0_i32 : i32
  }
  func.func @transform_1(%arg0: i32) -> (i32, i32, i32) {
    %c0_i32 = arith.constant 0 : i32
    %c0_i32_0 = arith.constant 0 : i32
    %c0_i32_1 = arith.constant 0 : i32
    return %arg0, %c0_i32, %c0_i32_0 : i32, i32, i32
  }
  func.func @transform_2(%arg0: i32) -> (i32, i32, i32) {
    %c0_i32 = arith.constant 0 : i32
    %c0_i32_0 = arith.constant 0 : i32
    %c0_i32_1 = arith.constant 0 : i32
    %c0_i32_2 = arith.constant 0 : i32
    return %c0_i32, %c0_i32_0, %c0_i32_1 : i32, i32, i32
  }
  func.func @transform_3(%arg0: i32) -> (i32, i32, i32) {
    %c0_i32 = arith.constant 0 : i32
    %c0_i32_0 = arith.constant 0 : i32
    %c0_i32_1 = arith.constant 0 : i32
    %c0_i32_2 = arith.constant 0 : i32
    return %c0_i32, %c0_i32_0, %c0_i32_1 : i32, i32, i32
  }
  func.func @transform_4(%arg0: i32) -> (i32, i32, i32) {
    %c0_i32 = arith.constant 0 : i32
    %c0_i32_0 = arith.constant 0 : i32
    %c0_i32_1 = arith.constant 0 : i32
    return %arg0, %c0_i32, %c0_i32_0 : i32, i32, i32
  }
}

</mosaic_0001>

<llo_original>
// kernel: tpu_custom_call.1
$region0: #{tpu_custom_call.1}
  #allocation0 [shape = 'u32[]', space=smem, size = 0x4, offset = 0x4, fixed_abs, tag = 'smem constant byte address 0x4 - core index']
  #allocation1 [shape = 'u32[144,128]{1,0:T(1,128)}', space=vmem, size = 0x12000, scoped, tag = 'internal scratch']
  #allocation2 [shape = 'f32[1]{0:T(128)S(6)}', space=smem, size = 0x200, scoped, tag = 'scoped memory for tpu_custom_call.1']
  %s0 = inlined_call_operand.<no memory space> [shape: f32[1], index: 0, kind: input, shape index: {}]
  %s1 = inlined_call_operand.hbm [shape: f32[1,16,32], index: 1, kind: input, shape index: {}]
  %s2 = inlined_call_operand.hbm [shape: f32[5,16,16], index: 2, kind: input, shape index: {}]
  %s3 = inlined_call_operand.hbm [shape: f32[5,32,32], index: 3, kind: input, shape index: {}]
  %s4 = inlined_call_operand.hbm [shape: f32[1,16,32], index: 4, kind: output, shape index: {}]
  %s5 = sld [smem:[#allocation0]]
  $region38: #{tpu_custom_call.1} parent=0
    _
  %s7 = ssub.s32 1, %s5
  %s8 = scalar_select 0, %s7, %s5
  %9 = sst [smem:[#allocation2]] %s0
  $region1: #{tpu_custom_call.1} parent=0
    #allocation3 [shape = 'u8[8192]{0}', space=vmem, size = 0x2000, scoped, tag = 'input window, operand 1, single buffered']
    #allocation4 [shape = 's32[1]{0}', space=sflag, size = 0x4, scoped, tag = 'scoped memory for tpu_custom_call.1']
    #allocation5 [shape = 's32[1]{0}', space=sflag, size = 0x4, scoped, tag = 'scoped memory for tpu_custom_call.1']
    #allocation6 [shape = 'u8[40960]{0}', space=vmem, size = 0xa000, scoped, tag = 'input window, operand 2, single buffered']
    #allocation7 [shape = 's32[1]{0}', space=sflag, size = 0x4, scoped, tag = 'scoped memory for tpu_custom_call.1']
    #allocation8 [shape = 'u8[81920]{0}', space=vmem, size = 0x14000, scoped, tag = 'input window, operand 3, single buffered']
    #allocation9 [shape = 'u8[8192]{0}', space=vmem, size = 0x2000, scoped, tag = 'output window, operand 0, single buffered']
    %10 = vsyncpa [#allocation4], 0
    %11 = vsyncpa [#allocation7], 0
    %12 = vsyncpa [#allocation5], 0
    // Predicated region
    $region2: #{tpu_custom_call.1} parent=1 // pred_check
      _
    $region3: #{tpu_custom_call.1} parent=1 // pred_check_branch
      %14 = sbr.rel (0) target = $region5
    $region4: #{tpu_custom_call.1} parent=1 // pred_region
      _
    $region5: #{tpu_custom_call.1} parent=1 // pred_fallthru
      _
    // Predicated region
    $region6: #{tpu_custom_call.1} parent=1 // pred_check
      _
    $region7: #{tpu_custom_call.1} parent=1 // pred_check_branch
      %16 = sbr.rel (0) target = $region9
    $region8: #{tpu_custom_call.1} parent=1 // pred_region
      %s18 = ssub.s32 256, 256
      %19 = vsyncadd [#allocation4], %s18
      %s20 = sshll.u32 [#allocation3], 4
      %s21 = int_to_ptr.vmem [resolvable:$true] %s20
      %26 = dma.hbm_to_vmem [thread:$0]  %s1, 256, %s21, [#allocation4], 128, 128, 8
    $region9: #{tpu_custom_call.1} parent=1 // pred_fallthru
      _
    // Predicated region
    $region10: #{tpu_custom_call.1} parent=1 // pred_check
      _
    $region11: #{tpu_custom_call.1} parent=1 // pred_check_branch
      %28 = sbr.rel (0) target = $region13
    $region12: #{tpu_custom_call.1} parent=1 // pred_region
      %s30 = ssub.s32 1280, 1280
      %31 = vsyncadd [#allocation7], %s30
      %s32 = sshll.u32 [#allocation6], 4
      %s33 = int_to_ptr.vmem [resolvable:$true] %s32
      %38 = dma.hbm_to_vmem [thread:$0]  %s2, 1280, %s33, [#allocation7], 128, 128, 8
    $region13: #{tpu_custom_call.1} parent=1 // pred_fallthru
      _
    // Predicated region
    $region14: #{tpu_custom_call.1} parent=1 // pred_check
      _
    $region15: #{tpu_custom_call.1} parent=1 // pred_check_branch
      %40 = sbr.rel (0) target = $region17
    $region16: #{tpu_custom_call.1} parent=1 // pred_region
      %s42 = ssub.s32 2560, 2560
      %43 = vsyncadd [#allocation7], %s42
      %s44 = sshll.u32 [#allocation8], 4
      %s45 = int_to_ptr.vmem [resolvable:$true] %s44
      %50 = dma.hbm_to_vmem [thread:$0]  %s3, 2560, %s45, [#allocation7], 128, 128, 8
    $region17: #{tpu_custom_call.1} parent=1 // pred_fallthru
      _
    // Predicated region
    $region18: #{tpu_custom_call.1} parent=1 // pred_check
      _
    $region19: #{tpu_custom_call.1} parent=1 // pred_check_branch
      %52 = sbr.rel (0) target = $region21
    $region20: #{tpu_custom_call.1} parent=1 // pred_region
      %53 = dma.done [#allocation4], 256
    $region21: #{tpu_custom_call.1} parent=1 // pred_fallthru
      _
    // Predicated region
    $region22: #{tpu_custom_call.1} parent=1 // pred_check
      _
    $region23: #{tpu_custom_call.1} parent=1 // pred_check_branch
      %55 = sbr.rel (0) target = $region25
    $region24: #{tpu_custom_call.1} parent=1 // pred_region
      %56 = dma.done [#allocation7], 1280
    $region25: #{tpu_custom_call.1} parent=1 // pred_fallthru
      _
    // Predicated region
    $region26: #{tpu_custom_call.1} parent=1 // pred_check
      _
    $region27: #{tpu_custom_call.1} parent=1 // pred_check_branch
      %58 = sbr.rel (0) target = $region29
    $region28: #{tpu_custom_call.1} parent=1 // pred_region
      %59 = dma.done [#allocation7], 2560
    $region29: #{tpu_custom_call.1} parent=1 // pred_fallthru
      _
    %v60 = vld [vmem:[#allocation3] sm:$0xff]
    %v61 = vld [vmem:[#allocation3 + $0x8] sm:$0xff]
    %v62 = vld [vmem:[#allocation6] sm:$0xff]
    %v63 = vld [vmem:[#allocation6 + $0x8] sm:$0xff]
    %vm64 = vcmask 130048
    %v66 = vsel %vm64, %v62, 0
    %v69 = vsel %vm64, %v63, 0
    %71 = vmatprep.subr.mxu0 0.0
    %v72 = vand.u32 %v60, 4294901760
    %73 = vmatpush1.msra.mxu0 %v72
    %74 = vmatprep.subr.mxu0 0.0
    %v75 = vand.u32 %v61, 4294901760
    %76 = vmatpush1.msra.mxu0 %v75
    %77 = vmatprep.subr.mxu0 0.0
    %78 = vmatpush1.msra.mxu0 0.0
    %79 = vmatprep.subr.mxu0 0.0
    %80 = vmatpush1.msra.mxu0 0.0
    %81 = vmatprep.subr.mxu0 0.0
    %82 = vmatpush1.msra.mxu0 0.0
    %83 = vmatprep.subr.mxu0 0.0
    %84 = vmatpush1.msra.mxu0 0.0
    %85 = vmatprep.subr.mxu0 0.0
    %86 = vmatpush1.msra.mxu0 0.0
    %87 = vmatprep.subr.mxu0 0.0
    %88 = vmatpush1.msra.mxu0 0.0
    %89 = vmatprep.subr.mxu0 0.0
    %90 = vmatpush1.msra.mxu0 0.0
    %91 = vmatprep.subr.mxu0 0.0
    %92 = vmatpush1.msra.mxu0 0.0
    %93 = vmatprep.subr.mxu0 0.0
    %94 = vmatpush1.msra.mxu0 0.0
    %95 = vmatprep.subr.mxu0 0.0
    %96 = vmatpush1.msra.mxu0 0.0
    %97 = vmatprep.subr.mxu0 0.0
    %98 = vmatpush1.msra.mxu0 0.0
    %99 = vmatprep.subr.mxu0 0.0
    %100 = vmatpush1.msra.mxu0 0.0
    %101 = vmatprep.subr.mxu0 0.0
    %102 = vmatpush1.msra.mxu0 0.0
    %103 = vmatprep.subr.mxu0 0.0
    %104 = vmatpush1.msra.mxu0 0.0
    %105 = vmatprep.subr.mxu0 0.0
    %106 = vmatpush1.msra.mxu0 0.0
    %107 = vmatprep.subr.mxu0 0.0
    %108 = vmatpush1.msra.mxu0 0.0
    %109 = vmatprep.subr.mxu0 0.0
    %110 = vmatpush1.msra.mxu0 0.0
    %111 = vmatprep.subr.mxu0 0.0
    %112 = vmatpush1.msra.mxu0 0.0
    %113 = vmatprep.subr.mxu0 0.0
    %114 = vmatpush1.msra.mxu0 0.0
    %115 = vmatprep.subr.mxu0 0.0
    %116 = vmatpush1.msra.mxu0 0.0
    %117 = vmatprep.subr.mxu0 0.0
    %118 = vmatpush1.msra.mxu0 0.0
    %119 = vmatprep.subr.mxu0 0.0
    %120 = vmatpush1.msra.mxu0 0.0
    %121 = vmatprep.subr.mxu0 0.0
    %122 = vmatpush1.msra.mxu0 0.0
    %123 = vmatprep.subr.mxu0 0.0
    %124 = vmatpush1.msra.mxu0 0.0
    %125 = vmatprep.subr.mxu0 0.0
    %126 = vmatpush1.msra.mxu0 0.0
    %127 = vmatprep.subr.mxu0 0.0
    %128 = vmatpush1.msra.mxu0 0.0
    %129 = vmatprep.subr.mxu0 0.0
    %130 = vmatpush1.msra.mxu0 0.0
    %131 = vmatprep.subr.mxu0 0.0
    %132 = vmatpush1.msra.mxu0 0.0
    %133 = vmatprep.subr.mxu0 0.0
    %134 = vmatpush1.msra.mxu0 0.0
    %135 = vmatprep.subr.mxu0 0.0
    %136 = vmatpush1.msra.mxu0 0.0
    %137 = vmatprep.mubr.f32.mxu0 0.0
    %v138 = vand.u32 %v66, 4294901760
    %v139 = vsub.f32 %v66, %v138
    %v140 = vand.u32 %v139, 4294901760
    %v141 = vsub.f32 %v139, %v140
    %v142 = vand.u32 %v141, 4294901760
    %143 = vmatmul.mubr.f32.gmra.mrb[0].mxu0 %v142
    %v144 = vpop.f32.mrb[0].mxu0
    %v145 = vadd.f32 0.0, %v144
    %v146 = vpop.f32.mrb[0].mxu0
    %147 = vmatprep.mubr.f32.mxu0 0.0
    %v148 = vand.u32 %v69, 4294901760
    %v149 = vsub.f32 %v69, %v148
    %v150 = vand.u32 %v149, 4294901760
    %v151 = vsub.f32 %v149, %v150
    %v152 = vand.u32 %v151, 4294901760
    %153 = vmatmul.mubr.f32.gmra.mrb[0].mxu0 %v152
    %v154 = vpop.f32.mrb[0].mxu0
    %v155 = vadd.f32 0.0, %v154
    %v156 = vpop.f32.mrb[0].mxu0
    %157 = vdwg.mxu0
    %158 = vmatprep.subr.mxu0 0.0
    %v159 = vand.u32 %v60, 4294901760
    %v160 = vsub.f32 %v60, %v159
    %v161 = vand.u32 %v160, 4294901760
    %v162 = vsub.f32 %v160, %v161
    %v163 = vand.u32 %v162, 4294901760
    %164 = vmatpush1.msra.mxu0 %v163
    %165 = vmatprep.subr.mxu0 0.0
    %v166 = vand.u32 %v61, 4294901760
    %v167 = vsub.f32 %v61, %v166
    %v168 = vand.u32 %v167, 4294901760
    %v169 = vsub.f32 %v167, %v168
    %v170 = vand.u32 %v169, 4294901760
    %171 = vmatpush1.msra.mxu0 %v170
    %172 = vmatprep.subr.mxu0 0.0
    %173 = vmatpush1.msra.mxu0 0.0
    %174 = vmatprep.subr.mxu0 0.0
    %175 = vmatpush1.msra.mxu0 0.0
    %176 = vmatprep.subr.mxu0 0.0
    %177 = vmatpush1.msra.mxu0 0.0
    %178 = vmatprep.subr.mxu0 0.0
    %179 = vmatpush1.msra.mxu0 0.0
    %180 = vmatprep.subr.mxu0 0.0
    %181 = vmatpush1.msra.mxu0 0.0
    %182 = vmatprep.subr.mxu0 0.0
    %183 = vmatpush1.msra.mxu0 0.0
    %184 = vmatprep.subr.mxu0 0.0
    %185 = vmatpush1.msra.mxu0 0.0
    %186 = vmatprep.subr.mxu0 0.0
    %187 = vmatpush1.msra.mxu0 0.0
    %188 = vmatprep.subr.mxu0 0.0
    %189 = vmatpush1.msra.mxu0 0.0
    %190 = vmatprep.subr.mxu0 0.0
    %191 = vmatpush1.msra.mxu0 0.0
    %192 = vmatprep.subr.mxu0 0.0
    %193 = vmatpush1.msra.mxu0 0.0
    %194 = vmatprep.subr.mxu0 0.0
    %195 = vmatpush1.msra.mxu0 0.0
    %196 = vmatprep.subr.mxu0 0.0
    %197 = vmatpush1.msra.mxu0 0.0
    %198 = vmatprep.subr.mxu0 0.0
    %199 = vmatpush1.msra.mxu0 0.0
    %200 = vmatprep.subr.mxu0 0.0
    %201 = vmatpush1.msra.mxu0 0.0
    %202 = vmatprep.subr.mxu0 0.0
    %203 = vmatpush1.msra.mxu0 0.0
    %204 = vmatprep.subr.mxu0 0.0
    %205 = vmatpush1.msra.mxu0 0.0
    %206 = vmatprep.subr.mxu0 0.0
    %207 = vmatpush1.msra.mxu0 0.0
    %208 = vmatprep.subr.mxu0 0.0
    %209 = vmatpush1.msra.mxu0 0.0
    %210 = vmatprep.subr.mxu0 0.0
    %211 = vmatpush1.msra.mxu0 0.0
    %212 = vmatprep.subr.mxu0 0.0
    %213 = vmatpush1.msra.mxu0 0.0
    %214 = vmatprep.subr.mxu0 0.0
    %215 = vmatpush1.msra.mxu0 0.0
    %216 = vmatprep.subr.mxu0 0.0
    %217 = vmatpush1.msra.mxu0 0.0
    %218 = vmatprep.subr.mxu0 0.0
    %219 = vmatpush1.msra.mxu0 0.0
    %220 = vmatprep.subr.mxu0 0.0
    %221 = vmatpush1.msra.mxu0 0.0
    %222 = vmatprep.subr.mxu0 0.0
    %223 = vmatpush1.msra.mxu0 0.0
    %224 = vmatprep.subr.mxu0 0.0
    %225 = vmatpush1.msra.mxu0 0.0
    %226 = vmatprep.subr.mxu0 0.0
    %227 = vmatpush1.msra.mxu0 0.0
    %228 = vmatprep.subr.mxu0 0.0
    %229 = vmatpush1.msra.mxu0 0.0
    %230 = vmatprep.subr.mxu0 0.0
    %231 = vmatpush1.msra.mxu0 0.0
    %232 = vmatprep.mubr.f32.mxu0 0.0
    %v233 = vand.u32 %v66, 4294901760
    %234 = vmatmul.mubr.f32.gmra.mrb[0].mxu0 %v233
    %v235 = vpop.f32.mrb[0].mxu0
    %v236 = vadd.f32 %v145, %v235
    %v237 = vpop.f32.mrb[0].mxu0
    %238 = vmatprep.mubr.f32.mxu0 0.0
    %v239 = vand.u32 %v69, 4294901760
    %240 = vmatmul.mubr.f32.gmra.mrb[0].mxu0 %v239
    %v241 = vpop.f32.mrb[0].mxu0
    %v242 = vadd.f32 %v155, %v241
    %v243 = vpop.f32.mrb[0].mxu0
    %244 = vdwg.mxu0
    %245 = vmatprep.subr.mxu0 0.0
    %v246 = vand.u32 %v60, 4294901760
    %v247 = vsub.f32 %v60, %v246
    %248 = vmatpush1.msra.mxu0 %v247
    %249 = vmatprep.subr.mxu0 0.0
    %v250 = vand.u32 %v61, 4294901760
    %v251 = vsub.f32 %v61, %v250
    %252 = vmatpush1.msra.mxu0 %v251
    %253 = vmatprep.subr.mxu0 0.0
    %254 = vmatpush1.msra.mxu0 0.0
    %255 = vmatprep.subr.mxu0 0.0
    %256 = vmatpush1.msra.mxu0 0.0
    %257 = vmatprep.subr.mxu0 0.0
    %258 = vmatpush1.msra.mxu0 0.0
    %259 = vmatprep.subr.mxu0 0.0
    %260 = vmatpush1.msra.mxu0 0.0
    %261 = vmatprep.subr.mxu0 0.0
    %262 = vmatpush1.msra.mxu0 0.0
    %263 = vmatprep.subr.mxu0 0.0
    %264 = vmatpush1.msra.mxu0 0.0
    %265 = vmatprep.subr.mxu0 0.0
    %266 = vmatpush1.msra.mxu0 0.0
    %267 = vmatprep.subr.mxu0 0.0
    %268 = vmatpush1.msra.mxu0 0.0
    %269 = vmatprep.subr.mxu0 0.0
    %270 = vmatpush1.msra.mxu0 0.0
    %271 = vmatprep.subr.mxu0 0.0
    %272 = vmatpush1.msra.mxu0 0.0
    %273 = vmatprep.subr.mxu0 0.0
    %274 = vmatpush1.msra.mxu0 0.0
    %275 = vmatprep.subr.mxu0 0.0
    %276 = vmatpush1.msra.mxu0 0.0
    %277 = vmatprep.subr.mxu0 0.0
    %278 = vmatpush1.msra.mxu0 0.0
    %279 = vmatprep.subr.mxu0 0.0
    %280 = vmatpush1.msra.mxu0 0.0
    %281 = vmatprep.subr.mxu0 0.0
    %282 = vmatpush1.msra.mxu0 0.0
    %283 = vmatprep.subr.mxu0 0.0
    %284 = vmatpush1.msra.mxu0 0.0
    %285 = vmatprep.subr.mxu0 0.0
    %286 = vmatpush1.msra.mxu0 0.0
    %287 = vmatprep.subr.mxu0 0.0
    %288 = vmatpush1.msra.mxu0 0.0
    %289 = vmatprep.subr.mxu0 0.0
    %290 = vmatpush1.msra.mxu0 0.0
    %291 = vmatprep.subr.mxu0 0.0
    %292 = vmatpush1.msra.mxu0 0.0
    %293 = vmatprep.subr.mxu0 0.0
    %294 = vmatpush1.msra.mxu0 0.0
    %295 = vmatprep.subr.mxu0 0.0
    %296 = vmatpush1.msra.mxu0 0.0
    %297 = vmatprep.subr.mxu0 0.0
    %298 = vmatpush1.msra.mxu0 0.0
    %299 = vmatprep.subr.mxu0 0.0
    %300 = vmatpush1.msra.mxu0 0.0
    %301 = vmatprep.subr.mxu0 0.0
    %302 = vmatpush1.msra.mxu0 0.0
    %303 = vmatprep.subr.mxu0 0.0
    %304 = vmatpush1.msra.mxu0 0.0
    %305 = vmatprep.subr.mxu0 0.0
    %306 = vmatpush1.msra.mxu0 0.0
    %307 = vmatprep.subr.mxu0 0.0
    %308 = vmatpush1.msra.mxu0 0.0
    %309 = vmatprep.subr.mxu0 0.0
    %310 = vmatpush1.msra.mxu0 0.0
    %311 = vmatprep.subr.mxu0 0.0
    %312 = vmatpush1.msra.mxu0 0.0
    %313 = vmatprep.mubr.f32.mxu0 0.0
    %v314 = vand.u32 %v66, 4294901760
    %v315 = vsub.f32 %v66, %v314
    %316 = vmatmul.mubr.f32.gmra.mrb[0].mxu0 %v315
    %v317 = vpop.f32.mrb[0].mxu0
    %v318 = vadd.f32 %v236, %v317
    %v319 = vpop.f32.mrb[0].mxu0
    %320 = vmatprep.mubr.f32.mxu0 0.0
    %v321 = vand.u32 %v69, 4294901760
    %v322 = vsub.f32 %v69, %v321
    %323 = vmatmul.mubr.f32.gmra.mrb[0].mxu0 %v322
    %v324 = vpop.f32.mrb[0].mxu0
    %v325 = vadd.f32 %v242, %v324
    %v326 = vpop.f32.mrb[0].mxu0
    %327 = vdwg.mxu0
    %328 = vmatprep.subr.mxu0 0.0
    %v329 = vand.u32 %v60, 4294901760
    %330 = vmatpush1.msra.mxu0 %v329
    %331 = vmatprep.subr.mxu0 0.0
    %v332 = vand.u32 %v61, 4294901760
    %333 = vmatpush1.msra.mxu0 %v332
    %334 = vmatprep.subr.mxu0 0.0
    %335 = vmatpush1.msra.mxu0 0.0
    %336 = vmatprep.subr.mxu0 0.0
    %337 = vmatpush1.msra.mxu0 0.0
    %338 = vmatprep.subr.mxu0 0.0
    %339 = vmatpush1.msra.mxu0 0.0
    %340 = vmatprep.subr.mxu0 0.0
    %341 = vmatpush1.msra.mxu0 0.0
    %342 = vmatprep.subr.mxu0 0.0
    %343 = vmatpush1.msra.mxu0 0.0
    %344 = vmatprep.subr.mxu0 0.0
    %345 = vmatpush1.msra.mxu0 0.0
    %346 = vmatprep.subr.mxu0 0.0
    %347 = vmatpush1.msra.mxu0 0.0
    %348 = vmatprep.subr.mxu0 0.0
    %349 = vmatpush1.msra.mxu0 0.0
    %350 = vmatprep.subr.mxu0 0.0
    %351 = vmatpush1.msra.mxu0 0.0
    %352 = vmatprep.subr.mxu0 0.0
    %353 = vmatpush1.msra.mxu0 0.0
    %354 = vmatprep.subr.mxu0 0.0
    %355 = vmatpush1.msra.mxu0 0.0
    %356 = vmatprep.subr.mxu0 0.0
    %357 = vmatpush1.msra.mxu0 0.0
    %358 = vmatprep.subr.mxu0 0.0
    %359 = vmatpush1.msra.mxu0 0.0
    %360 = vmatprep.subr.mxu0 0.0
    %361 = vmatpush1.msra.mxu0 0.0
    %362 = vmatprep.subr.mxu0 0.0
    %363 = vmatpush1.msra.mxu0 0.0
    %364 = vmatprep.subr.mxu0 0.0
    %365 = vmatpush1.msra.mxu0 0.0
    %366 = vmatprep.subr.mxu0 0.0
    %367 = vmatpush1.msra.mxu0 0.0
    %368 = vmatprep.subr.mxu0 0.0
    %369 = vmatpush1.msra.mxu0 0.0
    %370 = vmatprep.subr.mxu0 0.0
    %371 = vmatpush1.msra.mxu0 0.0
    %372 = vmatprep.subr.mxu0 0.0
    %373 = vmatpush1.msra.mxu0 0.0
    %374 = vmatprep.subr.mxu0 0.0
    %375 = vmatpush1.msra.mxu0 0.0
    %376 = vmatprep.subr.mxu0 0.0
    %377 = vmatpush1.msra.mxu0 0.0
    %378 = vmatprep.subr.mxu0 0.0
    %379 = vmatpush1.msra.mxu0 0.0
    %380 = vmatprep.subr.mxu0 0.0
    %381 = vmatpush1.msra.mxu0 0.0
    %382 = vmatprep.subr.mxu0 0.0
    %383 = vmatpush1.msra.mxu0 0.0
    %384 = vmatprep.subr.mxu0 0.0
    %385 = vmatpush1.msra.mxu0 0.0
    %386 = vmatprep.subr.mxu0 0.0
    %387 = vmatpush1.msra.mxu0 0.0
    %388 = vmatprep.subr.mxu0 0.0
    %389 = vmatpush1.msra.mxu0 0.0
    %390 = vmatprep.subr.mxu0 0.0
    %391 = vmatpush1.msra.mxu0 0.0
    %392 = vmatprep.subr.mxu0 0.0
    %393 = vmatpush1.msra.mxu0 0.0
    %394 = vmatprep.mubr.f32.mxu0 0.0
    %v395 = vand.u32 %v66, 4294901760
    %v396 = vsub.f32 %v66, %v395
    %v397 = vand.u32 %v396, 4294901760
    %398 = vmatmul.mubr.f32.gmra.mrb[0].mxu0 %v397
    %v399 = vpop.f32.mrb[0].mxu0
    %v400 = vadd.f32 %v318, %v399
    %v401 = vpop.f32.mrb[0].mxu0
    %402 = vmatprep.mubr.f32.mxu0 0.0
    %v403 = vand.u32 %v69, 4294901760
    %v404 = vsub.f32 %v69, %v403
    %v405 = vand.u32 %v404, 4294901760
    %406 = vmatmul.mubr.f32.gmra.mrb[0].mxu0 %v405
    %v407 = vpop.f32.mrb[0].mxu0
    %v408 = vadd.f32 %v325, %v407
    %v409 = vpop.f32.mrb[0].mxu0
    %410 = vdwg.mxu0
    %411 = vmatprep.subr.mxu0 0.0
    %v412 = vand.u32 %v60, 4294901760
    %v413 = vsub.f32 %v60, %v412
    %v414 = vand.u32 %v413, 4294901760
    %415 = vmatpush1.msra.mxu0 %v414
    %416 = vmatprep.subr.mxu0 0.0
    %v417 = vand.u32 %v61, 4294901760
    %v418 = vsub.f32 %v61, %v417
    %v419 = vand.u32 %v418, 4294901760
    %420 = vmatpush1.msra.mxu0 %v419
    %421 = vmatprep.subr.mxu0 0.0
    %422 = vmatpush1.msra.mxu0 0.0
    %423 = vmatprep.subr.mxu0 0.0
    %424 = vmatpush1.msra.mxu0 0.0
    %425 = vmatprep.subr.mxu0 0.0
    %426 = vmatpush1.msra.mxu0 0.0
    %427 = vmatprep.subr.mxu0 0.0
    %428 = vmatpush1.msra.mxu0 0.0
    %429 = vmatprep.subr.mxu0 0.0
    %430 = vmatpush1.msra.mxu0 0.0
    %431 = vmatprep.subr.mxu0 0.0
    %432 = vmatpush1.msra.mxu0 0.0
    %433 = vmatprep.subr.mxu0 0.0
    %434 = vmatpush1.msra.mxu0 0.0
    %435 = vmatprep.subr.mxu0 0.0
    %436 = vmatpush1.msra.mxu0 0.0
    %437 = vmatprep.subr.mxu0 0.0
    %438 = vmatpush1.msra.mxu0 0.0
    %439 = vmatprep.subr.mxu0 0.0
    %440 = vmatpush1.msra.mxu0 0.0
    %441 = vmatprep.subr.mxu0 0.0
    %442 = vmatpush1.msra.mxu0 0.0
    %443 = vmatprep.subr.mxu0 0.0
    %444 = vmatpush1.msra.mxu0 0.0
    %445 = vmatprep.subr.mxu0 0.0
    %446 = vmatpush1.msra.mxu0 0.0
    %447 = vmatprep.subr.mxu0 0.0
    %448 = vmatpush1.msra.mxu0 0.0
    %449 = vmatprep.subr.mxu0 0.0
    %450 = vmatpush1.msra.mxu0 0.0
    %451 = vmatprep.subr.mxu0 0.0
    %452 = vmatpush1.msra.mxu0 0.0
    %453 = vmatprep.subr.mxu0 0.0
    %454 = vmatpush1.msra.mxu0 0.0
    %455 = vmatprep.subr.mxu0 0.0
    %456 = vmatpush1.msra.mxu0 0.0
    %457 = vmatprep.subr.mxu0 0.0
    %458 = vmatpush1.msra.mxu0 0.0
    %459 = vmatprep.subr.mxu0 0.0
    %460 = vmatpush1.msra.mxu0 0.0
    %461 = vmatprep.subr.mxu0 0.0
    %462 = vmatpush1.msra.mxu0 0.0
    %463 = vmatprep.subr.mxu0 0.0
    %464 = vmatpush1.msra.mxu0 0.0
    %465 = vmatprep.subr.mxu0 0.0
    %466 = vmatpush1.msra.mxu0 0.0
    %467 = vmatprep.subr.mxu0 0.0
    %468 = vmatpush1.msra.mxu0 0.0
    %469 = vmatprep.subr.mxu0 0.0
    %470 = vmatpush1.msra.mxu0 0.0
    %471 = vmatprep.subr.mxu0 0.0
    %472 = vmatpush1.msra.mxu0 0.0
    %473 = vmatprep.subr.mxu0 0.0
    %474 = vmatpush1.msra.mxu0 0.0
    %475 = vmatprep.subr.mxu0 0.0
    %476 = vmatpush1.msra.mxu0 0.0
    %477 = vmatprep.subr.mxu0 0.0
    %478 = vmatpush1.msra.mxu0 0.0
    %479 = vmatprep.subr.mxu0 0.0
    %480 = vmatpush1.msra.mxu0 0.0
    %481 = vmatprep.mubr.f32.mxu0 0.0
    %v482 = vand.u32 %v66, 4294901760
    %483 = vmatmul.mubr.f32.gmra.mrb[0].mxu0 %v482
    %v484 = vpop.f32.mrb[0].mxu0
    %v485 = vadd.f32 %v400, %v484
    %v486 = vpop.f32.mrb[0].mxu0
    %487 = vmatprep.mubr.f32.mxu0 0.0
    %v488 = vand.u32 %v69, 4294901760
    %489 = vmatmul.mubr.f32.gmra.mrb[0].mxu0 %v488
    %v490 = vpop.f32.mrb[0].mxu0
    %v491 = vadd.f32 %v408, %v490
    %v492 = vpop.f32.mrb[0].mxu0
    %493 = vdwg.mxu0
    %494 = vmatprep.subr.mxu0 0.0
    %v495 = vand.u32 %v60, 4294901760
    %496 = vmatpush1.msra.mxu0 %v495
    %497 = vmatprep.subr.mxu0 0.0
    %v498 = vand.u32 %v61, 4294901760
    %499 = vmatpush1.msra.mxu0 %v498
    %500 = vmatprep.subr.mxu0 0.0
    %501 = vmatpush1.msra.mxu0 0.0
    %502 = vmatprep.subr.mxu0 0.0
    %503 = vmatpush1.msra.mxu0 0.0
    %504 = vmatprep.subr.mxu0 0.0
    %505 = vmatpush1.msra.mxu0 0.0
    %506 = vmatprep.subr.mxu0 0.0
    %507 = vmatpush1.msra.mxu0 0.0
    %508 = vmatprep.subr.mxu0 0.0
    %509 = vmatpush1.msra.mxu0 0.0
    %510 = vmatprep.subr.mxu0 0.0
    %511 = vmatpush1.msra.mxu0 0.0
    %512 = vmatprep.subr.mxu0 0.0
    %513 = vmatpush1.msra.mxu0 0.0
    %514 = vmatprep.subr.mxu0 0.0
    %515 = vmatpush1.msra.mxu0 0.0
    %516 = vmatprep.subr.mxu0 0.0
    %517 = vmatpush1.msra.mxu0 0.0
    %518 = vmatprep.subr.mxu0 0.0
    %519 = vmatpush1.msra.mxu0 0.0
    %520 = vmatprep.subr.mxu0 0.0
    %521 = vmatpush1.msra.mxu0 0.0
    %522 = vmatprep.subr.mxu0 0.0
    %523 = vmatpush1.msra.mxu0 0.0
    %524 = vmatprep.subr.mxu0 0.0
    %525 = vmatpush1.msra.mxu0 0.0
    %526 = vmatprep.subr.mxu0 0.0
    %527 = vmatpush1.msra.mxu0 0.0
    %528 = vmatprep.subr.mxu0 0.0
    %529 = vmatpush1.msra.mxu0 0.0
    %530 = vmatprep.subr.mxu0 0.0
    %531 = vmatpush1.msra.mxu0 0.0
    %532 = vmatprep.subr.mxu0 0.0
    %533 = vmatpush1.msra.mxu0 0.0
    %534 = vmatprep.subr.mxu0 0.0
    %535 = vmatpush1.msra.mxu0 0.0
    %536 = vmatprep.subr.mxu0 0.0
    %537 = vmatpush1.msra.mxu0 0.0
    %538 = vmatprep.subr.mxu0 0.0
    %539 = vmatpush1.msra.mxu0 0.0
    %540 = vmatprep.subr.mxu0 0.0
    %541 = vmatpush1.msra.mxu0 0.0
    %542 = vmatprep.subr.mxu0 0.0
    %543 = vmatpush1.msra.mxu0 0.0
    %544 = vmatprep.subr.mxu0 0.0
    %545 = vmatpush1.msra.mxu0 0.0
    %546 = vmatprep.subr.mxu0 0.0
    %547 = vmatpush1.msra.mxu0 0.0
    %548 = vmatprep.subr.mxu0 0.0
    %549 = vmatpush1.msra.mxu0 0.0
    %550 = vmatprep.subr.mxu0 0.0
    %551 = vmatpush1.msra.mxu0 0.0
    %552 = vmatprep.subr.mxu0 0.0
    %553 = vmatpush1.msra.mxu0 0.0
    %554 = vmatprep.subr.mxu0 0.0
    %555 = vmatpush1.msra.mxu0 0.0
    %556 = vmatprep.subr.mxu0 0.0
    %557 = vmatpush1.msra.mxu0 0.0
    %558 = vmatprep.subr.mxu0 0.0
    %559 = vmatpush1.msra.mxu0 0.0
    %560 = vmatprep.mubr.f32.mxu0 0.0
    %v561 = vand.u32 %v66, 4294901760
    %562 = vmatmul.mubr.f32.gmra.mrb[0].mxu0 %v561
    %v563 = vpop.f32.mrb[0].mxu0
    %v564 = vadd.f32 %v485, %v563
    %v565 = vpop.f32.mrb[0].mxu0
    %566 = vmatprep.mubr.f32.mxu0 0.0
    %v567 = vand.u32 %v69, 4294901760
    %568 = vmatmul.mubr.f32.gmra.mrb[0].mxu0 %v567
    %v569 = vpop.f32.mrb[0].mxu0
    %v570 = vadd.f32 %v491, %v569
    %v571 = vpop.f32.mrb[0].mxu0
    %572 = vdwg.mxu0
    %v573 = vld [vmem:[#allocation8] sm:$0xff]
    %v574 = vld [vmem:[#allocation8 + $0x8] sm:$0xff]
    %v575 = vld [vmem:[#allocation8 + $0x10] sm:$0xff]
    %v576 = vld [vmem:[#allocation8 + $0x18] sm:$0xff]
    %s577 = scalar_lea.vmem [#allocation6], 16
    %v578 = vld [vmem:[%s577] sm:$0xff]
    %v579 = vld [vmem:[%s577 + $0x8] sm:$0xff]
    %v581 = vsel %vm64, %v578, 0
    %v584 = vsel %vm64, %v579, 0
    %586 = vmatprep.subr.mxu0 0.0
    %v587 = vand.u32 %v60, 4294901760
    %588 = vmatpush1.msra.mxu0 %v587
    %589 = vmatprep.subr.mxu0 0.0
    %v590 = vand.u32 %v61, 4294901760
    %591 = vmatpush1.msra.mxu0 %v590
    %592 = vmatprep.subr.mxu0 0.0
    %593 = vmatpush1.msra.mxu0 0.0
    %594 = vmatprep.subr.mxu0 0.0
    %595 = vmatpush1.msra.mxu0 0.0
    %596 = vmatprep.subr.mxu0 0.0
    %597 = vmatpush1.msra.mxu0 0.0
    %598 = vmatprep.subr.mxu0 0.0
    %599 = vmatpush1.msra.mxu0 0.0
    %600 = vmatprep.subr.mxu0 0.0
    %601 = vmatpush1.msra.mxu0 0.0
    %602 = vmatprep.subr.mxu0 0.0
    %603 = vmatpush1.msra.mxu0 0.0
    %604 = vmatprep.subr.mxu0 0.0
    %605 = vmatpush1.msra.mxu0 0.0
    %606 = vmatprep.subr.mxu0 0.0
    %607 = vmatpush1.msra.mxu0 0.0
    %608 = vmatprep.subr.mxu0 0.0
    %609 = vmatpush1.msra.mxu0 0.0
    %610 = vmatprep.subr.mxu0 0.0
    %611 = vmatpush1.msra.mxu0 0.0
    %612 = vmatprep.subr.mxu0 0.0
    %613 = vmatpush1.msra.mxu0 0.0
    %614 = vmatprep.subr.mxu0 0.0
    %615 = vmatpush1.msra.mxu0 0.0
    %616 = vmatprep.subr.mxu0 0.0
    %617 = vmatpush1.msra.mxu0 0.0
    %618 = vmatprep.subr.mxu0 0.0
    %619 = vmatpush1.msra.mxu0 0.0
    %620 = vmatprep.subr.mxu0 0.0
    %621 = vmatpush1.msra.mxu0 0.0
    %622 = vmatprep.subr.mxu0 0.0
    %623 = vmatpush1.msra.mxu0 0.0
    %624 = vmatprep.subr.mxu0 0.0
    %625 = vmatpush1.msra.mxu0 0.0
    %626 = vmatprep.subr.mxu0 0.0
    %627 = vmatpush1.msra.mxu0 0.0
    %628 = vmatprep.subr.mxu0 0.0
    %629 = vmatpush1.msra.mxu0 0.0
    %630 = vmatprep.subr.mxu0 0.0
    %631 = vmatpush1.msra.mxu0 0.0
    %632 = vmatprep.subr.mxu0 0.0
    %633 = vmatpush1.msra.mxu0 0.0
    %634 = vmatprep.subr.mxu0 0.0
    %635 = vmatpush1.msra.mxu0 0.0
    %636 = vmatprep.subr.mxu0 0.0
    %637 = vmatpush1.msra.mxu0 0.0
    %638 = vmatprep.subr.mxu0 0.0
    %639 = vmatpush1.msra.mxu0 0.0
    %640 = vmatprep.subr.mxu0 0.0
    %641 = vmatpush1.msra.mxu0 0.0
    %642 = vmatprep.subr.mxu0 0.0
    %643 = vmatpush1.msra.mxu0 0.0
    %644 = vmatprep.subr.mxu0 0.0
    %645 = vmatpush1.msra.mxu0 0.0
    %646 = vmatprep.subr.mxu0 0.0
    %647 = vmatpush1.msra.mxu0 0.0
    %648 = vmatprep.subr.mxu0 0.0
    %649 = vmatpush1.msra.mxu0 0.0
    %650 = vmatprep.subr.mxu0 0.0
    %651 = vmatpush1.msra.mxu0 0.0
    %652 = vmatprep.mubr.f32.mxu0 0.0
    %v653 = vand.u32 %v581, 4294901760
    %v654 = vsub.f32 %v581, %v653
    %v655 = vand.u32 %v654, 4294901760
    %v656 = vsub.f32 %v654, %v655
    %v657 = vand.u32 %v656, 4294901760
    %658 = vmatmul.mubr.f32.gmra.mrb[0].mxu0 %v657
    %v659 = vpop.f32.mrb[0].mxu0
    %v660 = vadd.f32 0.0, %v659
    %v661 = vpop.f32.mrb[0].mxu0
    %662 = vmatprep.mubr.f32.mxu0 0.0
    %v663 = vand.u32 %v584, 4294901760
    %v664 = vsub.f32 %v584, %v663
    %v665 = vand.u32 %v664, 4294901760
    %v666 = vsub.f32 %v664, %v665
    %v667 = vand.u32 %v666, 4294901760
    %668 = vmatmul.mubr.f32.gmra.mrb[0].mxu0 %v667
    %v669 = vpop.f32.mrb[0].mxu0
    %v670 = vadd.f32 0.0, %v669
    %v671 = vpop.f32.mrb[0].mxu0
    %672 = vdwg.mxu0
    %673 = vmatprep.subr.mxu0 0.0
    %v674 = vand.u32 %v60, 4294901760
    %v675 = vsub.f32 %v60, %v674
    %v676 = vand.u32 %v675, 4294901760
    %v677 = vsub.f32 %v675, %v676
    %v678 = vand.u32 %v677, 4294901760
    %679 = vmatpush1.msra.mxu0 %v678
    %680 = vmatprep.subr.mxu0 0.0
    %v681 = vand.u32 %v61, 4294901760
    %v682 = vsub.f32 %v61, %v681
    %v683 = vand.u32 %v682, 4294901760
    %v684 = vsub.f32 %v682, %v683
    %v685 = vand.u32 %v684, 4294901760
    %686 = vmatpush1.msra.mxu0 %v685
    %687 = vmatprep.subr.mxu0 0.0
    %688 = vmatpush1.msra.mxu0 0.0
    %689 = vmatprep.subr.mxu0 0.0
    %690 = vmatpush1.msra.mxu0 0.0
    %691 = vmatprep.subr.mxu0 0.0
    %692 = vmatpush1.msra.mxu0 0.0
    %693 = vmatprep.subr.mxu0 0.0
    %694 = vmatpush1.msra.mxu0 0.0
    %695 = vmatprep.subr.mxu0 0.0
    %696 = vmatpush1.msra.mxu0 0.0
    %697 = vmatprep.subr.mxu0 0.0
    %698 = vmatpush1.msra.mxu0 0.0
    %699 = vmatprep.subr.mxu0 0.0
    %700 = vmatpush1.msra.mxu0 0.0
    %701 = vmatprep.subr.mxu0 0.0
    %702 = vmatpush1.msra.mxu0 0.0
    %703 = vmatprep.subr.mxu0 0.0
    %704 = vmatpush1.msra.mxu0 0.0
    %705 = vmatprep.subr.mxu0 0.0
    %706 = vmatpush1.msra.mxu0 0.0
    %707 = vmatprep.subr.mxu0 0.0
    %708 = vmatpush1.msra.mxu0 0.0
    %709 = vmatprep.subr.mxu0 0.0
    %710 = vmatpush1.msra.mxu0 0.0
    %711 = vmatprep.subr.mxu0 0.0
    %712 = vmatpush1.msra.mxu0 0.0
    %713 = vmatprep.subr.mxu0 0.0
    %714 = vmatpush1.msra.mxu0 0.0
    %715 = vmatprep.subr.mxu0 0.0
    %716 = vmatpush1.msra.mxu0 0.0
    %717 = vmatprep.subr.mxu0 0.0
    %718 = vmatpush1.msra.mxu0 0.0
    %719 = vmatprep.subr.mxu0 0.0
    %720 = vmatpush1.msra.mxu0 0.0
    %721 = vmatprep.subr.mxu0 0.0
    %722 = vmatpush1.msra.mxu0 0.0
    %723 = vmatprep.subr.mxu0 0.0
    %724 = vmatpush1.msra.mxu0 0.0
    %725 = vmatprep.subr.mxu0 0.0
    %726 = vmatpush1.msra.mxu0 0.0
    %727 = vmatprep.subr.mxu0 0.0
    %728 = vmatpush1.msra.mxu0 0.0
    %729 = vmatprep.subr.mxu0 0.0
    %730 = vmatpush1.msra.mxu0 0.0
    %731 = vmatprep.subr.mxu0 0.0
    %732 = vmatpush1.msra.mxu0 0.0
    %733 = vmatprep.subr.mxu0 0.0
    %734 = vmatpush1.msra.mxu0 0.0
    %735 = vmatprep.subr.mxu0 0.0
    %736 = vmatpush1.msra.mxu0 0.0
    %737 = vmatprep.subr.mxu0 0.0
    %738 = vmatpush1.msra.mxu0 0.0
    %739 = vmatprep.subr.mxu0 0.0
    %740 = vmatpush1.msra.mxu0 0.0
    %741 = vmatprep.subr.mxu0 0.0
    %742 = vmatpush1.msra.mxu0 0.0
    %743 = vmatprep.subr.mxu0 0.0
    %744 = vmatpush1.msra.mxu0 0.0
    %745 = vmatprep.subr.mxu0 0.0
    %746 = vmatpush1.msra.mxu0 0.0
    %747 = vmatprep.mubr.f32.mxu0 0.0
    %v748 = vand.u32 %v581, 4294901760
    %749 = vmatmul.mubr.f32.gmra.mrb[0].mxu0 %v748
    %v750 = vpop.f32.mrb[0].mxu0
    %v751 = vadd.f32 %v660, %v750
    %v752 = vpop.f32.mrb[0].mxu0
    %753 = vmatprep.mubr.f32.mxu0 0.0
    %v754 = vand.u32 %v584, 4294901760
    %755 = vmatmul.mubr.f32.gmra.mrb[0].mxu0 %v754
    %v756 = vpop.f32.mrb[0].mxu0
    %v757 = vadd.f32 %v670, %v756
    %v758 = vpop.f32.mrb[0].mxu0
    %759 = vdwg.mxu0
    %760 = vmatprep.subr.mxu0 0.0
    %v761 = vand.u32 %v60, 4294901760
    %v762 = vsub.f32 %v60, %v761
    %763 = vmatpush1.msra.mxu0 %v762
    %764 = vmatprep.subr.mxu0 0.0
    %v765 = vand.u32 %v61, 4294901760
    %v766 = vsub.f32 %v61, %v765
    %767 = vmatpush1.msra.mxu0 %v766
    %768 = vmatprep.subr.mxu0 0.0
    %769 = vmatpush1.msra.mxu0 0.0
    %770 = vmatprep.subr.mxu0 0.0
    %771 = vmatpush1.msra.mxu0 0.0
    %772 = vmatprep.subr.mxu0 0.0
    %773 = vmatpush1.msra.mxu0 0.0
    %774 = vmatprep.subr.mxu0 0.0
    %775 = vmatpush1.msra.mxu0 0.0
    %776 = vmatprep.subr.mxu0 0.0
    %777 = vmatpush1.msra.mxu0 0.0
    %778 = vmatprep.subr.mxu0 0.0
    %779 = vmatpush1.msra.mxu0 0.0
    %780 = vmatprep.subr.mxu0 0.0
    %781 = vmatpush1.msra.mxu0 0.0
    %782 = vmatprep.subr.mxu0 0.0
    %783 = vmatpush1.msra.mxu0 0.0
    %784 = vmatprep.subr.mxu0 0.0
    %785 = vmatpush1.msra.mxu0 0.0
    %786 = vmatprep.subr.mxu0 0.0
    %787 = vmatpush1.msra.mxu0 0.0
    %788 = vmatprep.subr.mxu0 0.0
    %789 = vmatpush1.msra.mxu0 0.0
    %790 = vmatprep.subr.mxu0 0.0
    %791 = vmatpush1.msra.mxu0 0.0
    %792 = vmatprep.subr.mxu0 0.0
    %793 = vmatpush1.msra.mxu0 0.0
    %794 = vmatprep.subr.mxu0 0.0
    %795 = vmatpush1.msra.mxu0 0.0
    %796 = vmatprep.subr.mxu0 0.0
    %797 = vmatpush1.msra.mxu0 0.0
    %798 = vmatprep.subr.mxu0 0.0
    %799 = vmatpush1.msra.mxu0 0.0
    %800 = vmatprep.subr.mxu0 0.0
    %801 = vmatpush1.msra.mxu0 0.0
    %802 = vmatprep.subr.mxu0 0.0
    %803 = vmatpush1.msra.mxu0 0.0
    %804 = vmatprep.subr.mxu0 0.0
    %805 = vmatpush1.msra.mxu0 0.0
    %806 = vmatprep.subr.mxu0 0.0
    %807 = vmatpush1.msra.mxu0 0.0
    %808 = vmatprep.subr.mxu0 0.0
    %809 = vmatpush1.msra.mxu0 0.0
    %810 = vmatprep.subr.mxu0 0.0
    %811 = vmatpush1.msra.mxu0 0.0
    %812 = vmatprep.subr.mxu0 0.0
    %813 = vmatpush1.msra.mxu0 0.0
    %814 = vmatprep.subr.mxu0 0.0
    %815 = vmatpush1.msra.mxu0 0.0
    %816 = vmatprep.subr.mxu0 0.0
    %817 = vmatpush1.msra.mxu0 0.0
    %818 = vmatprep.subr.mxu0 0.0
    %819 = vmatpush1.msra.mxu0 0.0
    %820 = vmatprep.subr.mxu0 0.0
    %821 = vmatpush1.msra.mxu0 0.0
    %822 = vmatprep.subr.mxu0 0.0
    %823 = vmatpush1.msra.mxu0 0.0
    %824 = vmatprep.subr.mxu0 0.0
    %825 = vmatpush1.msra.mxu0 0.0
    %826 = vmatprep.subr.mxu0 0.0
    %827 = vmatpush1.msra.mxu0 0.0
    %828 = vmatprep.mubr.f32.mxu0 0.0
    %v829 = vand.u32 %v581, 4294901760
    %v830 = vsub.f32 %v581, %v829
    %831 = vmatmul.mubr.f32.gmra.mrb[0].mxu0 %v830
    %v832 = vpop.f32.mrb[0].mxu0
    %v833 = vadd.f32 %v751, %v832
    %v834 = vpop.f32.mrb[0].mxu0
    %835 = vmatprep.mubr.f32.mxu0 0.0
    %v836 = vand.u32 %v584, 4294901760
    %v837 = vsub.f32 %v584, %v836
    %838 = vmatmul.mubr.f32.gmra.mrb[0].mxu0 %v837
    %v839 = vpop.f32.mrb[0].mxu0
    %v840 = vadd.f32 %v757, %v839
    %v841 = vpop.f32.mrb[0].mxu0
    %842 = vdwg.mxu0
    %843 = vmatprep.subr.mxu0 0.0
    %v844 = vand.u32 %v60, 4294901760
    %845 = vmatpush1.msra.mxu0 %v844
    %846 = vmatprep.subr.mxu0 0.0
    %v847 = vand.u32 %v61, 4294901760
    %848 = vmatpush1.msra.mxu0 %v847
    %849 = vmatprep.subr.mxu0 0.0
    %850 = vmatpush1.msra.mxu0 0.0
    %851 = vmatprep.subr.mxu0 0.0
    %852 = vmatpush1.msra.mxu0 0.0
    %853 = vmatprep.subr.mxu0 0.0
    %854 = vmatpush1.msra.mxu0 0.0
    %855 = vmatprep.subr.mxu0 0.0
    %856 = vmatpush1.msra.mxu0 0.0
    %857 = vmatprep.subr.mxu0 0.0
    %858 = vmatpush1.msra.mxu0 0.0
    %859 = vmatprep.subr.mxu0 0.0
    %860 = vmatpush1.msra.mxu0 0.0
    %861 = vmatprep.subr.mxu0 0.0
    %862 = vmatpush1.msra.mxu0 0.0
    %863 = vmatprep.subr.mxu0 0.0
    %864 = vmatpush1.msra.mxu0 0.0
    %865 = vmatprep.subr.mxu0 0.0
    %866 = vmatpush1.msra.mxu0 0.0
    %867 = vmatprep.subr.mxu0 0.0
    %868 = vmatpush1.msra.mxu0 0.0
    %869 = vmatprep.subr.mxu0 0.0
    %870 = vmatpush1.msra.mxu0 0.0
    %871 = vmatprep.subr.mxu0 0.0
    %872 = vmatpush1.msra.mxu0 0.0
    %873 = vmatprep.subr.mxu0 0.0
    %874 = vmatpush1.msra.mxu0 0.0
    %875 = vmatprep.subr.mxu0 0.0
    %876 = vmatpush1.msra.mxu0 0.0
    %877 = vmatprep.subr.mxu0 0.0
    %878 = vmatpush1.msra.mxu0 0.0
    %879 = vmatprep.subr.mxu0 0.0
    %880 = vmatpush1.msra.mxu0 0.0
    %881 = vmatprep.subr.mxu0 0.0
    %882 = vmatpush1.msra.mxu0 0.0
    %883 = vmatprep.subr.mxu0 0.0
    %884 = vmatpush1.msra.mxu0 0.0
    %885 = vmatprep.subr.mxu0 0.0
    %886 = vmatpush1.msra.mxu0 0.0
    %887 = vmatprep.subr.mxu0 0.0
    %888 = vmatpush1.msra.mxu0 0.0
    %889 = vmatprep.subr.mxu0 0.0
    %890 = vmatpush1.msra.mxu0 0.0
    %891 = vmatprep.subr.mxu0 0.0
    %892 = vmatpush1.msra.mxu0 0.0
    %893 = vmatprep.subr.mxu0 0.0
    %894 = vmatpush1.msra.mxu0 0.0
    %895 = vmatprep.subr.mxu0 0.0
    %896 = vmatpush1.msra.mxu0 0.0
    %897 = vmatprep.subr.mxu0 0.0
    %898 = vmatpush1.msra.mxu0 0.0
    %899 = vmatprep.subr.mxu0 0.0
    %900 = vmatpush1.msra.mxu0 0.0
    %901 = vmatprep.subr.mxu0 0.0
    %902 = vmatpush1.msra.mxu0 0.0
    %903 = vmatprep.subr.mxu0 0.0
    %904 = vmatpush1.msra.mxu0 0.0
    %905 = vmatprep.subr.mxu0 0.0
    %906 = vmatpush1.msra.mxu0 0.0
    %907 = vmatprep.subr.mxu0 0.0
    %908 = vmatpush1.msra.mxu0 0.0
    %909 = vmatprep.mubr.f32.mxu0 0.0
    %v910 = vand.u32 %v581, 4294901760
    %v911 = vsub.f32 %v581, %v910
    %v912 = vand.u32 %v911, 4294901760
    %913 = vmatmul.mubr.f32.gmra.mrb[0].mxu0 %v912
    %v914 = vpop.f32.mrb[0].mxu0
    %v915 = vadd.f32 %v833, %v914
    %v916 = vpop.f32.mrb[0].mxu0
    %917 = vmatprep.mubr.f32.mxu0 0.0
    %v918 = vand.u32 %v584, 4294901760
    %v919 = vsub.f32 %v584, %v918
    %v920 = vand.u32 %v919, 4294901760
    %921 = vmatmul.mubr.f32.gmra.mrb[0].mxu0 %v920
    %v922 = vpop.f32.mrb[0].mxu0
    %v923 = vadd.f32 %v840, %v922
    %v924 = vpop.f32.mrb[0].mxu0
    %925 = vdwg.mxu0
    %926 = vmatprep.subr.mxu0 0.0
    %v927 = vand.u32 %v60, 4294901760
    %v928 = vsub.f32 %v60, %v927
    %v929 = vand.u32 %v928, 4294901760
    %930 = vmatpush1.msra.mxu0 %v929
    %931 = vmatprep.subr.mxu0 0.0
    %v932 = vand.u32 %v61, 4294901760
    %v933 = vsub.f32 %v61, %v932
    %v934 = vand.u32 %v933, 4294901760
    %935 = vmatpush1.msra.mxu0 %v934
    %936 = vmatprep.subr.mxu0 0.0
    %937 = vmatpush1.msra.mxu0 0.0
    %938 = vmatprep.subr.mxu0 0.0
    %939 = vmatpush1.msra.mxu0 0.0
    %940 = vmatprep.subr.mxu0 0.0
    %941 = vmatpush1.msra.mxu0 0.0
    %942 = vmatprep.subr.mxu0 0.0
    %943 = vmatpush1.msra.mxu0 0.0
    %944 = vmatprep.subr.mxu0 0.0
    %945 = vmatpush1.msra.mxu0 0.0
    %946 = vmatprep.subr.mxu0 0.0
    %947 = vmatpush1.msra.mxu0 0.0
    %948 = vmatprep.subr.mxu0 0.0
    %949 = vmatpush1.msra.mxu0 0.0
    %950 = vmatprep.subr.mxu0 0.0
    %951 = vmatpush1.msra.mxu0 0.0
    %952 = vmatprep.subr.mxu0 0.0
    %953 = vmatpush1.msra.mxu0 0.0
    %954 = vmatprep.subr.mxu0 0.0
    %955 = vmatpush1.msra.mxu0 0.0
    %956 = vmatprep.subr.mxu0 0.0
    %957 = vmatpush1.msra.mxu0 0.0
    %958 = vmatprep.subr.mxu0 0.0
    %959 = vmatpush1.msra.mxu0 0.0
    %960 = vmatprep.subr.mxu0 0.0
    %961 = vmatpush1.msra.mxu0 0.0
    %962 = vmatprep.subr.mxu0 0.0
    %963 = vmatpush1.msra.mxu0 0.0
    %964 = vmatprep.subr.mxu0 0.0
    %965 = vmatpush1.msra.mxu0 0.0
    %966 = vmatprep.subr.mxu0 0.0
    %967 = vmatpush1.msra.mxu0 0.0
    %968 = vmatprep.subr.mxu0 0.0
    %969 = vmatpush1.msra.mxu0 0.0
    %970 = vmatprep.subr.mxu0 0.0
    %971 = vmatpush1.msra.mxu0 0.0
    %972 = vmatprep.subr.mxu0 0.0
    %973 = vmatpush1.msra.mxu0 0.0
    %974 = vmatprep.subr.mxu0 0.0
    %975 = vmatpush1.msra.mxu0 0.0
    %976 = vmatprep.subr.mxu0 0.0
    %977 = vmatpush1.msra.mxu0 0.0
    %978 = vmatprep.subr.mxu0 0.0
    %979 = vmatpush1.msra.mxu0 0.0
    %980 = vmatprep.subr.mxu0 0.0
    %981 = vmatpush1.msra.mxu0 0.0
    %982 = vmatprep.subr.mxu0 0.0
    %983 = vmatpush1.msra.mxu0 0.0
    %984 = vmatprep.subr.mxu0 0.0
    %985 = vmatpush1.msra.mxu0 0.0
    %986 = vmatprep.subr.mxu0 0.0
    %987 = vmatpush1.msra.mxu0 0.0
    %988 = vmatprep.subr.mxu0 0.0
    %989 = vmatpush1.msra.mxu0 0.0
    %990 = vmatprep.subr.mxu0 0.0
    %991 = vmatpush1.msra.mxu0 0.0
    %992 = vmatprep.subr.mxu0 0.0
    %993 = vmatpush1.msra.mxu0 0.0
    %994 = vmatprep.subr.mxu0 0.0
    %995 = vmatpush1.msra.mxu0 0.0
    %996 = vmatprep.mubr.f32.mxu0 0.0
    %v997 = vand.u32 %v581, 4294901760
    %998 = vmatmul.mubr.f32.gmra.mrb[0].mxu0 %v997
    %v999 = vpop.f32.mrb[0].mxu0
    %v1000 = vadd.f32 %v915, %v999
    %v1001 = vpop.f32.mrb[0].mxu0
    %1002 = vmatprep.mubr.f32.mxu0 0.0
    %v1003 = vand.u32 %v584, 4294901760
    %1004 = vmatmul.mubr.f32.gmra.mrb[0].mxu0 %v1003
    %v1005 = vpop.f32.mrb[0].mxu0
    %v1006 = vadd.f32 %v923, %v1005
    %v1007 = vpop.f32.mrb[0].mxu0
    %1008 = vdwg.mxu0
    %1009 = vmatprep.subr.mxu0 0.0
    %v1010 = vand.u32 %v60, 4294901760
    %1011 = vmatpush1.msra.mxu0 %v1010
    %1012 = vmatprep.subr.mxu0 0.0
    %v1013 = vand.u32 %v61, 4294901760
    %1014 = vmatpush1.msra.mxu0 %v1013
    %1015 = vmatprep.subr.mxu0 0.0
    %1016 = vmatpush1.msra.mxu0 0.0
    %1017 = vmatprep.subr.mxu0 0.0
    %1018 = vmatpush1.msra.mxu0 0.0
    %1019 = vmatprep.subr.mxu0 0.0
    %1020 = vmatpush1.msra.mxu0 0.0
    %1021 = vmatprep.subr.mxu0 0.0
    %1022 = vmatpush1.msra.mxu0 0.0
    %1023 = vmatprep.subr.mxu0 0.0
    %1024 = vmatpush1.msra.mxu0 0.0
    %1025 = vmatprep.subr.mxu0 0.0
    %1026 = vmatpush1.msra.mxu0 0.0
    %1027 = vmatprep.subr.mxu0 0.0
    %1028 = vmatpush1.msra.mxu0 0.0
    %1029 = vmatprep.subr.mxu0 0.0
    %1030 = vmatpush1.msra.mxu0 0.0
    %1031 = vmatprep.subr.mxu0 0.0
    %1032 = vmatpush1.msra.mxu0 0.0
    %1033 = vmatprep.subr.mxu0 0.0
    %1034 = vmatpush1.msra.mxu0 0.0
    %1035 = vmatprep.subr.mxu0 0.0
    %1036 = vmatpush1.msra.mxu0 0.0
    %1037 = vmatprep.subr.mxu0 0.0
    %1038 = vmatpush1.msra.mxu0 0.0
    %1039 = vmatprep.subr.mxu0 0.0
    %1040 = vmatpush1.msra.mxu0 0.0
    %1041 = vmatprep.subr.mxu0 0.0
    %1042 = vmatpush1.msra.mxu0 0.0
    %1043 = vmatprep.subr.mxu0 0.0
    %1044 = vmatpush1.msra.mxu0 0.0
    %1045 = vmatprep.subr.mxu0 0.0
    %1046 = vmatpush1.msra.mxu0 0.0
    %1047 = vmatprep.subr.mxu0 0.0
    %1048 = vmatpush1.msra.mxu0 0.0
    %1049 = vmatprep.subr.mxu0 0.0
    %1050 = vmatpush1.msra.mxu0 0.0
    %1051 = vmatprep.subr.mxu0 0.0
    %1052 = vmatpush1.msra.mxu0 0.0
    %1053 = vmatprep.subr.mxu0 0.0
    %1054 = vmatpush1.msra.mxu0 0.0
    %1055 = vmatprep.subr.mxu0 0.0
    %1056 = vmatpush1.msra.mxu0 0.0
    %1057 = vmatprep.subr.mxu0 0.0
    %1058 = vmatpush1.msra.mxu0 0.0
    %1059 = vmatprep.subr.mxu0 0.0
    %1060 = vmatpush1.msra.mxu0 0.0
    %1061 = vmatprep.subr.mxu0 0.0
    %1062 = vmatpush1.msra.mxu0 0.0
    %1063 = vmatprep.subr.mxu0 0.0
    %1064 = vmatpush1.msra.mxu0 0.0
    %1065 = vmatprep.subr.mxu0 0.0
    %1066 = vmatpush1.msra.mxu0 0.0
    %1067 = vmatprep.subr.mxu0 0.0
    %1068 = vmatpush1.msra.mxu0 0.0
    %1069 = vmatprep.subr.mxu0 0.0
    %1070 = vmatpush1.msra.mxu0 0.0
    %1071 = vmatprep.subr.mxu0 0.0
    %1072 = vmatpush1.msra.mxu0 0.0
    %1073 = vmatprep.subr.mxu0 0.0
    %1074 = vmatpush1.msra.mxu0 0.0
    %1075 = vmatprep.mubr.f32.mxu0 0.0
    %v1076 = vand.u32 %v581, 4294901760
    %1077 = vmatmul.mubr.f32.gmra.mrb[0].mxu0 %v1076
    %v1078 = vpop.f32.mrb[0].mxu0
    %v1079 = vadd.f32 %v1000, %v1078
    %v1080 = vpop.f32.mrb[0].mxu0
    %1081 = vmatprep.mubr.f32.mxu0 0.0
    %v1082 = vand.u32 %v584, 4294901760
    %1083 = vmatmul.mubr.f32.gmra.mrb[0].mxu0 %v1082
    %v1084 = vpop.f32.mrb[0].mxu0
    %v1085 = vadd.f32 %v1006, %v1084
    %v1086 = vpop.f32.mrb[0].mxu0
    %1087 = vdwg.mxu0
    %s1088 = scalar_lea.vmem [#allocation8], 32
    %v1089 = vld [vmem:[%s1088] sm:$0xff]
    %v1090 = vld [vmem:[%s1088 + $0x8] sm:$0xff]
    %v1091 = vld [vmem:[%s1088 + $0x10] sm:$0xff]
    %v1092 = vld [vmem:[%s1088 + $0x18] sm:$0xff]
    %vm1093 = vcmask 261120
    %v1095 = vsel %vm1093, %v1079, 0
    %v1098 = vsel %vm1093, %v1085, 0
    %1100 = vmatprep.subr.mxu0 0.0
    %v1101 = vand.u32 %v1089, 4294901760
    %1102 = vmatpush1.msra.mxu0 %v1101
    %1103 = vmatprep.subr.mxu0 0.0
    %v1104 = vand.u32 %v1090, 4294901760
    %1105 = vmatpush1.msra.mxu0 %v1104
    %1106 = vmatprep.subr.mxu0 0.0
    %v1107 = vand.u32 %v1091, 4294901760
    %1108 = vmatpush1.msra.mxu0 %v1107
    %1109 = vmatprep.subr.mxu0 0.0
    %v1110 = vand.u32 %v1092, 4294901760
    %1111 = vmatpush1.msra.mxu0 %v1110
    %1112 = vmatprep.subr.mxu0 0.0
    %1113 = vmatpush1.msra.mxu0 0.0
    %1114 = vmatprep.subr.mxu0 0.0
    %1115 = vmatpush1.msra.mxu0 0.0
    %1116 = vmatprep.subr.mxu0 0.0
    %1117 = vmatpush1.msra.mxu0 0.0
    %1118 = vmatprep.subr.mxu0 0.0
    %1119 = vmatpush1.msra.mxu0 0.0
    %1120 = vmatprep.subr.mxu0 0.0
    %1121 = vmatpush1.msra.mxu0 0.0
    %1122 = vmatprep.subr.mxu0 0.0
    %1123 = vmatpush1.msra.mxu0 0.0
    %1124 = vmatprep.subr.mxu0 0.0
    %1125 = vmatpush1.msra.mxu0 0.0
    %1126 = vmatprep.subr.mxu0 0.0
    %1127 = vmatpush1.msra.mxu0 0.0
    %1128 = vmatprep.subr.mxu0 0.0
    %1129 = vmatpush1.msra.mxu0 0.0
    %1130 = vmatprep.subr.mxu0 0.0
    %1131 = vmatpush1.msra.mxu0 0.0
    %1132 = vmatprep.subr.mxu0 0.0
    %1133 = vmatpush1.msra.mxu0 0.0
    %1134 = vmatprep.subr.mxu0 0.0
    %1135 = vmatpush1.msra.mxu0 0.0
    %1136 = vmatprep.subr.mxu0 0.0
    %1137 = vmatpush1.msra.mxu0 0.0
    %1138 = vmatprep.subr.mxu0 0.0
    %1139 = vmatpush1.msra.mxu0 0.0
    %1140 = vmatprep.subr.mxu0 0.0
    %1141 = vmatpush1.msra.mxu0 0.0
    %1142 = vmatprep.subr.mxu0 0.0
    %1143 = vmatpush1.msra.mxu0 0.0
    %1144 = vmatprep.subr.mxu0 0.0
    %1145 = vmatpush1.msra.mxu0 0.0
    %1146 = vmatprep.subr.mxu0 0.0
    %1147 = vmatpush1.msra.mxu0 0.0
    %1148 = vmatprep.subr.mxu0 0.0
    %1149 = vmatpush1.msra.mxu0 0.0
    %1150 = vmatprep.subr.mxu0 0.0
    %1151 = vmatpush1.msra.mxu0 0.0
    %1152 = vmatprep.subr.mxu0 0.0
    %1153 = vmatpush1.msra.mxu0 0.0
    %1154 = vmatprep.subr.mxu0 0.0
    %1155 = vmatpush1.msra.mxu0 0.0
    %1156 = vmatprep.subr.mxu0 0.0
    %1157 = vmatpush1.msra.mxu0 0.0
    %1158 = vmatprep.subr.mxu0 0.0
    %1159 = vmatpush1.msra.mxu0 0.0
    %1160 = vmatprep.subr.mxu0 0.0
    %1161 = vmatpush1.msra.mxu0 0.0
    %1162 = vmatprep.subr.mxu0 0.0
    %1163 = vmatpush1.msra.mxu0 0.0
    %1164 = vmatprep.subr.mxu0 0.0
    %1165 = vmatpush1.msra.mxu0 0.0
    %1166 = vmatprep.subr.mxu0 0.0
    %1167 = vmatpush1.msra.mxu0 0.0
    %1168 = vmatprep.mubr.f32.mxu0 0.0
    %v1169 = vand.u32 %v1095, 4294901760
    %v1170 = vsub.f32 %v1095, %v1169
    %v1171 = vand.u32 %v1170, 4294901760
    %v1172 = vsub.f32 %v1170, %v1171
    %v1173 = vand.u32 %v1172, 4294901760
    %1174 = vmatmul.mubr.f32.gmra.mrb[0].mxu0 %v1173
    %v1175 = vpop.f32.mrb[0].mxu0
    %v1176 = vadd.f32 0.0, %v1175
    %v1177 = vpop.f32.mrb[0].mxu0
    %1178 = vmatprep.mubr.f32.mxu0 0.0
    %v1179 = vand.u32 %v1098, 4294901760
    %v1180 = vsub.f32 %v1098, %v1179
    %v1181 = vand.u32 %v1180, 4294901760
    %v1182 = vsub.f32 %v1180, %v1181
    %v1183 = vand.u32 %v1182, 4294901760
    %1184 = vmatmul.mubr.f32.gmra.mrb[0].mxu0 %v1183
    %v1185 = vpop.f32.mrb[0].mxu0
    %v1186 = vadd.f32 0.0, %v1185
    %v1187 = vpop.f32.mrb[0].mxu0
    %1188 = vdwg.mxu0
    %1189 = vmatprep.subr.mxu0 0.0
    %v1190 = vand.u32 %v1089, 4294901760
    %v1191 = vsub.f32 %v1089, %v1190
    %v1192 = vand.u32 %v1191, 4294901760
    %v1193 = vsub.f32 %v1191, %v1192
    %v1194 = vand.u32 %v1193, 4294901760
    %1195 = vmatpush1.msra.mxu0 %v1194
    %1196 = vmatprep.subr.mxu0 0.0
    %v1197 = vand.u32 %v1090, 4294901760
    %v1198 = vsub.f32 %v1090, %v1197
    %v1199 = vand.u32 %v1198, 4294901760
    %v1200 = vsub.f32 %v1198, %v1199
    %v1201 = vand.u32 %v1200, 4294901760
    %1202 = vmatpush1.msra.mxu0 %v1201
    %1203 = vmatprep.subr.mxu0 0.0
    %v1204 = vand.u32 %v1091, 4294901760
    %v1205 = vsub.f32 %v1091, %v1204
    %v1206 = vand.u32 %v1205, 4294901760
    %v1207 = vsub.f32 %v1205, %v1206
    %v1208 = vand.u32 %v1207, 4294901760
    %1209 = vmatpush1.msra.mxu0 %v1208
    %1210 = vmatprep.subr.mxu0 0.0
    %v1211 = vand.u32 %v1092, 4294901760
    %v1212 = vsub.f32 %v1092, %v1211
    %v1213 = vand.u32 %v1212, 4294901760
    %v1214 = vsub.f32 %v1212, %v1213
    %v1215 = vand.u32 %v1214, 4294901760
    %1216 = vmatpush1.msra.mxu0 %v1215
    %1217 = vmatprep.subr.mxu0 0.0
    %1218 = vmatpush1.msra.mxu0 0.0
    %1219 = vmatprep.subr.mxu0 0.0
    %1220 = vmatpush1.msra.mxu0 0.0
    %1221 = vmatprep.subr.mxu0 0.0
    %1222 = vmatpush1.msra.mxu0 0.0
    %1223 = vmatprep.subr.mxu0 0.0
    %1224 = vmatpush1.msra.mxu0 0.0
    %1225 = vmatprep.subr.mxu0 0.0
    %1226 = vmatpush1.msra.mxu0 0.0
    %1227 = vmatprep.subr.mxu0 0.0
    %1228 = vmatpush1.msra.mxu0 0.0
    %1229 = vmatprep.subr.mxu0 0.0
    %1230 = vmatpush1.msra.mxu0 0.0
    %1231 = vmatprep.subr.mxu0 0.0
    %1232 = vmatpush1.msra.mxu0 0.0
    %1233 = vmatprep.subr.mxu0 0.0
    %1234 = vmatpush1.msra.mxu0 0.0
    %1235 = vmatprep.subr.mxu0 0.0
    %1236 = vmatpush1.msra.mxu0 0.0
    %1237 = vmatprep.subr.mxu0 0.0
    %1238 = vmatpush1.msra.mxu0 0.0
    %1239 = vmatprep.subr.mxu0 0.0
    %1240 = vmatpush1.msra.mxu0 0.0
    %1241 = vmatprep.subr.mxu0 0.0
    %1242 = vmatpush1.msra.mxu0 0.0
    %1243 = vmatprep.subr.mxu0 0.0
    %1244 = vmatpush1.msra.mxu0 0.0
    %1245 = vmatprep.subr.mxu0 0.0
    %1246 = vmatpush1.msra.mxu0 0.0
    %1247 = vmatprep.subr.mxu0 0.0
    %1248 = vmatpush1.msra.mxu0 0.0
    %1249 = vmatprep.subr.mxu0 0.0
    %1250 = vmatpush1.msra.mxu0 0.0
    %1251 = vmatprep.subr.mxu0 0.0
    %1252 = vmatpush1.msra.mxu0 0.0
    %1253 = vmatprep.subr.mxu0 0.0
    %1254 = vmatpush1.msra.mxu0 0.0
    %1255 = vmatprep.subr.mxu0 0.0
    %1256 = vmatpush1.msra.mxu0 0.0
    %1257 = vmatprep.subr.mxu0 0.0
    %1258 = vmatpush1.msra.mxu0 0.0
    %1259 = vmatprep.subr.mxu0 0.0
    %1260 = vmatpush1.msra.mxu0 0.0
    %1261 = vmatprep.subr.mxu0 0.0
    %1262 = vmatpush1.msra.mxu0 0.0
    %1263 = vmatprep.subr.mxu0 0.0
    %1264 = vmatpush1.msra.mxu0 0.0
    %1265 = vmatprep.subr.mxu0 0.0
    %1266 = vmatpush1.msra.mxu0 0.0
    %1267 = vmatprep.subr.mxu0 0.0
    %1268 = vmatpush1.msra.mxu0 0.0
    %1269 = vmatprep.subr.mxu0 0.0
    %1270 = vmatpush1.msra.mxu0 0.0
    %1271 = vmatprep.subr.mxu0 0.0
    %1272 = vmatpush1.msra.mxu0 0.0
    %1273 = vmatprep.mubr.f32.mxu0 0.0
    %v1274 = vand.u32 %v1095, 4294901760
    %1275 = vmatmul.mubr.f32.gmra.mrb[0].mxu0 %v1274
    %v1276 = vpop.f32.mrb[0].mxu0
    %v1277 = vadd.f32 %v1176, %v1276
    %v1278 = vpop.f32.mrb[0].mxu0
    %1279 = vmatprep.mubr.f32.mxu0 0.0
    %v1280 = vand.u32 %v1098, 4294901760
    %1281 = vmatmul.mubr.f32.gmra.mrb[0].mxu0 %v1280
    %v1282 = vpop.f32.mrb[0].mxu0
    %v1283 = vadd.f32 %v1186, %v1282
    %v1284 = vpop.f32.mrb[0].mxu0
    %1285 = vdwg.mxu0
    %1286 = vmatprep.subr.mxu0 0.0
    %v1287 = vand.u32 %v1089, 4294901760
    %v1288 = vsub.f32 %v1089, %v1287
    %1289 = vmatpush1.msra.mxu0 %v1288
    %1290 = vmatprep.subr.mxu0 0.0
    %v1291 = vand.u32 %v1090, 4294901760
    %v1292 = vsub.f32 %v1090, %v1291
    %1293 = vmatpush1.msra.mxu0 %v1292
    %1294 = vmatprep.subr.mxu0 0.0
    %v1295 = vand.u32 %v1091, 4294901760
    %v1296 = vsub.f32 %v1091, %v1295
    %1297 = vmatpush1.msra.mxu0 %v1296
    %1298 = vmatprep.subr.mxu0 0.0
    %v1299 = vand.u32 %v1092, 4294901760
    %v1300 = vsub.f32 %v1092, %v1299
    %1301 = vmatpush1.msra.mxu0 %v1300
    %1302 = vmatprep.subr.mxu0 0.0
    %1303 = vmatpush1.msra.mxu0 0.0
    %1304 = vmatprep.subr.mxu0 0.0
    %1305 = vmatpush1.msra.mxu0 0.0
    %1306 = vmatprep.subr.mxu0 0.0
    %1307 = vmatpush1.msra.mxu0 0.0
    %1308 = vmatprep.subr.mxu0 0.0
    %1309 = vmatpush1.msra.mxu0 0.0
    %1310 = vmatprep.subr.mxu0 0.0
    %1311 = vmatpush1.msra.mxu0 0.0
    %1312 = vmatprep.subr.mxu0 0.0
    %1313 = vmatpush1.msra.mxu0 0.0
    %1314 = vmatprep.subr.mxu0 0.0
    %1315 = vmatpush1.msra.mxu0 0.0
    %1316 = vmatprep.subr.mxu0 0.0
    %1317 = vmatpush1.msra.mxu0 0.0
    %1318 = vmatprep.subr.mxu0 0.0
    %1319 = vmatpush1.msra.mxu0 0.0
    %1320 = vmatprep.subr.mxu0 0.0
    %1321 = vmatpush1.msra.mxu0 0.0
    %1322 = vmatprep.subr.mxu0 0.0
    %1323 = vmatpush1.msra.mxu0 0.0
    %1324 = vmatprep.subr.mxu0 0.0
    %1325 = vmatpush1.msra.mxu0 0.0
    %1326 = vmatprep.subr.mxu0 0.0
    %1327 = vmatpush1.msra.mxu0 0.0
    %1328 = vmatprep.subr.mxu0 0.0
    %1329 = vmatpush1.msra.mxu0 0.0
    %1330 = vmatprep.subr.mxu0 0.0
    %1331 = vmatpush1.msra.mxu0 0.0
    %1332 = vmatprep.subr.mxu0 0.0
    %1333 = vmatpush1.msra.mxu0 0.0
    %1334 = vmatprep.subr.mxu0 0.0
    %1335 = vmatpush1.msra.mxu0 0.0
    %1336 = vmatprep.subr.mxu0 0.0
    %1337 = vmatpush1.msra.mxu0 0.0
    %1338 = vmatprep.subr.mxu0 0.0
    %1339 = vmatpush1.msra.mxu0 0.0
    %1340 = vmatprep.subr.mxu0 0.0
    %1341 = vmatpush1.msra.mxu0 0.0
    %1342 = vmatprep.subr.mxu0 0.0
    %1343 = vmatpush1.msra.mxu0 0.0
    %1344 = vmatprep.subr.mxu0 0.0
    %1345 = vmatpush1.msra.mxu0 0.0
    %1346 = vmatprep.subr.mxu0 0.0
    %1347 = vmatpush1.msra.mxu0 0.0
    %1348 = vmatprep.subr.mxu0 0.0
    %1349 = vmatpush1.msra.mxu0 0.0
    %1350 = vmatprep.subr.mxu0 0.0
    %1351 = vmatpush1.msra.mxu0 0.0
    %1352 = vmatprep.subr.mxu0 0.0
    %1353 = vmatpush1.msra.mxu0 0.0
    %1354 = vmatprep.subr.mxu0 0.0
    %1355 = vmatpush1.msra.mxu0 0.0
    %1356 = vmatprep.subr.mxu0 0.0
    %1357 = vmatpush1.msra.mxu0 0.0
    %1358 = vmatprep.mubr.f32.mxu0 0.0
    %v1359 = vand.u32 %v1095, 4294901760
    %v1360 = vsub.f32 %v1095, %v1359
    %1361 = vmatmul.mubr.f32.gmra.mrb[0].mxu0 %v1360
    %v1362 = vpop.f32.mrb[0].mxu0
    %v1363 = vadd.f32 %v1277, %v1362
    %v1364 = vpop.f32.mrb[0].mxu0
    %1365 = vmatprep.mubr.f32.mxu0 0.0
    %v1366 = vand.u32 %v1098, 4294901760
    %v1367 = vsub.f32 %v1098, %v1366
    %1368 = vmatmul.mubr.f32.gmra.mrb[0].mxu0 %v1367
    %v1369 = vpop.f32.mrb[0].mxu0
    %v1370 = vadd.f32 %v1283, %v1369
    %v1371 = vpop.f32.mrb[0].mxu0
    %1372 = vdwg.mxu0
    %1373 = vmatprep.subr.mxu0 0.0
    %v1374 = vand.u32 %v1089, 4294901760
    %1375 = vmatpush1.msra.mxu0 %v1374
    %1376 = vmatprep.subr.mxu0 0.0
    %v1377 = vand.u32 %v1090, 4294901760
    %1378 = vmatpush1.msra.mxu0 %v1377
    %1379 = vmatprep.subr.mxu0 0.0
    %v1380 = vand.u32 %v1091, 4294901760
    %1381 = vmatpush1.msra.mxu0 %v1380
    %1382 = vmatprep.subr.mxu0 0.0
    %v1383 = vand.u32 %v1092, 4294901760
    %1384 = vmatpush1.msra.mxu0 %v1383
    %1385 = vmatprep.subr.mxu0 0.0
    %1386 = vmatpush1.msra.mxu0 0.0
    %1387 = vmatprep.subr.mxu0 0.0
    %1388 = vmatpush1.msra.mxu0 0.0
    %1389 = vmatprep.subr.mxu0 0.0
    %1390 = vmatpush1.msra.mxu0 0.0
    %1391 = vmatprep.subr.mxu0 0.0
    %1392 = vmatpush1.msra.mxu0 0.0
    %1393 = vmatprep.subr.mxu0 0.0
    %1394 = vmatpush1.msra.mxu0 0.0
    %1395 = vmatprep.subr.mxu0 0.0
    %1396 = vmatpush1.msra.mxu0 0.0
    %1397 = vmatprep.subr.mxu0 0.0
    %1398 = vmatpush1.msra.mxu0 0.0
    %1399 = vmatprep.subr.mxu0 0.0
    %1400 = vmatpush1.msra.mxu0 0.0
    %1401 = vmatprep.subr.mxu0 0.0
    %1402 = vmatpush1.msra.mxu0 0.0
    %1403 = vmatprep.subr.mxu0 0.0
    %1404 = vmatpush1.msra.mxu0 0.0
    %1405 = vmatprep.subr.mxu0 0.0
    %1406 = vmatpush1.msra.mxu0 0.0
    %1407 = vmatprep.subr.mxu0 0.0
    %1408 = vmatpush1.msra.mxu0 0.0
    %1409 = vmatprep.subr.mxu0 0.0
    %1410 = vmatpush1.msra.mxu0 0.0
    %1411 = vmatprep.subr.mxu0 0.0
    %1412 = vmatpush1.msra.mxu0 0.0
    %1413 = vmatprep.subr.mxu0 0.0
    %1414 = vmatpush1.msra.mxu0 0.0
    %1415 = vmatprep.subr.mxu0 0.0
    %1416 = vmatpush1.msra.mxu0 0.0
    %1417 = vmatprep.subr.mxu0 0.0
    %1418 = vmatpush1.msra.mxu0 0.0
    %1419 = vmatprep.subr.mxu0 0.0
    %1420 = vmatpush1.msra.mxu0 0.0
    %1421 = vmatprep.subr.mxu0 0.0
    %1422 = vmatpush1.msra.mxu0 0.0
    %1423 = vmatprep.subr.mxu0 0.0
    %1424 = vmatpush1.msra.mxu0 0.0
    %1425 = vmatprep.subr.mxu0 0.0
    %1426 = vmatpush1.msra.mxu0 0.0
    %1427 = vmatprep.subr.mxu0 0.0
    %1428 = vmatpush1.msra.mxu0 0.0
    %1429 = vmatprep.subr.mxu0 0.0
    %1430 = vmatpush1.msra.mxu0 0.0
    %1431 = vmatprep.subr.mxu0 0.0
    %1432 = vmatpush1.msra.mxu0 0.0
    %1433 = vmatprep.subr.mxu0 0.0
    %1434 = vmatpush1.msra.mxu0 0.0
    %1435 = vmatprep.subr.mxu0 0.0
    %1436 = vmatpush1.msra.mxu0 0.0
    %1437 = vmatprep.subr.mxu0 0.0
    %1438 = vmatpush1.msra.mxu0 0.0
    %1439 = vmatprep.subr.mxu0 0.0
    %1440 = vmatpush1.msra.mxu0 0.0
    %1441 = vmatprep.mubr.f32.mxu0 0.0
    %v1442 = vand.u32 %v1095, 4294901760
    %v1443 = vsub.f32 %v1095, %v1442
    %v1444 = vand.u32 %v1443, 4294901760
    %1445 = vmatmul.mubr.f32.gmra.mrb[0].mxu0 %v1444
    %v1446 = vpop.f32.mrb[0].mxu0
    %v1447 = vadd.f32 %v1363, %v1446
    %v1448 = vpop.f32.mrb[0].mxu0
    %1449 = vmatprep.mubr.f32.mxu0 0.0
    %v1450 = vand.u32 %v1098, 4294901760
    %v1451 = vsub.f32 %v1098, %v1450
    %v1452 = vand.u32 %v1451, 4294901760
    %1453 = vmatmul.mubr.f32.gmra.mrb[0].mxu0 %v1452
    %v1454 = vpop.f32.mrb[0].mxu0
    %v1455 = vadd.f32 %v1370, %v1454
    %v1456 = vpop.f32.mrb[0].mxu0
    %1457 = vdwg.mxu0
    %1458 = vmatprep.subr.mxu0 0.0
    %v1459 = vand.u32 %v1089, 4294901760
    %v1460 = vsub.f32 %v1089, %v1459
    %v1461 = vand.u32 %v1460, 4294901760
    %1462 = vmatpush1.msra.mxu0 %v1461
    %1463 = vmatprep.subr.mxu0 0.0
    %v1464 = vand.u32 %v1090, 4294901760
    %v1465 = vsub.f32 %v1090, %v1464
    %v1466 = vand.u32 %v1465, 4294901760
    %1467 = vmatpush1.msra.mxu0 %v1466
    %1468 = vmatprep.subr.mxu0 0.0
    %v1469 = vand.u32 %v1091, 4294901760
    %v1470 = vsub.f32 %v1091, %v1469
    %v1471 = vand.u32 %v1470, 4294901760
    %1472 = vmatpush1.msra.mxu0 %v1471
    %1473 = vmatprep.subr.mxu0 0.0
    %v1474 = vand.u32 %v1092, 4294901760
    %v1475 = vsub.f32 %v1092, %v1474
    %v1476 = vand.u32 %v1475, 4294901760
    %1477 = vmatpush1.msra.mxu0 %v1476
    %1478 = vmatprep.subr.mxu0 0.0
    %1479 = vmatpush1.msra.mxu0 0.0
    %1480 = vmatprep.subr.mxu0 0.0
    %1481 = vmatpush1.msra.mxu0 0.0
    %1482 = vmatprep.subr.mxu0 0.0
    %1483 = vmatpush1.msra.mxu0 0.0
    %1484 = vmatprep.subr.mxu0 0.0
    %1485 = vmatpush1.msra.mxu0 0.0
    %1486 = vmatprep.subr.mxu0 0.0
    %1487 = vmatpush1.msra.mxu0 0.0
    %1488 = vmatprep.subr.mxu0 0.0
    %1489 = vmatpush1.msra.mxu0 0.0
    %1490 = vmatprep.subr.mxu0 0.0
    %1491 = vmatpush1.msra.mxu0 0.0
    %1492 = vmatprep.subr.mxu0 0.0
    %1493 = vmatpush1.msra.mxu0 0.0
    %1494 = vmatprep.subr.mxu0 0.0
    %1495 = vmatpush1.msra.mxu0 0.0
    %1496 = vmatprep.subr.mxu0 0.0
    %1497 = vmatpush1.msra.mxu0 0.0
    %1498 = vmatprep.subr.mxu0 0.0
    %1499 = vmatpush1.msra.mxu0 0.0
    %1500 = vmatprep.subr.mxu0 0.0
    %1501 = vmatpush1.msra.mxu0 0.0
    %1502 = vmatprep.subr.mxu0 0.0
    %1503 = vmatpush1.msra.mxu0 0.0
    %1504 = vmatprep.subr.mxu0 0.0
    %1505 = vmatpush1.msra.mxu0 0.0
    %1506 = vmatprep.subr.mxu0 0.0
    %1507 = vmatpush1.msra.mxu0 0.0
    %1508 = vmatprep.subr.mxu0 0.0
    %1509 = vmatpush1.msra.mxu0 0.0
    %1510 = vmatprep.subr.mxu0 0.0
    %1511 = vmatpush1.msra.mxu0 0.0
    %1512 = vmatprep.subr.mxu0 0.0
    %1513 = vmatpush1.msra.mxu0 0.0
    %1514 = vmatprep.subr.mxu0 0.0
    %1515 = vmatpush1.msra.mxu0 0.0
    %1516 = vmatprep.subr.mxu0 0.0
    %1517 = vmatpush1.msra.mxu0 0.0
    %1518 = vmatprep.subr.mxu0 0.0
    %1519 = vmatpush1.msra.mxu0 0.0
    %1520 = vmatprep.subr.mxu0 0.0
    %1521 = vmatpush1.msra.mxu0 0.0
    %1522 = vmatprep.subr.mxu0 0.0
    %1523 = vmatpush1.msra.mxu0 0.0
    %1524 = vmatprep.subr.mxu0 0.0
    %1525 = vmatpush1.msra.mxu0 0.0
    %1526 = vmatprep.subr.mxu0 0.0
    %1527 = vmatpush1.msra.mxu0 0.0
    %1528 = vmatprep.subr.mxu0 0.0
    %1529 = vmatpush1.msra.mxu0 0.0
    %1530 = vmatprep.subr.mxu0 0.0
    %1531 = vmatpush1.msra.mxu0 0.0
    %1532 = vmatprep.subr.mxu0 0.0
    %1533 = vmatpush1.msra.mxu0 0.0
    %1534 = vmatprep.mubr.f32.mxu0 0.0
    %v1535 = vand.u32 %v1095, 4294901760
    %1536 = vmatmul.mubr.f32.gmra.mrb[0].mxu0 %v1535
    %v1537 = vpop.f32.mrb[0].mxu0
    %v1538 = vadd.f32 %v1447, %v1537
    %v1539 = vpop.f32.mrb[0].mxu0
    %1540 = vmatprep.mubr.f32.mxu0 0.0
    %v1541 = vand.u32 %v1098, 4294901760
    %1542 = vmatmul.mubr.f32.gmra.mrb[0].mxu0 %v1541
    %v1543 = vpop.f32.mrb[0].mxu0
    %v1544 = vadd.f32 %v1455, %v1543
    %v1545 = vpop.f32.mrb[0].mxu0
    %1546 = vdwg.mxu0
    %1547 = vmatprep.subr.mxu0 0.0
    %v1548 = vand.u32 %v1089, 4294901760
    %1549 = vmatpush1.msra.mxu0 %v1548
    %1550 = vmatprep.subr.mxu0 0.0
    %v1551 = vand.u32 %v1090, 4294901760
    %1552 = vmatpush1.msra.mxu0 %v1551
    %1553 = vmatprep.subr.mxu0 0.0
    %v1554 = vand.u32 %v1091, 4294901760
    %1555 = vmatpush1.msra.mxu0 %v1554
    %1556 = vmatprep.subr.mxu0 0.0
    %v1557 = vand.u32 %v1092, 4294901760
    %1558 = vmatpush1.msra.mxu0 %v1557
    %1559 = vmatprep.subr.mxu0 0.0
    %1560 = vmatpush1.msra.mxu0 0.0
    %1561 = vmatprep.subr.mxu0 0.0
    %1562 = vmatpush1.msra.mxu0 0.0
    %1563 = vmatprep.subr.mxu0 0.0
    %1564 = vmatpush1.msra.mxu0 0.0
    %1565 = vmatprep.subr.mxu0 0.0
    %1566 = vmatpush1.msra.mxu0 0.0
    %1567 = vmatprep.subr.mxu0 0.0
    %1568 = vmatpush1.msra.mxu0 0.0
    %1569 = vmatprep.subr.mxu0 0.0
    %1570 = vmatpush1.msra.mxu0 0.0
    %1571 = vmatprep.subr.mxu0 0.0
    %1572 = vmatpush1.msra.mxu0 0.0
    %1573 = vmatprep.subr.mxu0 0.0
    %1574 = vmatpush1.msra.mxu0 0.0
    %1575 = vmatprep.subr.mxu0 0.0
    %1576 = vmatpush1.msra.mxu0 0.0
    %1577 = vmatprep.subr.mxu0 0.0
    %1578 = vmatpush1.msra.mxu0 0.0
    %1579 = vmatprep.subr.mxu0 0.0
    %1580 = vmatpush1.msra.mxu0 0.0
    %1581 = vmatprep.subr.mxu0 0.0
    %1582 = vmatpush1.msra.mxu0 0.0
    %1583 = vmatprep.subr.mxu0 0.0
    %1584 = vmatpush1.msra.mxu0 0.0
    %1585 = vmatprep.subr.mxu0 0.0
    %1586 = vmatpush1.msra.mxu0 0.0
    %1587 = vmatprep.subr.mxu0 0.0
    %1588 = vmatpush1.msra.mxu0 0.0
    %1589 = vmatprep.subr.mxu0 0.0
    %1590 = vmatpush1.msra.mxu0 0.0
    %1591 = vmatprep.subr.mxu0 0.0
    %1592 = vmatpush1.msra.mxu0 0.0
    %1593 = vmatprep.subr.mxu0 0.0
    %1594 = vmatpush1.msra.mxu0 0.0
    %1595 = vmatprep.subr.mxu0 0.0
    %1596 = vmatpush1.msra.mxu0 0.0
    %1597 = vmatprep.subr.mxu0 0.0
    %1598 = vmatpush1.msra.mxu0 0.0
    %1599 = vmatprep.subr.mxu0 0.0
    %1600 = vmatpush1.msra.mxu0 0.0
    %1601 = vmatprep.subr.mxu0 0.0
    %1602 = vmatpush1.msra.mxu0 0.0
    %1603 = vmatprep.subr.mxu0 0.0
    %1604 = vmatpush1.msra.mxu0 0.0
    %1605 = vmatprep.subr.mxu0 0.0
    %1606 = vmatpush1.msra.mxu0 0.0
    %1607 = vmatprep.subr.mxu0 0.0
    %1608 = vmatpush1.msra.mxu0 0.0
    %1609 = vmatprep.subr.mxu0 0.0
    %1610 = vmatpush1.msra.mxu0 0.0
    %1611 = vmatprep.subr.mxu0 0.0
    %1612 = vmatpush1.msra.mxu0 0.0
    %1613 = vmatprep.subr.mxu0 0.0
    %1614 = vmatpush1.msra.mxu0 0.0
    %1615 = vmatprep.mubr.f32.mxu0 0.0
    %v1616 = vand.u32 %v1095, 4294901760
    %1617 = vmatmul.mubr.f32.gmra.mrb[0].mxu0 %v1616
    %v1618 = vpop.f32.mrb[0].mxu0
    %v1619 = vadd.f32 %v1538, %v1618
    %v1620 = vpop.f32.mrb[0].mxu0
    %1621 = vmatprep.mubr.f32.mxu0 0.0
    %v1622 = vand.u32 %v1098, 4294901760
    %1623 = vmatmul.mubr.f32.gmra.mrb[0].mxu0 %v1622
    %v1624 = vpop.f32.mrb[0].mxu0
    %v1625 = vadd.f32 %v1544, %v1624
    %v1626 = vpop.f32.mrb[0].mxu0
    %1627 = vdwg.mxu0
    %v1629 = vsel %vm1093, %v564, 0
    %v1632 = vsel %vm1093, %v570, 0
    %1634 = vmatprep.subr.mxu0 0.0
    %v1635 = vand.u32 %v573, 4294901760
    %1636 = vmatpush1.msra.mxu0 %v1635
    %1637 = vmatprep.subr.mxu0 0.0
    %v1638 = vand.u32 %v574, 4294901760
    %1639 = vmatpush1.msra.mxu0 %v1638
    %1640 = vmatprep.subr.mxu0 0.0
    %v1641 = vand.u32 %v575, 4294901760
    %1642 = vmatpush1.msra.mxu0 %v1641
    %1643 = vmatprep.subr.mxu0 0.0
    %v1644 = vand.u32 %v576, 4294901760
    %1645 = vmatpush1.msra.mxu0 %v1644
    %1646 = vmatprep.subr.mxu0 0.0
    %1647 = vmatpush1.msra.mxu0 0.0
    %1648 = vmatprep.subr.mxu0 0.0
    %1649 = vmatpush1.msra.mxu0 0.0
    %1650 = vmatprep.subr.mxu0 0.0
    %1651 = vmatpush1.msra.mxu0 0.0
    %1652 = vmatprep.subr.mxu0 0.0
    %1653 = vmatpush1.msra.mxu0 0.0
    %1654 = vmatprep.subr.mxu0 0.0
    %1655 = vmatpush1.msra.mxu0 0.0
    %1656 = vmatprep.subr.mxu0 0.0
    %1657 = vmatpush1.msra.mxu0 0.0
    %1658 = vmatprep.subr.mxu0 0.0
    %1659 = vmatpush1.msra.mxu0 0.0
    %1660 = vmatprep.subr.mxu0 0.0
    %1661 = vmatpush1.msra.mxu0 0.0
    %1662 = vmatprep.subr.mxu0 0.0
    %1663 = vmatpush1.msra.mxu0 0.0
    %1664 = vmatprep.subr.mxu0 0.0
    %1665 = vmatpush1.msra.mxu0 0.0
    %1666 = vmatprep.subr.mxu0 0.0
    %1667 = vmatpush1.msra.mxu0 0.0
    %1668 = vmatprep.subr.mxu0 0.0
    %1669 = vmatpush1.msra.mxu0 0.0
    %1670 = vmatprep.subr.mxu0 0.0
    %1671 = vmatpush1.msra.mxu0 0.0
    %1672 = vmatprep.subr.mxu0 0.0
    %1673 = vmatpush1.msra.mxu0 0.0
    %1674 = vmatprep.subr.mxu0 0.0
    %1675 = vmatpush1.msra.mxu0 0.0
    %1676 = vmatprep.subr.mxu0 0.0
    %1677 = vmatpush1.msra.mxu0 0.0
    %1678 = vmatprep.subr.mxu0 0.0
    %1679 = vmatpush1.msra.mxu0 0.0
    %1680 = vmatprep.subr.mxu0 0.0
    %1681 = vmatpush1.msra.mxu0 0.0
    %1682 = vmatprep.subr.mxu0 0.0
    %1683 = vmatpush1.msra.mxu0 0.0
    %1684 = vmatprep.subr.mxu0 0.0
    %1685 = vmatpush1.msra.mxu0 0.0
    %1686 = vmatprep.subr.mxu0 0.0
    %1687 = vmatpush1.msra.mxu0 0.0
    %1688 = vmatprep.subr.mxu0 0.0
    %1689 = vmatpush1.msra.mxu0 0.0
    %1690 = vmatprep.subr.mxu0 0.0
    %1691 = vmatpush1.msra.mxu0 0.0
    %1692 = vmatprep.subr.mxu0 0.0
    %1693 = vmatpush1.msra.mxu0 0.0
    %1694 = vmatprep.subr.mxu0 0.0
    %1695 = vmatpush1.msra.mxu0 0.0
    %1696 = vmatprep.subr.mxu0 0.0
    %1697 = vmatpush1.msra.mxu0 0.0
    %1698 = vmatprep.subr.mxu0 0.0
    %1699 = vmatpush1.msra.mxu0 0.0
    %1700 = vmatprep.subr.mxu0 0.0
    %1701 = vmatpush1.msra.mxu0 0.0
    %1702 = vmatprep.mubr.f32.mxu0 0.0
    %v1703 = vand.u32 %v1629, 4294901760
    %v1704 = vsub.f32 %v1629, %v1703
    %v1705 = vand.u32 %v1704, 4294901760
    %v1706 = vsub.f32 %v1704, %v1705
    %v1707 = vand.u32 %v1706, 4294901760
    %1708 = vmatmul.mubr.f32.gmra.mrb[0].mxu0 %v1707
    %v1709 = vpop.f32.mrb[0].mxu0
    %v1710 = vadd.f32 %v1619, %v1709
    %v1711 = vpop.f32.mrb[0].mxu0
    %1712 = vmatprep.mubr.f32.mxu0 0.0
    %v1713 = vand.u32 %v1632, 4294901760
    %v1714 = vsub.f32 %v1632, %v1713
    %v1715 = vand.u32 %v1714, 4294901760
    %v1716 = vsub.f32 %v1714, %v1715
    %v1717 = vand.u32 %v1716, 4294901760
    %1718 = vmatmul.mubr.f32.gmra.mrb[0].mxu0 %v1717
    %v1719 = vpop.f32.mrb[0].mxu0
    %v1720 = vadd.f32 %v1625, %v1719
    %v1721 = vpop.f32.mrb[0].mxu0
    %1722 = vdwg.mxu0
    %1723 = vmatprep.subr.mxu0 0.0
    %v1724 = vand.u32 %v573, 4294901760
    %v1725 = vsub.f32 %v573, %v1724
    %v1726 = vand.u32 %v1725, 4294901760
    %v1727 = vsub.f32 %v1725, %v1726
    %v1728 = vand.u32 %v1727, 4294901760
    %1729 = vmatpush1.msra.mxu0 %v1728
    %1730 = vmatprep.subr.mxu0 0.0
    %v1731 = vand.u32 %v574, 4294901760
    %v1732 = vsub.f32 %v574, %v1731
    %v1733 = vand.u32 %v1732, 4294901760
    %v1734 = vsub.f32 %v1732, %v1733
    %v1735 = vand.u32 %v1734, 4294901760
    %1736 = vmatpush1.msra.mxu0 %v1735
    %1737 = vmatprep.subr.mxu0 0.0
    %v1738 = vand.u32 %v575, 4294901760
    %v1739 = vsub.f32 %v575, %v1738
    %v1740 = vand.u32 %v1739, 4294901760
    %v1741 = vsub.f32 %v1739, %v1740
    %v1742 = vand.u32 %v1741, 4294901760
    %1743 = vmatpush1.msra.mxu0 %v1742
    %1744 = vmatprep.subr.mxu0 0.0
    %v1745 = vand.u32 %v576, 4294901760
    %v1746 = vsub.f32 %v576, %v1745
    %v1747 = vand.u32 %v1746, 4294901760
    %v1748 = vsub.f32 %v1746, %v1747
    %v1749 = vand.u32 %v1748, 4294901760
    %1750 = vmatpush1.msra.mxu0 %v1749
    %1751 = vmatprep.subr.mxu0 0.0
    %1752 = vmatpush1.msra.mxu0 0.0
    %1753 = vmatprep.subr.mxu0 0.0
    %1754 = vmatpush1.msra.mxu0 0.0
    %1755 = vmatprep.subr.mxu0 0.0
    %1756 = vmatpush1.msra.mxu0 0.0
    %1757 = vmatprep.subr.mxu0 0.0
    %1758 = vmatpush1.msra.mxu0 0.0
    %1759 = vmatprep.subr.mxu0 0.0
    %1760 = vmatpush1.msra.mxu0 0.0
    %1761 = vmatprep.subr.mxu0 0.0
    %1762 = vmatpush1.msra.mxu0 0.0
    %1763 = vmatprep.subr.mxu0 0.0
    %1764 = vmatpush1.msra.mxu0 0.0
    %1765 = vmatprep.subr.mxu0 0.0
    %1766 = vmatpush1.msra.mxu0 0.0
    %1767 = vmatprep.subr.mxu0 0.0
    %1768 = vmatpush1.msra.mxu0 0.0
    %1769 = vmatprep.subr.mxu0 0.0
    %1770 = vmatpush1.msra.mxu0 0.0
    %1771 = vmatprep.subr.mxu0 0.0
    %1772 = vmatpush1.msra.mxu0 0.0
    %1773 = vmatprep.subr.mxu0 0.0
    %1774 = vmatpush1.msra.mxu0 0.0
    %1775 = vmatprep.subr.mxu0 0.0
    %1776 = vmatpush1.msra.mxu0 0.0
    %1777 = vmatprep.subr.mxu0 0.0
    %1778 = vmatpush1.msra.mxu0 0.0
    %1779 = vmatprep.subr.mxu0 0.0
    %1780 = vmatpush1.msra.mxu0 0.0
    %1781 = vmatprep.subr.mxu0 0.0
    %1782 = vmatpush1.msra.mxu0 0.0
    %1783 = vmatprep.subr.mxu0 0.0
    %1784 = vmatpush1.msra.mxu0 0.0
    %1785 = vmatprep.subr.mxu0 0.0
    %1786 = vmatpush1.msra.mxu0 0.0
    %1787 = vmatprep.subr.mxu0 0.0
    %1788 = vmatpush1.msra.mxu0 0.0
    %1789 = vmatprep.subr.mxu0 0.0
    %1790 = vmatpush1.msra.mxu0 0.0
    %1791 = vmatprep.subr.mxu0 0.0
    %1792 = vmatpush1.msra.mxu0 0.0
    %1793 = vmatprep.subr.mxu0 0.0
    %1794 = vmatpush1.msra.mxu0 0.0
    %1795 = vmatprep.subr.mxu0 0.0
    %1796 = vmatpush1.msra.mxu0 0.0
    %1797 = vmatprep.subr.mxu0 0.0
    %1798 = vmatpush1.msra.mxu0 0.0
    %1799 = vmatprep.subr.mxu0 0.0
    %1800 = vmatpush1.msra.mxu0 0.0
    %1801 = vmatprep.subr.mxu0 0.0
    %1802 = vmatpush1.msra.mxu0 0.0
    %1803 = vmatprep.subr.mxu0 0.0
    %1804 = vmatpush1.msra.mxu0 0.0
    %1805 = vmatprep.subr.mxu0 0.0
    %1806 = vmatpush1.msra.mxu0 0.0
    %1807 = vmatprep.mubr.f32.mxu0 0.0
    %v1808 = vand.u32 %v1629, 4294901760
    %1809 = vmatmul.mubr.f32.gmra.mrb[0].mxu0 %v1808
    %v1810 = vpop.f32.mrb[0].mxu0
    %v1811 = vadd.f32 %v1710, %v1810
    %v1812 = vpop.f32.mrb[0].mxu0
    %1813 = vmatprep.mubr.f32.mxu0 0.0
    %v1814 = vand.u32 %v1632, 4294901760
    %1815 = vmatmul.mubr.f32.gmra.mrb[0].mxu0 %v1814
    %v1816 = vpop.f32.mrb[0].mxu0
    %v1817 = vadd.f32 %v1720, %v1816
    %v1818 = vpop.f32.mrb[0].mxu0
    %1819 = vdwg.mxu0
    %1820 = vmatprep.subr.mxu0 0.0
    %v1821 = vand.u32 %v573, 4294901760
    %v1822 = vsub.f32 %v573, %v1821
    %1823 = vmatpush1.msra.mxu0 %v1822
    %1824 = vmatprep.subr.mxu0 0.0
    %v1825 = vand.u32 %v574, 4294901760
    %v1826 = vsub.f32 %v574, %v1825
    %1827 = vmatpush1.msra.mxu0 %v1826
    %1828 = vmatprep.subr.mxu0 0.0
    %v1829 = vand.u32 %v575, 4294901760
    %v1830 = vsub.f32 %v575, %v1829
    %1831 = vmatpush1.msra.mxu0 %v1830
    %1832 = vmatprep.subr.mxu0 0.0
    %v1833 = vand.u32 %v576, 4294901760
    %v1834 = vsub.f32 %v576, %v1833
    %1835 = vmatpush1.msra.mxu0 %v1834
    %1836 = vmatprep.subr.mxu0 0.0
    %1837 = vmatpush1.msra.mxu0 0.0
    %1838 = vmatprep.subr.mxu0 0.0
    %1839 = vmatpush1.msra.mxu0 0.0
    %1840 = vmatprep.subr.mxu0 0.0
    %1841 = vmatpush1.msra.mxu0 0.0
    %1842 = vmatprep.subr.mxu0 0.0
    %1843 = vmatpush1.msra.mxu0 0.0
    %1844 = vmatprep.subr.mxu0 0.0
    %1845 = vmatpush1.msra.mxu0 0.0
    %1846 = vmatprep.subr.mxu0 0.0
    %1847 = vmatpush1.msra.mxu0 0.0
    %1848 = vmatprep.subr.mxu0 0.0
    %1849 = vmatpush1.msra.mxu0 0.0
    %1850 = vmatprep.subr.mxu0 0.0
    %1851 = vmatpush1.msra.mxu0 0.0
    %1852 = vmatprep.subr.mxu0 0.0
    %1853 = vmatpush1.msra.mxu0 0.0
    %1854 = vmatprep.subr.mxu0 0.0
    %1855 = vmatpush1.msra.mxu0 0.0
    %1856 = vmatprep.subr.mxu0 0.0
    %1857 = vmatpush1.msra.mxu0 0.0
    %1858 = vmatprep.subr.mxu0 0.0
    %1859 = vmatpush1.msra.mxu0 0.0
    %1860 = vmatprep.subr.mxu0 0.0
    %1861 = vmatpush1.msra.mxu0 0.0
    %1862 = vmatprep.subr.mxu0 0.0
    %1863 = vmatpush1.msra.mxu0 0.0
    %1864 = vmatprep.subr.mxu0 0.0
    %1865 = vmatpush1.msra.mxu0 0.0
    %1866 = vmatprep.subr.mxu0 0.0
    %1867 = vmatpush1.msra.mxu0 0.0
    %1868 = vmatprep.subr.mxu0 0.0
    %1869 = vmatpush1.msra.mxu0 0.0
    %1870 = vmatprep.subr.mxu0 0.0
    %1871 = vmatpush1.msra.mxu0 0.0
    %1872 = vmatprep.subr.mxu0 0.0
    %1873 = vmatpush1.msra.mxu0 0.0
    %1874 = vmatprep.subr.mxu0 0.0
    %1875 = vmatpush1.msra.mxu0 0.0
    %1876 = vmatprep.subr.mxu0 0.0
    %1877 = vmatpush1.msra.mxu0 0.0
    %1878 = vmatprep.subr.mxu0 0.0
    %1879 = vmatpush1.msra.mxu0 0.0
    %1880 = vmatprep.subr.mxu0 0.0
    %1881 = vmatpush1.msra.mxu0 0.0
    %1882 = vmatprep.subr.mxu0 0.0
    %1883 = vmatpush1.msra.mxu0 0.0
    %1884 = vmatprep.subr.mxu0 0.0
    %1885 = vmatpush1.msra.mxu0 0.0
    %1886 = vmatprep.subr.mxu0 0.0
    %1887 = vmatpush1.msra.mxu0 0.0
    %1888 = vmatprep.subr.mxu0 0.0
    %1889 = vmatpush1.msra.mxu0 0.0
    %1890 = vmatprep.subr.mxu0 0.0
    %1891 = vmatpush1.msra.mxu0 0.0
    %1892 = vmatprep.mubr.f32.mxu0 0.0
    %v1893 = vand.u32 %v1629, 4294901760
    %v1894 = vsub.f32 %v1629, %v1893
    %1895 = vmatmul.mubr.f32.gmra.mrb[0].mxu0 %v1894
    %v1896 = vpop.f32.mrb[0].mxu0
    %v1897 = vadd.f32 %v1811, %v1896
    %v1898 = vpop.f32.mrb[0].mxu0
    %1899 = vmatprep.mubr.f32.mxu0 0.0
    %v1900 = vand.u32 %v1632, 4294901760
    %v1901 = vsub.f32 %v1632, %v1900
    %1902 = vmatmul.mubr.f32.gmra.mrb[0].mxu0 %v1901
    %v1903 = vpop.f32.mrb[0].mxu0
    %v1904 = vadd.f32 %v1817, %v1903
    %v1905 = vpop.f32.mrb[0].mxu0
    %1906 = vdwg.mxu0
    %1907 = vmatprep.subr.mxu0 0.0
    %v1908 = vand.u32 %v573, 4294901760
    %1909 = vmatpush1.msra.mxu0 %v1908
    %1910 = vmatprep.subr.mxu0 0.0
    %v1911 = vand.u32 %v574, 4294901760
    %1912 = vmatpush1.msra.mxu0 %v1911
    %1913 = vmatprep.subr.mxu0 0.0
    %v1914 = vand.u32 %v575, 4294901760
    %1915 = vmatpush1.msra.mxu0 %v1914
    %1916 = vmatprep.subr.mxu0 0.0
    %v1917 = vand.u32 %v576, 4294901760
    %1918 = vmatpush1.msra.mxu0 %v1917
    %1919 = vmatprep.subr.mxu0 0.0
    %1920 = vmatpush1.msra.mxu0 0.0
    %1921 = vmatprep.subr.mxu0 0.0
    %1922 = vmatpush1.msra.mxu0 0.0
    %1923 = vmatprep.subr.mxu0 0.0
    %1924 = vmatpush1.msra.mxu0 0.0
    %1925 = vmatprep.subr.mxu0 0.0
    %1926 = vmatpush1.msra.mxu0 0.0
    %1927 = vmatprep.subr.mxu0 0.0
    %1928 = vmatpush1.msra.mxu0 0.0
    %1929 = vmatprep.subr.mxu0 0.0
    %1930 = vmatpush1.msra.mxu0 0.0
    %1931 = vmatprep.subr.mxu0 0.0
    %1932 = vmatpush1.msra.mxu0 0.0
    %1933 = vmatprep.subr.mxu0 0.0
    %1934 = vmatpush1.msra.mxu0 0.0
    %1935 = vmatprep.subr.mxu0 0.0
    %1936 = vmatpush1.msra.mxu0 0.0
    %1937 = vmatprep.subr.mxu0 0.0
    %1938 = vmatpush1.msra.mxu0 0.0
    %1939 = vmatprep.subr.mxu0 0.0
    %1940 = vmatpush1.msra.mxu0 0.0
    %1941 = vmatprep.subr.mxu0 0.0
    %1942 = vmatpush1.msra.mxu0 0.0
    %1943 = vmatprep.subr.mxu0 0.0
    %1944 = vmatpush1.msra.mxu0 0.0
    %1945 = vmatprep.subr.mxu0 0.0
    %1946 = vmatpush1.msra.mxu0 0.0
    %1947 = vmatprep.subr.mxu0 0.0
    %1948 = vmatpush1.msra.mxu0 0.0
    %1949 = vmatprep.subr.mxu0 0.0
    %1950 = vmatpush1.msra.mxu0 0.0
    %1951 = vmatprep.subr.mxu0 0.0
    %1952 = vmatpush1.msra.mxu0 0.0
    %1953 = vmatprep.subr.mxu0 0.0
    %1954 = vmatpush1.msra.mxu0 0.0
    %1955 = vmatprep.subr.mxu0 0.0
    %1956 = vmatpush1.msra.mxu0 0.0
    %1957 = vmatprep.subr.mxu0 0.0
    %1958 = vmatpush1.msra.mxu0 0.0
    %1959 = vmatprep.subr.mxu0 0.0
    %1960 = vmatpush1.msra.mxu0 0.0
    %1961 = vmatprep.subr.mxu0 0.0
    %1962 = vmatpush1.msra.mxu0 0.0
    %1963 = vmatprep.subr.mxu0 0.0
    %1964 = vmatpush1.msra.mxu0 0.0
    %1965 = vmatprep.subr.mxu0 0.0
    %1966 = vmatpush1.msra.mxu0 0.0
    %1967 = vmatprep.subr.mxu0 0.0
    %1968 = vmatpush1.msra.mxu0 0.0
    %1969 = vmatprep.subr.mxu0 0.0
    %1970 = vmatpush1.msra.mxu0 0.0
    %1971 = vmatprep.subr.mxu0 0.0
    %1972 = vmatpush1.msra.mxu0 0.0
    %1973 = vmatprep.subr.mxu0 0.0
    %1974 = vmatpush1.msra.mxu0 0.0
    %1975 = vmatprep.mubr.f32.mxu0 0.0
    %v1976 = vand.u32 %v1629, 4294901760
    %v1977 = vsub.f32 %v1629, %v1976
    %v1978 = vand.u32 %v1977, 4294901760
    %1979 = vmatmul.mubr.f32.gmra.mrb[0].mxu0 %v1978
    %v1980 = vpop.f32.mrb[0].mxu0
    %v1981 = vadd.f32 %v1897, %v1980
    %v1982 = vpop.f32.mrb[0].mxu0
    %1983 = vmatprep.mubr.f32.mxu0 0.0
    %v1984 = vand.u32 %v1632, 4294901760
    %v1985 = vsub.f32 %v1632, %v1984
    %v1986 = vand.u32 %v1985, 4294901760
    %1987 = vmatmul.mubr.f32.gmra.mrb[0].mxu0 %v1986
    %v1988 = vpop.f32.mrb[0].mxu0
    %v1989 = vadd.f32 %v1904, %v1988
    %v1990 = vpop.f32.mrb[0].mxu0
    %1991 = vdwg.mxu0
    %1992 = vmatprep.subr.mxu0 0.0
    %v1993 = vand.u32 %v573, 4294901760
    %v1994 = vsub.f32 %v573, %v1993
    %v1995 = vand.u32 %v1994, 4294901760
    %1996 = vmatpush1.msra.mxu0 %v1995
    %1997 = vmatprep.subr.mxu0 0.0
    %v1998 = vand.u32 %v574, 4294901760
    %v1999 = vsub.f32 %v574, %v1998
    %v2000 = vand.u32 %v1999, 4294901760
    %2001 = vmatpush1.msra.mxu0 %v2000
    %2002 = vmatprep.subr.mxu0 0.0
    %v2003 = vand.u32 %v575, 4294901760
    %v2004 = vsub.f32 %v575, %v2003
    %v2005 = vand.u32 %v2004, 4294901760
    %2006 = vmatpush1.msra.mxu0 %v2005
    %2007 = vmatprep.subr.mxu0 0.0
    %v2008 = vand.u32 %v576, 4294901760
    %v2009 = vsub.f32 %v576, %v2008
    %v2010 = vand.u32 %v2009, 4294901760
    %2011 = vmatpush1.msra.mxu0 %v2010
    %2012 = vmatprep.subr.mxu0 0.0
    %2013 = vmatpush1.msra.mxu0 0.0
    %2014 = vmatprep.subr.mxu0 0.0
    %2015 = vmatpush1.msra.mxu0 0.0
    %2016 = vmatprep.subr.mxu0 0.0
    %2017 = vmatpush1.msra.mxu0 0.0
    %2018 = vmatprep.subr.mxu0 0.0
    %2019 = vmatpush1.msra.mxu0 0.0
    %2020 = vmatprep.subr.mxu0 0.0
    %2021 = vmatpush1.msra.mxu0 0.0
    %2022 = vmatprep.subr.mxu0 0.0
    %2023 = vmatpush1.msra.mxu0 0.0
    %2024 = vmatprep.subr.mxu0 0.0
    %2025 = vmatpush1.msra.mxu0 0.0
    %2026 = vmatprep.subr.mxu0 0.0
    %2027 = vmatpush1.msra.mxu0 0.0
    %2028 = vmatprep.subr.mxu0 0.0
    %2029 = vmatpush1.msra.mxu0 0.0
    %2030 = vmatprep.subr.mxu0 0.0
    %2031 = vmatpush1.msra.mxu0 0.0
    %2032 = vmatprep.subr.mxu0 0.0
    %2033 = vmatpush1.msra.mxu0 0.0
    %2034 = vmatprep.subr.mxu0 0.0
    %2035 = vmatpush1.msra.mxu0 0.0
    %2036 = vmatprep.subr.mxu0 0.0
    %2037 = vmatpush1.msra.mxu0 0.0
    %2038 = vmatprep.subr.mxu0 0.0
    %2039 = vmatpush1.msra.mxu0 0.0
    %2040 = vmatprep.subr.mxu0 0.0
    %2041 = vmatpush1.msra.mxu0 0.0
    %2042 = vmatprep.subr.mxu0 0.0
    %2043 = vmatpush1.msra.mxu0 0.0
    %2044 = vmatprep.subr.mxu0 0.0
    %2045 = vmatpush1.msra.mxu0 0.0
    %2046 = vmatprep.subr.mxu0 0.0
    %2047 = vmatpush1.msra.mxu0 0.0
    %2048 = vmatprep.subr.mxu0 0.0
    %2049 = vmatpush1.msra.mxu0 0.0
    %2050 = vmatprep.subr.mxu0 0.0
    %2051 = vmatpush1.msra.mxu0 0.0
    %2052 = vmatprep.subr.mxu0 0.0
    %2053 = vmatpush1.msra.mxu0 0.0
    %2054 = vmatprep.subr.mxu0 0.0
    %2055 = vmatpush1.msra.mxu0 0.0
    %2056 = vmatprep.subr.mxu0 0.0
    %2057 = vmatpush1.msra.mxu0 0.0
    %2058 = vmatprep.subr.mxu0 0.0
    %2059 = vmatpush1.msra.mxu0 0.0
    %2060 = vmatprep.subr.mxu0 0.0
    %2061 = vmatpush1.msra.mxu0 0.0
    %2062 = vmatprep.subr.mxu0 0.0
    %2063 = vmatpush1.msra.mxu0 0.0
    %2064 = vmatprep.subr.mxu0 0.0
    %2065 = vmatpush1.msra.mxu0 0.0
    %2066 = vmatprep.subr.mxu0 0.0
    %2067 = vmatpush1.msra.mxu0 0.0
    %2068 = vmatprep.mubr.f32.mxu0 0.0
    %v2069 = vand.u32 %v1629, 4294901760
    %2070 = vmatmul.mubr.f32.gmra.mrb[0].mxu0 %v2069
    %v2071 = vpop.f32.mrb[0].mxu0
    %v2072 = vadd.f32 %v1981, %v2071
    %v2073 = vpop.f32.mrb[0].mxu0
    %2074 = vmatprep.mubr.f32.mxu0 0.0
    %v2075 = vand.u32 %v1632, 4294901760
    %2076 = vmatmul.mubr.f32.gmra.mrb[0].mxu0 %v2075
    %v2077 = vpop.f32.mrb[0].mxu0
    %v2078 = vadd.f32 %v1989, %v2077
    %v2079 = vpop.f32.mrb[0].mxu0
    %2080 = vdwg.mxu0
    %2081 = vmatprep.subr.mxu0 0.0
    %v2082 = vand.u32 %v573, 4294901760
    %2083 = vmatpush1.msra.mxu0 %v2082
    %2084 = vmatprep.subr.mxu0 0.0
    %v2085 = vand.u32 %v574, 4294901760
    %2086 = vmatpush1.msra.mxu0 %v2085
    %2087 = vmatprep.subr.mxu0 0.0
    %v2088 = vand.u32 %v575, 4294901760
    %2089 = vmatpush1.msra.mxu0 %v2088
    %2090 = vmatprep.subr.mxu0 0.0
    %v2091 = vand.u32 %v576, 4294901760
    %2092 = vmatpush1.msra.mxu0 %v2091
    %2093 = vmatprep.subr.mxu0 0.0
    %2094 = vmatpush1.msra.mxu0 0.0
    %2095 = vmatprep.subr.mxu0 0.0
    %2096 = vmatpush1.msra.mxu0 0.0
    %2097 = vmatprep.subr.mxu0 0.0
    %2098 = vmatpush1.msra.mxu0 0.0
    %2099 = vmatprep.subr.mxu0 0.0
    %2100 = vmatpush1.msra.mxu0 0.0
    %2101 = vmatprep.subr.mxu0 0.0
    %2102 = vmatpush1.msra.mxu0 0.0
    %2103 = vmatprep.subr.mxu0 0.0
    %2104 = vmatpush1.msra.mxu0 0.0
    %2105 = vmatprep.subr.mxu0 0.0
    %2106 = vmatpush1.msra.mxu0 0.0
    %2107 = vmatprep.subr.mxu0 0.0
    %2108 = vmatpush1.msra.mxu0 0.0
    %2109 = vmatprep.subr.mxu0 0.0
    %2110 = vmatpush1.msra.mxu0 0.0
    %2111 = vmatprep.subr.mxu0 0.0
    %2112 = vmatpush1.msra.mxu0 0.0
    %2113 = vmatprep.subr.mxu0 0.0
    %2114 = vmatpush1.msra.mxu0 0.0
    %2115 = vmatprep.subr.mxu0 0.0
    %2116 = vmatpush1.msra.mxu0 0.0
    %2117 = vmatprep.subr.mxu0 0.0
    %2118 = vmatpush1.msra.mxu0 0.0
    %2119 = vmatprep.subr.mxu0 0.0
    %2120 = vmatpush1.msra.mxu0 0.0
    %2121 = vmatprep.subr.mxu0 0.0
    %2122 = vmatpush1.msra.mxu0 0.0
    %2123 = vmatprep.subr.mxu0 0.0
    %2124 = vmatpush1.msra.mxu0 0.0
    %2125 = vmatprep.subr.mxu0 0.0
    %2126 = vmatpush1.msra.mxu0 0.0
    %2127 = vmatprep.subr.mxu0 0.0
    %2128 = vmatpush1.msra.mxu0 0.0
    %2129 = vmatprep.subr.mxu0 0.0
    %2130 = vmatpush1.msra.mxu0 0.0
    %2131 = vmatprep.subr.mxu0 0.0
    %2132 = vmatpush1.msra.mxu0 0.0
    %2133 = vmatprep.subr.mxu0 0.0
    %2134 = vmatpush1.msra.mxu0 0.0
    %2135 = vmatprep.subr.mxu0 0.0
    %2136 = vmatpush1.msra.mxu0 0.0
    %2137 = vmatprep.subr.mxu0 0.0
    %2138 = vmatpush1.msra.mxu0 0.0
    %2139 = vmatprep.subr.mxu0 0.0
    %2140 = vmatpush1.msra.mxu0 0.0
    %2141 = vmatprep.subr.mxu0 0.0
    %2142 = vmatpush1.msra.mxu0 0.0
    %2143 = vmatprep.subr.mxu0 0.0
    %2144 = vmatpush1.msra.mxu0 0.0
    %2145 = vmatprep.subr.mxu0 0.0
    %2146 = vmatpush1.msra.mxu0 0.0
    %2147 = vmatprep.subr.mxu0 0.0
    %2148 = vmatpush1.msra.mxu0 0.0
    %2149 = vmatprep.mubr.f32.mxu0 0.0
    %v2150 = vand.u32 %v1629, 4294901760
    %2151 = vmatmul.mubr.f32.gmra.mrb[0].mxu0 %v2150
    %v2152 = vpop.f32.mrb[0].mxu0
    %v2153 = vadd.f32 %v2072, %v2152
    %v2154 = vpop.f32.mrb[0].mxu0
    %2155 = vmatprep.mubr.f32.mxu0 0.0
    %v2156 = vand.u32 %v1632, 4294901760
    %2157 = vmatmul.mubr.f32.gmra.mrb[0].mxu0 %v2156
    %v2158 = vpop.f32.mrb[0].mxu0
    %v2159 = vadd.f32 %v2078, %v2158
    %v2160 = vpop.f32.mrb[0].mxu0
    %2161 = vdwg.mxu0
    %s2162 = scalar_lea.vmem [#allocation6], 32
    %v2163 = vld [vmem:[%s2162] sm:$0xff]
    %v2164 = vld [vmem:[%s2162 + $0x8] sm:$0xff]
    %v2166 = vsel %vm64, %v2163, 0
    %v2169 = vsel %vm64, %v2164, 0
    %2171 = vmatprep.subr.mxu0 0.0
    %v2172 = vand.u32 %v60, 4294901760
    %2173 = vmatpush1.msra.mxu0 %v2172
    %2174 = vmatprep.subr.mxu0 0.0
    %v2175 = vand.u32 %v61, 4294901760
    %2176 = vmatpush1.msra.mxu0 %v2175
    %2177 = vmatprep.subr.mxu0 0.0
    %2178 = vmatpush1.msra.mxu0 0.0
    %2179 = vmatprep.subr.mxu0 0.0
    %2180 = vmatpush1.msra.mxu0 0.0
    %2181 = vmatprep.subr.mxu0 0.0
    %2182 = vmatpush1.msra.mxu0 0.0
    %2183 = vmatprep.subr.mxu0 0.0
    %2184 = vmatpush1.msra.mxu0 0.0
    %2185 = vmatprep.subr.mxu0 0.0
    %2186 = vmatpush1.msra.mxu0 0.0
    %2187 = vmatprep.subr.mxu0 0.0
    %2188 = vmatpush1.msra.mxu0 0.0
    %2189 = vmatprep.subr.mxu0 0.0
    %2190 = vmatpush1.msra.mxu0 0.0
    %2191 = vmatprep.subr.mxu0 0.0
    %2192 = vmatpush1.msra.mxu0 0.0
    %2193 = vmatprep.subr.mxu0 0.0
    %2194 = vmatpush1.msra.mxu0 0.0
    %2195 = vmatprep.subr.mxu0 0.0
    %2196 = vmatpush1.msra.mxu0 0.0
    %2197 = vmatprep.subr.mxu0 0.0
    %2198 = vmatpush1.msra.mxu0 0.0
    %2199 = vmatprep.subr.mxu0 0.0
    %2200 = vmatpush1.msra.mxu0 0.0
    %2201 = vmatprep.subr.mxu0 0.0
    %2202 = vmatpush1.msra.mxu0 0.0
    %2203 = vmatprep.subr.mxu0 0.0
    %2204 = vmatpush1.msra.mxu0 0.0
    %2205 = vmatprep.subr.mxu0 0.0
    %2206 = vmatpush1.msra.mxu0 0.0
    %2207 = vmatprep.subr.mxu0 0.0
    %2208 = vmatpush1.msra.mxu0 0.0
    %2209 = vmatprep.subr.mxu0 0.0
    %2210 = vmatpush1.msra.mxu0 0.0
    %2211 = vmatprep.subr.mxu0 0.0
    %2212 = vmatpush1.msra.mxu0 0.0
    %2213 = vmatprep.subr.mxu0 0.0
    %2214 = vmatpush1.msra.mxu0 0.0
    %2215 = vmatprep.subr.mxu0 0.0
    %2216 = vmatpush1.msra.mxu0 0.0
    %2217 = vmatprep.subr.mxu0 0.0
    %2218 = vmatpush1.msra.mxu0 0.0
    %2219 = vmatprep.subr.mxu0 0.0
    %2220 = vmatpush1.msra.mxu0 0.0
    %2221 = vmatprep.subr.mxu0 0.0
    %2222 = vmatpush1.msra.mxu0 0.0
    %2223 = vmatprep.subr.mxu0 0.0
    %2224 = vmatpush1.msra.mxu0 0.0
    %2225 = vmatprep.subr.mxu0 0.0
    %2226 = vmatpush1.msra.mxu0 0.0
    %2227 = vmatprep.subr.mxu0 0.0
    %2228 = vmatpush1.msra.mxu0 0.0
    %2229 = vmatprep.subr.mxu0 0.0
    %2230 = vmatpush1.msra.mxu0 0.0
    %2231 = vmatprep.subr.mxu0 0.0
    %2232 = vmatpush1.msra.mxu0 0.0
    %2233 = vmatprep.subr.mxu0 0.0
    %2234 = vmatpush1.msra.mxu0 0.0
    %2235 = vmatprep.subr.mxu0 0.0
    %2236 = vmatpush1.msra.mxu0 0.0
    %2237 = vmatprep.mubr.f32.mxu0 0.0
    %v2238 = vand.u32 %v2166, 4294901760
    %v2239 = vsub.f32 %v2166, %v2238
    %v2240 = vand.u32 %v2239, 4294901760
    %v2241 = vsub.f32 %v2239, %v2240
    %v2242 = vand.u32 %v2241, 4294901760
    %2243 = vmatmul.mubr.f32.gmra.mrb[0].mxu0 %v2242
    %v2244 = vpop.f32.mrb[0].mxu0
    %v2245 = vadd.f32 0.0, %v2244
    %v2246 = vpop.f32.mrb[0].mxu0
    %2247 = vmatprep.mubr.f32.mxu0 0.0
    %v2248 = vand.u32 %v2169, 4294901760
    %v2249 = vsub.f32 %v2169, %v2248
    %v2250 = vand.u32 %v2249, 4294901760
    %v2251 = vsub.f32 %v2249, %v2250
    %v2252 = vand.u32 %v2251, 4294901760
    %2253 = vmatmul.mubr.f32.gmra.mrb[0].mxu0 %v2252
    %v2254 = vpop.f32.mrb[0].mxu0
    %v2255 = vadd.f32 0.0, %v2254
    %v2256 = vpop.f32.mrb[0].mxu0
    %2257 = vdwg.mxu0
    %2258 = vmatprep.subr.mxu0 0.0
    %v2259 = vand.u32 %v60, 4294901760
    %v2260 = vsub.f32 %v60, %v2259
    %v2261 = vand.u32 %v2260, 4294901760
    %v2262 = vsub.f32 %v2260, %v2261
    %v2263 = vand.u32 %v2262, 4294901760
    %2264 = vmatpush1.msra.mxu0 %v2263
    %2265 = vmatprep.subr.mxu0 0.0
    %v2266 = vand.u32 %v61, 4294901760
    %v2267 = vsub.f32 %v61, %v2266
    %v2268 = vand.u32 %v2267, 4294901760
    %v2269 = vsub.f32 %v2267, %v2268
    %v2270 = vand.u32 %v2269, 4294901760
    %2271 = vmatpush1.msra.mxu0 %v2270
    %2272 = vmatprep.subr.mxu0 0.0
    %2273 = vmatpush1.msra.mxu0 0.0
    %2274 = vmatprep.subr.mxu0 0.0
    %2275 = vmatpush1.msra.mxu0 0.0
    %2276 = vmatprep.subr.mxu0 0.0
    %2277 = vmatpush1.msra.mxu0 0.0
    %2278 = vmatprep.subr.mxu0 0.0
    %2279 = vmatpush1.msra.mxu0 0.0
    %2280 = vmatprep.subr.mxu0 0.0
    %2281 = vmatpush1.msra.mxu0 0.0
    %2282 = vmatprep.subr.mxu0 0.0
    %2283 = vmatpush1.msra.mxu0 0.0
    %2284 = vmatprep.subr.mxu0 0.0
    %2285 = vmatpush1.msra.mxu0 0.0
    %2286 = vmatprep.subr.mxu0 0.0
    %2287 = vmatpush1.msra.mxu0 0.0
    %2288 = vmatprep.subr.mxu0 0.0
    %2289 = vmatpush1.msra.mxu0 0.0
    %2290 = vmatprep.subr.mxu0 0.0
    %2291 = vmatpush1.msra.mxu0 0.0
    %2292 = vmatprep.subr.mxu0 0.0
    %2293 = vmatpush1.msra.mxu0 0.0
    %2294 = vmatprep.subr.mxu0 0.0
    %2295 = vmatpush1.msra.mxu0 0.0
    %2296 = vmatprep.subr.mxu0 0.0
    %2297 = vmatpush1.msra.mxu0 0.0
    %2298 = vmatprep.subr.mxu0 0.0
    %2299 = vmatpush1.msra.mxu0 0.0
    %2300 = vmatprep.subr.mxu0 0.0
    %2301 = vmatpush1.msra.mxu0 0.0
    %2302 = vmatprep.subr.mxu0 0.0
    %2303 = vmatpush1.msra.mxu0 0.0
    %2304 = vmatprep.subr.mxu0 0.0
    %2305 = vmatpush1.msra.mxu0 0.0
    %2306 = vmatprep.subr.mxu0 0.0
    %2307 = vmatpush1.msra.mxu0 0.0
    %2308 = vmatprep.subr.mxu0 0.0
    %2309 = vmatpush1.msra.mxu0 0.0
    %2310 = vmatprep.subr.mxu0 0.0
    %2311 = vmatpush1.msra.mxu0 0.0
    %2312 = vmatprep.subr.mxu0 0.0
    %2313 = vmatpush1.msra.mxu0 0.0
    %2314 = vmatprep.subr.mxu0 0.0
    %2315 = vmatpush1.msra.mxu0 0.0
    %2316 = vmatprep.subr.mxu0 0.0
    %2317 = vmatpush1.msra.mxu0 0.0
    %2318 = vmatprep.subr.mxu0 0.0
    %2319 = vmatpush1.msra.mxu0 0.0
    %2320 = vmatprep.subr.mxu0 0.0
    %2321 = vmatpush1.msra.mxu0 0.0
    %2322 = vmatprep.subr.mxu0 0.0
    %2323 = vmatpush1.msra.mxu0 0.0
    %2324 = vmatprep.subr.mxu0 0.0
    %2325 = vmatpush1.msra.mxu0 0.0
    %2326 = vmatprep.subr.mxu0 0.0
    %2327 = vmatpush1.msra.mxu0 0.0
    %2328 = vmatprep.subr.mxu0 0.0
    %2329 = vmatpush1.msra.mxu0 0.0
    %2330 = vmatprep.subr.mxu0 0.0
    %2331 = vmatpush1.msra.mxu0 0.0
    %2332 = vmatprep.mubr.f32.mxu0 0.0
    %v2333 = vand.u32 %v2166, 4294901760
    %2334 = vmatmul.mubr.f32.gmra.mrb[0].mxu0 %v2333
    %v2335 = vpop.f32.mrb[0].mxu0
    %v2336 = vadd.f32 %v2245, %v2335
    %v2337 = vpop.f32.mrb[0].mxu0
    %2338 = vmatprep.mubr.f32.mxu0 0.0
    %v2339 = vand.u32 %v2169, 4294901760
    %2340 = vmatmul.mubr.f32.gmra.mrb[0].mxu0 %v2339
    %v2341 = vpop.f32.mrb[0].mxu0
    %v2342 = vadd.f32 %v2255, %v2341
    %v2343 = vpop.f32.mrb[0].mxu0
    %2344 = vdwg.mxu0
    %2345 = vmatprep.subr.mxu0 0.0
    %v2346 = vand.u32 %v60, 4294901760
    %v2347 = vsub.f32 %v60, %v2346
    %2348 = vmatpush1.msra.mxu0 %v2347
    %2349 = vmatprep.subr.mxu0 0.0
    %v2350 = vand.u32 %v61, 4294901760
    %v2351 = vsub.f32 %v61, %v2350
    %2352 = vmatpush1.msra.mxu0 %v2351
    %2353 = vmatprep.subr.mxu0 0.0
    %2354 = vmatpush1.msra.mxu0 0.0
    %2355 = vmatprep.subr.mxu0 0.0
    %2356 = vmatpush1.msra.mxu0 0.0
    %2357 = vmatprep.subr.mxu0 0.0
    %2358 = vmatpush1.msra.mxu0 0.0
    %2359 = vmatprep.subr.mxu0 0.0
    %2360 = vmatpush1.msra.mxu0 0.0
    %2361 = vmatprep.subr.mxu0 0.0
    %2362 = vmatpush1.msra.mxu0 0.0
    %2363 = vmatprep.subr.mxu0 0.0
    %2364 = vmatpush1.msra.mxu0 0.0
    %2365 = vmatprep.subr.mxu0 0.0
    %2366 = vmatpush1.msra.mxu0 0.0
    %2367 = vmatprep.subr.mxu0 0.0
    %2368 = vmatpush1.msra.mxu0 0.0
    %2369 = vmatprep.subr.mxu0 0.0
    %2370 = vmatpush1.msra.mxu0 0.0
    %2371 = vmatprep.subr.mxu0 0.0
    %2372 = vmatpush1.msra.mxu0 0.0
    %2373 = vmatprep.subr.mxu0 0.0
    %2374 = vmatpush1.msra.mxu0 0.0
    %2375 = vmatprep.subr.mxu0 0.0
    %2376 = vmatpush1.msra.mxu0 0.0
    %2377 = vmatprep.subr.mxu0 0.0
    %2378 = vmatpush1.msra.mxu0 0.0
    %2379 = vmatprep.subr.mxu0 0.0
    %2380 = vmatpush1.msra.mxu0 0.0
    %2381 = vmatprep.subr.mxu0 0.0
    %2382 = vmatpush1.msra.mxu0 0.0
    %2383 = vmatprep.subr.mxu0 0.0
    %2384 = vmatpush1.msra.mxu0 0.0
    %2385 = vmatprep.subr.mxu0 0.0
    %2386 = vmatpush1.msra.mxu0 0.0
    %2387 = vmatprep.subr.mxu0 0.0
    %2388 = vmatpush1.msra.mxu0 0.0
    %2389 = vmatprep.subr.mxu0 0.0
    %2390 = vmatpush1.msra.mxu0 0.0
    %2391 = vmatprep.subr.mxu0 0.0
    %2392 = vmatpush1.msra.mxu0 0.0
    %2393 = vmatprep.subr.mxu0 0.0
    %2394 = vmatpush1.msra.mxu0 0.0
    %2395 = vmatprep.subr.mxu0 0.0
    %2396 = vmatpush1.msra.mxu0 0.0
    %2397 = vmatprep.subr.mxu0 0.0
    %2398 = vmatpush1.msra.mxu0 0.0
    %2399 = vmatprep.subr.mxu0 0.0
    %2400 = vmatpush1.msra.mxu0 0.0
    %2401 = vmatprep.subr.mxu0 0.0
    %2402 = vmatpush1.msra.mxu0 0.0
    %2403 = vmatprep.subr.mxu0 0.0
    %2404 = vmatpush1.msra.mxu0 0.0
    %2405 = vmatprep.subr.mxu0 0.0
    %2406 = vmatpush1.msra.mxu0 0.0
    %2407 = vmatprep.subr.mxu0 0.0
    %2408 = vmatpush1.msra.mxu0 0.0
    %2409 = vmatprep.subr.mxu0 0.0
    %2410 = vmatpush1.msra.mxu0 0.0
    %2411 = vmatprep.subr.mxu0 0.0
    %2412 = vmatpush1.msra.mxu0 0.0
    %2413 = vmatprep.mubr.f32.mxu0 0.0
    %v2414 = vand.u32 %v2166, 4294901760
    %v2415 = vsub.f32 %v2166, %v2414
    %2416 = vmatmul.mubr.f32.gmra.mrb[0].mxu0 %v2415
    %v2417 = vpop.f32.mrb[0].mxu0
    %v2418 = vadd.f32 %v2336, %v2417
    %v2419 = vpop.f32.mrb[0].mxu0
    %2420 = vmatprep.mubr.f32.mxu0 0.0
    %v2421 = vand.u32 %v2169, 4294901760
    %v2422 = vsub.f32 %v2169, %v2421
    %2423 = vmatmul.mubr.f32.gmra.mrb[0].mxu0 %v2422
    %v2424 = vpop.f32.mrb[0].mxu0
    %v2425 = vadd.f32 %v2342, %v2424
    %v2426 = vpop.f32.mrb[0].mxu0
    %2427 = vdwg.mxu0
    %2428 = vmatprep.subr.mxu0 0.0
    %v2429 = vand.u32 %v60, 4294901760
    %2430 = vmatpush1.msra.mxu0 %v2429
    %2431 = vmatprep.subr.mxu0 0.0
    %v2432 = vand.u32 %v61, 4294901760
    %2433 = vmatpush1.msra.mxu0 %v2432
    %2434 = vmatprep.subr.mxu0 0.0
    %2435 = vmatpush1.msra.mxu0 0.0
    %2436 = vmatprep.subr.mxu0 0.0
    %2437 = vmatpush1.msra.mxu0 0.0
    %2438 = vmatprep.subr.mxu0 0.0
    %2439 = vmatpush1.msra.mxu0 0.0
    %2440 = vmatprep.subr.mxu0 0.0
    %2441 = vmatpush1.msra.mxu0 0.0
    %2442 = vmatprep.subr.mxu0 0.0
    %2443 = vmatpush1.msra.mxu0 0.0
    %2444 = vmatprep.subr.mxu0 0.0
    %2445 = vmatpush1.msra.mxu0 0.0
    %2446 = vmatprep.subr.mxu0 0.0
    %2447 = vmatpush1.msra.mxu0 0.0
    %2448 = vmatprep.subr.mxu0 0.0
    %2449 = vmatpush1.msra.mxu0 0.0
    %2450 = vmatprep.subr.mxu0 0.0
    %2451 = vmatpush1.msra.mxu0 0.0
    %2452 = vmatprep.subr.mxu0 0.0
    %2453 = vmatpush1.msra.mxu0 0.0
    %2454 = vmatprep.subr.mxu0 0.0
    %2455 = vmatpush1.msra.mxu0 0.0
    %2456 = vmatprep.subr.mxu0 0.0
    %2457 = vmatpush1.msra.mxu0 0.0
    %2458 = vmatprep.subr.mxu0 0.0
    %2459 = vmatpush1.msra.mxu0 0.0
    %2460 = vmatprep.subr.mxu0 0.0
    %2461 = vmatpush1.msra.mxu0 0.0
    %2462 = vmatprep.subr.mxu0 0.0
    %2463 = vmatpush1.msra.mxu0 0.0
    %2464 = vmatprep.subr.mxu0 0.0
    %2465 = vmatpush1.msra.mxu0 0.0
    %2466 = vmatprep.subr.mxu0 0.0
    %2467 = vmatpush1.msra.mxu0 0.0
    %2468 = vmatprep.subr.mxu0 0.0
    %2469 = vmatpush1.msra.mxu0 0.0
    %2470 = vmatprep.subr.mxu0 0.0
    %2471 = vmatpush1.msra.mxu0 0.0
    %2472 = vmatprep.subr.mxu0 0.0
    %2473 = vmatpush1.msra.mxu0 0.0
    %2474 = vmatprep.subr.mxu0 0.0
    %2475 = vmatpush1.msra.mxu0 0.0
    %2476 = vmatprep.subr.mxu0 0.0
    %2477 = vmatpush1.msra.mxu0 0.0
    %2478 = vmatprep.subr.mxu0 0.0
    %2479 = vmatpush1.msra.mxu0 0.0
    %2480 = vmatprep.subr.mxu0 0.0
    %2481 = vmatpush1.msra.mxu0 0.0
    %2482 = vmatprep.subr.mxu0 0.0
    %2483 = vmatpush1.msra.mxu0 0.0
    %2484 = vmatprep.subr.mxu0 0.0
    %2485 = vmatpush1.msra.mxu0 0.0
    %2486 = vmatprep.subr.mxu0 0.0
    %2487 = vmatpush1.msra.mxu0 0.0
    %2488 = vmatprep.subr.mxu0 0.0
    %2489 = vmatpush1.msra.mxu0 0.0
    %2490 = vmatprep.subr.mxu0 0.0
    %2491 = vmatpush1.msra.mxu0 0.0
    %2492 = vmatprep.subr.mxu0 0.0
    %2493 = vmatpush1.msra.mxu0 0.0
    %2494 = vmatprep.mubr.f32.mxu0 0.0
    %v2495 = vand.u32 %v2166, 4294901760
    %v2496 = vsub.f32 %v2166, %v2495
    %v2497 = vand.u32 %v2496, 4294901760
    %2498 = vmatmul.mubr.f32.gmra.mrb[0].mxu0 %v2497
    %v2499 = vpop.f32.mrb[0].mxu0
    %v2500 = vadd.f32 %v2418, %v2499
    %v2501 = vpop.f32.mrb[0].mxu0
    %2502 = vmatprep.mubr.f32.mxu0 0.0
    %v2503 = vand.u32 %v2169, 4294901760
    %v2504 = vsub.f32 %v2169, %v2503
    %v2505 = vand.u32 %v2504, 4294901760
    %2506 = vmatmul.mubr.f32.gmra.mrb[0].mxu0 %v2505
    %v2507 = vpop.f32.mrb[0].mxu0
    %v2508 = vadd.f32 %v2425, %v2507
    %v2509 = vpop.f32.mrb[0].mxu0
    %2510 = vdwg.mxu0
    %2511 = vmatprep.subr.mxu0 0.0
    %v2512 = vand.u32 %v60, 4294901760
    %v2513 = vsub.f32 %v60, %v2512
    %v2514 = vand.u32 %v2513, 4294901760
    %2515 = vmatpush1.msra.mxu0 %v2514
    %2516 = vmatprep.subr.mxu0 0.0
    %v2517 = vand.u32 %v61, 4294901760
    %v2518 = vsub.f32 %v61, %v2517
    %v2519 = vand.u32 %v2518, 4294901760
    %2520 = vmatpush1.msra.mxu0 %v2519
    %2521 = vmatprep.subr.mxu0 0.0
    %2522 = vmatpush1.msra.mxu0 0.0
    %2523 = vmatprep.subr.mxu0 0.0
    %2524 = vmatpush1.msra.mxu0 0.0
    %2525 = vmatprep.subr.mxu0 0.0
    %2526 = vmatpush1.msra.mxu0 0.0
    %2527 = vmatprep.subr.mxu0 0.0
    %2528 = vmatpush1.msra.mxu0 0.0
    %2529 = vmatprep.subr.mxu0 0.0
    %2530 = vmatpush1.msra.mxu0 0.0
    %2531 = vmatprep.subr.mxu0 0.0
    %2532 = vmatpush1.msra.mxu0 0.0
    %2533 = vmatprep.subr.mxu0 0.0
    %2534 = vmatpush1.msra.mxu0 0.0
    %2535 = vmatprep.subr.mxu0 0.0
    %2536 = vmatpush1.msra.mxu0 0.0
    %2537 = vmatprep.subr.mxu0 0.0
    %2538 = vmatpush1.msra.mxu0 0.0
    %2539 = vmatprep.subr.mxu0 0.0
    %2540 = vmatpush1.msra.mxu0 0.0
    %2541 = vmatprep.subr.mxu0 0.0
    %2542 = vmatpush1.msra.mxu0 0.0
    %2543 = vmatprep.subr.mxu0 0.0
    %2544 = vmatpush1.msra.mxu0 0.0
    %2545 = vmatprep.subr.mxu0 0.0
    %2546 = vmatpush1.msra.mxu0 0.0
    %2547 = vmatprep.subr.mxu0 0.0
    %2548 = vmatpush1.msra.mxu0 0.0
    %2549 = vmatprep.subr.mxu0 0.0
    %2550 = vmatpush1.msra.mxu0 0.0
    %2551 = vmatprep.subr.mxu0 0.0
    %2552 = vmatpush1.msra.mxu0 0.0
    %2553 = vmatprep.subr.mxu0 0.0
    %2554 = vmatpush1.msra.mxu0 0.0
    %2555 = vmatprep.subr.mxu0 0.0
    %2556 = vmatpush1.msra.mxu0 0.0
    %2557 = vmatprep.subr.mxu0 0.0
    %2558 = vmatpush1.msra.mxu0 0.0
    %2559 = vmatprep.subr.mxu0 0.0
    %2560 = vmatpush1.msra.mxu0 0.0
    %2561 = vmatprep.subr.mxu0 0.0
    %2562 = vmatpush1.msra.mxu0 0.0
    %2563 = vmatprep.subr.mxu0 0.0
    %2564 = vmatpush1.msra.mxu0 0.0
    %2565 = vmatprep.subr.mxu0 0.0
    %2566 = vmatpush1.msra.mxu0 0.0
    %2567 = vmatprep.subr.mxu0 0.0
    %2568 = vmatpush1.msra.mxu0 0.0
    %2569 = vmatprep.subr.mxu0 0.0
    %2570 = vmatpush1.msra.mxu0 0.0
    %2571 = vmatprep.subr.mxu0 0.0
    %2572 = vmatpush1.msra.mxu0 0.0
    %2573 = vmatprep.subr.mxu0 0.0
    %2574 = vmatpush1.msra.mxu0 0.0
    %2575 = vmatprep.subr.mxu0 0.0
    %2576 = vmatpush1.msra.mxu0 0.0
    %2577 = vmatprep.subr.mxu0 0.0
    %2578 = vmatpush1.msra.mxu0 0.0
    %2579 = vmatprep.subr.mxu0 0.0
    %2580 = vmatpush1.msra.mxu0 0.0
    %2581 = vmatprep.mubr.f32.mxu0 0.0
    %v2582 = vand.u32 %v2166, 4294901760
    %2583 = vmatmul.mubr.f32.gmra.mrb[0].mxu0 %v2582
    %v2584 = vpop.f32.mrb[0].mxu0
    %v2585 = vadd.f32 %v2500, %v2584
    %v2586 = vpop.f32.mrb[0].mxu0
    %2587 = vmatprep.mubr.f32.mxu0 0.0
    %v2588 = vand.u32 %v2169, 4294901760
    %2589 = vmatmul.mubr.f32.gmra.mrb[0].mxu0 %v2588
    %v2590 = vpop.f32.mrb[0].mxu0
    %v2591 = vadd.f32 %v2508, %v2590
    %v2592 = vpop.f32.mrb[0].mxu0
    %2593 = vdwg.mxu0
    %2594 = vmatprep.subr.mxu0 0.0
    %v2595 = vand.u32 %v60, 4294901760
    %2596 = vmatpush1.msra.mxu0 %v2595
    %2597 = vmatprep.subr.mxu0 0.0
    %v2598 = vand.u32 %v61, 4294901760
    %2599 = vmatpush1.msra.mxu0 %v2598
    %2600 = vmatprep.subr.mxu0 0.0
    %2601 = vmatpush1.msra.mxu0 0.0
    %2602 = vmatprep.subr.mxu0 0.0
    %2603 = vmatpush1.msra.mxu0 0.0
    %2604 = vmatprep.subr.mxu0 0.0
    %2605 = vmatpush1.msra.mxu0 0.0
    %2606 = vmatprep.subr.mxu0 0.0
    %2607 = vmatpush1.msra.mxu0 0.0
    %2608 = vmatprep.subr.mxu0 0.0
    %2609 = vmatpush1.msra.mxu0 0.0
    %2610 = vmatprep.subr.mxu0 0.0
    %2611 = vmatpush1.msra.mxu0 0.0
    %2612 = vmatprep.subr.mxu0 0.0
    %2613 = vmatpush1.msra.mxu0 0.0
    %2614 = vmatprep.subr.mxu0 0.0
    %2615 = vmatpush1.msra.mxu0 0.0
    %2616 = vmatprep.subr.mxu0 0.0
    %2617 = vmatpush1.msra.mxu0 0.0
    %2618 = vmatprep.subr.mxu0 0.0
    %2619 = vmatpush1.msra.mxu0 0.0
    %2620 = vmatprep.subr.mxu0 0.0
    %2621 = vmatpush1.msra.mxu0 0.0
    %2622 = vmatprep.subr.mxu0 0.0
    %2623 = vmatpush1.msra.mxu0 0.0
    %2624 = vmatprep.subr.mxu0 0.0
    %2625 = vmatpush1.msra.mxu0 0.0
    %2626 = vmatprep.subr.mxu0 0.0
    %2627 = vmatpush1.msra.mxu0 0.0
    %2628 = vmatprep.subr.mxu0 0.0
    %2629 = vmatpush1.msra.mxu0 0.0
    %2630 = vmatprep.subr.mxu0 0.0
    %2631 = vmatpush1.msra.mxu0 0.0
    %2632 = vmatprep.subr.mxu0 0.0
    %2633 = vmatpush1.msra.mxu0 0.0
    %2634 = vmatprep.subr.mxu0 0.0
    %2635 = vmatpush1.msra.mxu0 0.0
    %2636 = vmatprep.subr.mxu0 0.0
    %2637 = vmatpush1.msra.mxu0 0.0
    %2638 = vmatprep.subr.mxu0 0.0
    %2639 = vmatpush1.msra.mxu0 0.0
    %2640 = vmatprep.subr.mxu0 0.0
    %2641 = vmatpush1.msra.mxu0 0.0
    %2642 = vmatprep.subr.mxu0 0.0
    %2643 = vmatpush1.msra.mxu0 0.0
    %2644 = vmatprep.subr.mxu0 0.0
    %2645 = vmatpush1.msra.mxu0 0.0
    %2646 = vmatprep.subr.mxu0 0.0
    %2647 = vmatpush1.msra.mxu0 0.0
    %2648 = vmatprep.subr.mxu0 0.0
    %2649 = vmatpush1.msra.mxu0 0.0
    %2650 = vmatprep.subr.mxu0 0.0
    %2651 = vmatpush1.msra.mxu0 0.0
    %2652 = vmatprep.subr.mxu0 0.0
    %2653 = vmatpush1.msra.mxu0 0.0
    %2654 = vmatprep.subr.mxu0 0.0
    %2655 = vmatpush1.msra.mxu0 0.0
    %2656 = vmatprep.subr.mxu0 0.0
    %2657 = vmatpush1.msra.mxu0 0.0
    %2658 = vmatprep.subr.mxu0 0.0
    %2659 = vmatpush1.msra.mxu0 0.0
    %2660 = vmatprep.mubr.f32.mxu0 0.0
    %v2661 = vand.u32 %v2166, 4294901760
    %2662 = vmatmul.mubr.f32.gmra.mrb[0].mxu0 %v2661
    %v2663 = vpop.f32.mrb[0].mxu0
    %v2664 = vadd.f32 %v2585, %v2663
    %v2665 = vpop.f32.mrb[0].mxu0
    %2666 = vmatprep.mubr.f32.mxu0 0.0
    %v2667 = vand.u32 %v2169, 4294901760
    %2668 = vmatmul.mubr.f32.gmra.mrb[0].mxu0 %v2667
    %v2669 = vpop.f32.mrb[0].mxu0
    %v2670 = vadd.f32 %v2591, %v2669
    %v2671 = vpop.f32.mrb[0].mxu0
    %2672 = vdwg.mxu0
    %s2673 = scalar_lea.vmem [#allocation8], 64
    %v2674 = vld [vmem:[%s2673] sm:$0xff]
    %v2675 = vld [vmem:[%s2673 + $0x8] sm:$0xff]
    %v2676 = vld [vmem:[%s2673 + $0x10] sm:$0xff]
    %v2677 = vld [vmem:[%s2673 + $0x18] sm:$0xff]
    %v2679 = vsel %vm1093, %v2664, 0
    %v2682 = vsel %vm1093, %v2670, 0
    %2684 = vmatprep.subr.mxu0 0.0
    %v2685 = vand.u32 %v2674, 4294901760
    %2686 = vmatpush1.msra.mxu0 %v2685
    %2687 = vmatprep.subr.mxu0 0.0
    %v2688 = vand.u32 %v2675, 4294901760
    %2689 = vmatpush1.msra.mxu0 %v2688
    %2690 = vmatprep.subr.mxu0 0.0
    %v2691 = vand.u32 %v2676, 4294901760
    %2692 = vmatpush1.msra.mxu0 %v2691
    %2693 = vmatprep.subr.mxu0 0.0
    %v2694 = vand.u32 %v2677, 4294901760
    %2695 = vmatpush1.msra.mxu0 %v2694
    %2696 = vmatprep.subr.mxu0 0.0
    %2697 = vmatpush1.msra.mxu0 0.0
    %2698 = vmatprep.subr.mxu0 0.0
    %2699 = vmatpush1.msra.mxu0 0.0
    %2700 = vmatprep.subr.mxu0 0.0
    %2701 = vmatpush1.msra.mxu0 0.0
    %2702 = vmatprep.subr.mxu0 0.0
    %2703 = vmatpush1.msra.mxu0 0.0
    %2704 = vmatprep.subr.mxu0 0.0
    %2705 = vmatpush1.msra.mxu0 0.0
    %2706 = vmatprep.subr.mxu0 0.0
    %2707 = vmatpush1.msra.mxu0 0.0
    %2708 = vmatprep.subr.mxu0 0.0
    %2709 = vmatpush1.msra.mxu0 0.0
    %2710 = vmatprep.subr.mxu0 0.0
    %2711 = vmatpush1.msra.mxu0 0.0
    %2712 = vmatprep.subr.mxu0 0.0
    %2713 = vmatpush1.msra.mxu0 0.0
    %2714 = vmatprep.subr.mxu0 0.0
    %2715 = vmatpush1.msra.mxu0 0.0
    %2716 = vmatprep.subr.mxu0 0.0
    %2717 = vmatpush1.msra.mxu0 0.0
    %2718 = vmatprep.subr.mxu0 0.0
    %2719 = vmatpush1.msra.mxu0 0.0
    %2720 = vmatprep.subr.mxu0 0.0
    %2721 = vmatpush1.msra.mxu0 0.0
    %2722 = vmatprep.subr.mxu0 0.0
    %2723 = vmatpush1.msra.mxu0 0.0
    %2724 = vmatprep.subr.mxu0 0.0
    %2725 = vmatpush1.msra.mxu0 0.0
    %2726 = vmatprep.subr.mxu0 0.0
    %2727 = vmatpush1.msra.mxu0 0.0
    %2728 = vmatprep.subr.mxu0 0.0
    %2729 = vmatpush1.msra.mxu0 0.0
    %2730 = vmatprep.subr.mxu0 0.0
    %2731 = vmatpush1.msra.mxu0 0.0
    %2732 = vmatprep.subr.mxu0 0.0
    %2733 = vmatpush1.msra.mxu0 0.0
    %2734 = vmatprep.subr.mxu0 0.0
    %2735 = vmatpush1.msra.mxu0 0.0
    %2736 = vmatprep.subr.mxu0 0.0
    %2737 = vmatpush1.msra.mxu0 0.0
    %2738 = vmatprep.subr.mxu0 0.0
    %2739 = vmatpush1.msra.mxu0 0.0
    %2740 = vmatprep.subr.mxu0 0.0
    %2741 = vmatpush1.msra.mxu0 0.0
    %2742 = vmatprep.subr.mxu0 0.0
    %2743 = vmatpush1.msra.mxu0 0.0
    %2744 = vmatprep.subr.mxu0 0.0
    %2745 = vmatpush1.msra.mxu0 0.0
    %2746 = vmatprep.subr.mxu0 0.0
    %2747 = vmatpush1.msra.mxu0 0.0
    %2748 = vmatprep.subr.mxu0 0.0
    %2749 = vmatpush1.msra.mxu0 0.0
    %2750 = vmatprep.subr.mxu0 0.0
    %2751 = vmatpush1.msra.mxu0 0.0
    %2752 = vmatprep.mubr.f32.mxu0 0.0
    %v2753 = vand.u32 %v2679, 4294901760
    %v2754 = vsub.f32 %v2679, %v2753
    %v2755 = vand.u32 %v2754, 4294901760
    %v2756 = vsub.f32 %v2754, %v2755
    %v2757 = vand.u32 %v2756, 4294901760
    %2758 = vmatmul.mubr.f32.gmra.mrb[0].mxu0 %v2757
    %v2759 = vpop.f32.mrb[0].mxu0
    %v2760 = vadd.f32 0.0, %v2759
    %v2761 = vpop.f32.mrb[0].mxu0
    %2762 = vmatprep.mubr.f32.mxu0 0.0
    %v2763 = vand.u32 %v2682, 4294901760
    %v2764 = vsub.f32 %v2682, %v2763
    %v2765 = vand.u32 %v2764, 4294901760
    %v2766 = vsub.f32 %v2764, %v2765
    %v2767 = vand.u32 %v2766, 4294901760
    %2768 = vmatmul.mubr.f32.gmra.mrb[0].mxu0 %v2767
    %v2769 = vpop.f32.mrb[0].mxu0
    %v2770 = vadd.f32 0.0, %v2769
    %v2771 = vpop.f32.mrb[0].mxu0
    %2772 = vdwg.mxu0
    %2773 = vmatprep.subr.mxu0 0.0
    %v2774 = vand.u32 %v2674, 4294901760
    %v2775 = vsub.f32 %v2674, %v2774
    %v2776 = vand.u32 %v2775, 4294901760
    %v2777 = vsub.f32 %v2775, %v2776
    %v2778 = vand.u32 %v2777, 4294901760
    %2779 = vmatpush1.msra.mxu0 %v2778
    %2780 = vmatprep.subr.mxu0 0.0
    %v2781 = vand.u32 %v2675, 4294901760
    %v2782 = vsub.f32 %v2675, %v2781
    %v2783 = vand.u32 %v2782, 4294901760
    %v2784 = vsub.f32 %v2782, %v2783
    %v2785 = vand.u32 %v2784, 4294901760
    %2786 = vmatpush1.msra.mxu0 %v2785
    %2787 = vmatprep.subr.mxu0 0.0
    %v2788 = vand.u32 %v2676, 4294901760
    %v2789 = vsub.f32 %v2676, %v2788
    %v2790 = vand.u32 %v2789, 4294901760
    %v2791 = vsub.f32 %v2789, %v2790
    %v2792 = vand.u32 %v2791, 4294901760
    %2793 = vmatpush1.msra.mxu0 %v2792
    %2794 = vmatprep.subr.mxu0 0.0
    %v2795 = vand.u32 %v2677, 4294901760
    %v2796 = vsub.f32 %v2677, %v2795
    %v2797 = vand.u32 %v2796, 4294901760
    %v2798 = vsub.f32 %v2796, %v2797
    %v2799 = vand.u32 %v2798, 4294901760
    %2800 = vmatpush1.msra.mxu0 %v2799
    %2801 = vmatprep.subr.mxu0 0.0
    %2802 = vmatpush1.msra.mxu0 0.0
    %2803 = vmatprep.subr.mxu0 0.0
    %2804 = vmatpush1.msra.mxu0 0.0
    %2805 = vmatprep.subr.mxu0 0.0
    %2806 = vmatpush1.msra.mxu0 0.0
    %2807 = vmatprep.subr.mxu0 0.0
    %2808 = vmatpush1.msra.mxu0 0.0
    %2809 = vmatprep.subr.mxu0 0.0
    %2810 = vmatpush1.msra.mxu0 0.0
    %2811 = vmatprep.subr.mxu0 0.0
    %2812 = vmatpush1.msra.mxu0 0.0
    %2813 = vmatprep.subr.mxu0 0.0
    %2814 = vmatpush1.msra.mxu0 0.0
    %2815 = vmatprep.subr.mxu0 0.0
    %2816 = vmatpush1.msra.mxu0 0.0
    %2817 = vmatprep.subr.mxu0 0.0
    %2818 = vmatpush1.msra.mxu0 0.0
    %2819 = vmatprep.subr.mxu0 0.0
    %2820 = vmatpush1.msra.mxu0 0.0
    %2821 = vmatprep.subr.mxu0 0.0
    %2822 = vmatpush1.msra.mxu0 0.0
    %2823 = vmatprep.subr.mxu0 0.0
    %2824 = vmatpush1.msra.mxu0 0.0
    %2825 = vmatprep.subr.mxu0 0.0
    %2826 = vmatpush1.msra.mxu0 0.0
    %2827 = vmatprep.subr.mxu0 0.0
    %2828 = vmatpush1.msra.mxu0 0.0
    %2829 = vmatprep.subr.mxu0 0.0
    %2830 = vmatpush1.msra.mxu0 0.0
    %2831 = vmatprep.subr.mxu0 0.0
    %2832 = vmatpush1.msra.mxu0 0.0
    %2833 = vmatprep.subr.mxu0 0.0
    %2834 = vmatpush1.msra.mxu0 0.0
    %2835 = vmatprep.subr.mxu0 0.0
    %2836 = vmatpush1.msra.mxu0 0.0
    %2837 = vmatprep.subr.mxu0 0.0
    %2838 = vmatpush1.msra.mxu0 0.0
    %2839 = vmatprep.subr.mxu0 0.0
    %2840 = vmatpush1.msra.mxu0 0.0
    %2841 = vmatprep.subr.mxu0 0.0
    %2842 = vmatpush1.msra.mxu0 0.0
    %2843 = vmatprep.subr.mxu0 0.0
    %2844 = vmatpush1.msra.mxu0 0.0
    %2845 = vmatprep.subr.mxu0 0.0
    %2846 = vmatpush1.msra.mxu0 0.0
    %2847 = vmatprep.subr.mxu0 0.0
    %2848 = vmatpush1.msra.mxu0 0.0
    %2849 = vmatprep.subr.mxu0 0.0
    %2850 = vmatpush1.msra.mxu0 0.0
    %2851 = vmatprep.subr.mxu0 0.0
    %2852 = vmatpush1.msra.mxu0 0.0
    %2853 = vmatprep.subr.mxu0 0.0
    %2854 = vmatpush1.msra.mxu0 0.0
    %2855 = vmatprep.subr.mxu0 0.0
    %2856 = vmatpush1.msra.mxu0 0.0
    %2857 = vmatprep.mubr.f32.mxu0 0.0
    %v2858 = vand.u32 %v2679, 4294901760
    %2859 = vmatmul.mubr.f32.gmra.mrb[0].mxu0 %v2858
    %v2860 = vpop.f32.mrb[0].mxu0
    %v2861 = vadd.f32 %v2760, %v2860
    %v2862 = vpop.f32.mrb[0].mxu0
    %2863 = vmatprep.mubr.f32.mxu0 0.0
    %v2864 = vand.u32 %v2682, 4294901760
    %2865 = vmatmul.mubr.f32.gmra.mrb[0].mxu0 %v2864
    %v2866 = vpop.f32.mrb[0].mxu0
    %v2867 = vadd.f32 %v2770, %v2866
    %v2868 = vpop.f32.mrb[0].mxu0
    %2869 = vdwg.mxu0
    %2870 = vmatprep.subr.mxu0 0.0
    %v2871 = vand.u32 %v2674, 4294901760
    %v2872 = vsub.f32 %v2674, %v2871
    %2873 = vmatpush1.msra.mxu0 %v2872
    %2874 = vmatprep.subr.mxu0 0.0
    %v2875 = vand.u32 %v2675, 4294901760
    %v2876 = vsub.f32 %v2675, %v2875
    %2877 = vmatpush1.msra.mxu0 %v2876
    %2878 = vmatprep.subr.mxu0 0.0
    %v2879 = vand.u32 %v2676, 4294901760
    %v2880 = vsub.f32 %v2676, %v2879
    %2881 = vmatpush1.msra.mxu0 %v2880
    %2882 = vmatprep.subr.mxu0 0.0
    %v2883 = vand.u32 %v2677, 4294901760
    %v2884 = vsub.f32 %v2677, %v2883
    %2885 = vmatpush1.msra.mxu0 %v2884
    %2886 = vmatprep.subr.mxu0 0.0
    %2887 = vmatpush1.msra.mxu0 0.0
    %2888 = vmatprep.subr.mxu0 0.0
    %2889 = vmatpush1.msra.mxu0 0.0
    %2890 = vmatprep.subr.mxu0 0.0
    %2891 = vmatpush1.msra.mxu0 0.0
    %2892 = vmatprep.subr.mxu0 0.0
    %2893 = vmatpush1.msra.mxu0 0.0
    %2894 = vmatprep.subr.mxu0 0.0
    %2895 = vmatpush1.msra.mxu0 0.0
    %2896 = vmatprep.subr.mxu0 0.0
    %2897 = vmatpush1.msra.mxu0 0.0
    %2898 = vmatprep.subr.mxu0 0.0
    %2899 = vmatpush1.msra.mxu0 0.0
    %2900 = vmatprep.subr.mxu0 0.0
    %2901 = vmatpush1.msra.mxu0 0.0
    %2902 = vmatprep.subr.mxu0 0.0
    %2903 = vmatpush1.msra.mxu0 0.0
    %2904 = vmatprep.subr.mxu0 0.0
    %2905 = vmatpush1.msra.mxu0 0.0
    %2906 = vmatprep.subr.mxu0 0.0
    %2907 = vmatpush1.msra.mxu0 0.0
    %2908 = vmatprep.subr.mxu0 0.0
    %2909 = vmatpush1.msra.mxu0 0.0
    %2910 = vmatprep.subr.mxu0 0.0
    %2911 = vmatpush1.msra.mxu0 0.0
    %2912 = vmatprep.subr.mxu0 0.0
    %2913 = vmatpush1.msra.mxu0 0.0
    %2914 = vmatprep.subr.mxu0 0.0
    %2915 = vmatpush1.msra.mxu0 0.0
    %2916 = vmatprep.subr.mxu0 0.0
    %2917 = vmatpush1.msra.mxu0 0.0
    %2918 = vmatprep.subr.mxu0 0.0
    %2919 = vmatpush1.msra.mxu0 0.0
    %2920 = vmatprep.subr.mxu0 0.0
    %2921 = vmatpush1.msra.mxu0 0.0
    %2922 = vmatprep.subr.mxu0 0.0
    %2923 = vmatpush1.msra.mxu0 0.0
    %2924 = vmatprep.subr.mxu0 0.0
    %2925 = vmatpush1.msra.mxu0 0.0
    %2926 = vmatprep.subr.mxu0 0.0
    %2927 = vmatpush1.msra.mxu0 0.0
    %2928 = vmatprep.subr.mxu0 0.0
    %2929 = vmatpush1.msra.mxu0 0.0
    %2930 = vmatprep.subr.mxu0 0.0
    %2931 = vmatpush1.msra.mxu0 0.0
    %2932 = vmatprep.subr.mxu0 0.0
    %2933 = vmatpush1.msra.mxu0 0.0
    %2934 = vmatprep.subr.mxu0 0.0
    %2935 = vmatpush1.msra.mxu0 0.0
    %2936 = vmatprep.subr.mxu0 0.0
    %2937 = vmatpush1.msra.mxu0 0.0
    %2938 = vmatprep.subr.mxu0 0.0
    %2939 = vmatpush1.msra.mxu0 0.0
    %2940 = vmatprep.subr.mxu0 0.0
    %2941 = vmatpush1.msra.mxu0 0.0
    %2942 = vmatprep.mubr.f32.mxu0 0.0
    %v2943 = vand.u32 %v2679, 4294901760
    %v2944 = vsub.f32 %v2679, %v2943
    %2945 = vmatmul.mubr.f32.gmra.mrb[0].mxu0 %v2944
    %v2946 = vpop.f32.mrb[0].mxu0
    %v2947 = vadd.f32 %v2861, %v2946
    %v2948 = vpop.f32.mrb[0].mxu0
    %2949 = vmatprep.mubr.f32.mxu0 0.0
    %v2950 = vand.u32 %v2682, 4294901760
    %v2951 = vsub.f32 %v2682, %v2950
    %2952 = vmatmul.mubr.f32.gmra.mrb[0].mxu0 %v2951
    %v2953 = vpop.f32.mrb[0].mxu0
    %v2954 = vadd.f32 %v2867, %v2953
    %v2955 = vpop.f32.mrb[0].mxu0
    %2956 = vdwg.mxu0
    %2957 = vmatprep.subr.mxu0 0.0
    %v2958 = vand.u32 %v2674, 4294901760
    %2959 = vmatpush1.msra.mxu0 %v2958
    %2960 = vmatprep.subr.mxu0 0.0
    %v2961 = vand.u32 %v2675, 4294901760
    %2962 = vmatpush1.msra.mxu0 %v2961
    %2963 = vmatprep.subr.mxu0 0.0
    %v2964 = vand.u32 %v2676, 4294901760
    %2965 = vmatpush1.msra.mxu0 %v2964
    %2966 = vmatprep.subr.mxu0 0.0
    %v2967 = vand.u32 %v2677, 4294901760
    %2968 = vmatpush1.msra.mxu0 %v2967
    %2969 = vmatprep.subr.mxu0 0.0
    %2970 = vmatpush1.msra.mxu0 0.0
    %2971 = vmatprep.subr.mxu0 0.0
    %2972 = vmatpush1.msra.mxu0 0.0
    %2973 = vmatprep.subr.mxu0 0.0
    %2974 = vmatpush1.msra.mxu0 0.0
    %2975 = vmatprep.subr.mxu0 0.0
    %2976 = vmatpush1.msra.mxu0 0.0
    %2977 = vmatprep.subr.mxu0 0.0
    %2978 = vmatpush1.msra.mxu0 0.0
    %2979 = vmatprep.subr.mxu0 0.0
    %2980 = vmatpush1.msra.mxu0 0.0
    %2981 = vmatprep.subr.mxu0 0.0
    %2982 = vmatpush1.msra.mxu0 0.0
    %2983 = vmatprep.subr.mxu0 0.0
    %2984 = vmatpush1.msra.mxu0 0.0
    %2985 = vmatprep.subr.mxu0 0.0
    %2986 = vmatpush1.msra.mxu0 0.0
    %2987 = vmatprep.subr.mxu0 0.0
    %2988 = vmatpush1.msra.mxu0 0.0
    %2989 = vmatprep.subr.mxu0 0.0
    %2990 = vmatpush1.msra.mxu0 0.0
    %2991 = vmatprep.subr.mxu0 0.0
    %2992 = vmatpush1.msra.mxu0 0.0
    %2993 = vmatprep.subr.mxu0 0.0
    %2994 = vmatpush1.msra.mxu0 0.0
    %2995 = vmatprep.subr.mxu0 0.0
    %2996 = vmatpush1.msra.mxu0 0.0
    %2997 = vmatprep.subr.mxu0 0.0
    %2998 = vmatpush1.msra.mxu0 0.0
    %2999 = vmatprep.subr.mxu0 0.0
    %3000 = vmatpush1.msra.mxu0 0.0
    %3001 = vmatprep.subr.mxu0 0.0
    %3002 = vmatpush1.msra.mxu0 0.0
    %3003 = vmatprep.subr.mxu0 0.0
    %3004 = vmatpush1.msra.mxu0 0.0
    %3005 = vmatprep.subr.mxu0 0.0
    %3006 = vmatpush1.msra.mxu0 0.0
    %3007 = vmatprep.subr.mxu0 0.0
    %3008 = vmatpush1.msra.mxu0 0.0
    %3009 = vmatprep.subr.mxu0 0.0
    %3010 = vmatpush1.msra.mxu0 0.0
    %3011 = vmatprep.subr.mxu0 0.0
    %3012 = vmatpush1.msra.mxu0 0.0
    %3013 = vmatprep.subr.mxu0 0.0
    %3014 = vmatpush1.msra.mxu0 0.0
    %3015 = vmatprep.subr.mxu0 0.0
    %3016 = vmatpush1.msra.mxu0 0.0
    %3017 = vmatprep.subr.mxu0 0.0
    %3018 = vmatpush1.msra.mxu0 0.0
    %3019 = vmatprep.subr.mxu0 0.0
    %3020 = vmatpush1.msra.mxu0 0.0
    %3021 = vmatprep.subr.mxu0 0.0
    %3022 = vmatpush1.msra.mxu0 0.0
    %3023 = vmatprep.subr.mxu0 0.0
    %3024 = vmatpush1.msra.mxu0 0.0
    %3025 = vmatprep.mubr.f32.mxu0 0.0
    %v3026 = vand.u32 %v2679, 4294901760
    %v3027 = vsub.f32 %v2679, %v3026
    %v3028 = vand.u32 %v3027, 4294901760
    %3029 = vmatmul.mubr.f32.gmra.mrb[0].mxu0 %v3028
    %v3030 = vpop.f32.mrb[0].mxu0
    %v3031 = vadd.f32 %v2947, %v3030
    %v3032 = vpop.f32.mrb[0].mxu0
    %3033 = vmatprep.mubr.f32.mxu0 0.0
    %v3034 = vand.u32 %v2682, 4294901760
    %v3035 = vsub.f32 %v2682, %v3034
    %v3036 = vand.u32 %v3035, 4294901760
    %3037 = vmatmul.mubr.f32.gmra.mrb[0].mxu0 %v3036
    %v3038 = vpop.f32.mrb[0].mxu0
    %v3039 = vadd.f32 %v2954, %v3038
    %v3040 = vpop.f32.mrb[0].mxu0
    %3041 = vdwg.mxu0
    %3042 = vmatprep.subr.mxu0 0.0
    %v3043 = vand.u32 %v2674, 4294901760
    %v3044 = vsub.f32 %v2674, %v3043
    %v3045 = vand.u32 %v3044, 4294901760
    %3046 = vmatpush1.msra.mxu0 %v3045
    %3047 = vmatprep.subr.mxu0 0.0
    %v3048 = vand.u32 %v2675, 4294901760
    %v3049 = vsub.f32 %v2675, %v3048
    %v3050 = vand.u32 %v3049, 4294901760
    %3051 = vmatpush1.msra.mxu0 %v3050
    %3052 = vmatprep.subr.mxu0 0.0
    %v3053 = vand.u32 %v2676, 4294901760
    %v3054 = vsub.f32 %v2676, %v3053
    %v3055 = vand.u32 %v3054, 4294901760
    %3056 = vmatpush1.msra.mxu0 %v3055
    %3057 = vmatprep.subr.mxu0 0.0
    %v3058 = vand.u32 %v2677, 4294901760
    %v3059 = vsub.f32 %v2677, %v3058
    %v3060 = vand.u32 %v3059, 4294901760
    %3061 = vmatpush1.msra.mxu0 %v3060
    %3062 = vmatprep.subr.mxu0 0.0
    %3063 = vmatpush1.msra.mxu0 0.0
    %3064 = vmatprep.subr.mxu0 0.0
    %3065 = vmatpush1.msra.mxu0 0.0
    %3066 = vmatprep.subr.mxu0 0.0
    %3067 = vmatpush1.msra.mxu0 0.0
    %3068 = vmatprep.subr.mxu0 0.0
    %3069 = vmatpush1.msra.mxu0 0.0
    %3070 = vmatprep.subr.mxu0 0.0
    %3071 = vmatpush1.msra.mxu0 0.0
    %3072 = vmatprep.subr.mxu0 0.0
    %3073 = vmatpush1.msra.mxu0 0.0
    %3074 = vmatprep.subr.mxu0 0.0
    %3075 = vmatpush1.msra.mxu0 0.0
    %3076 = vmatprep.subr.mxu0 0.0
    %3077 = vmatpush1.msra.mxu0 0.0
    %3078 = vmatprep.subr.mxu0 0.0
    %3079 = vmatpush1.msra.mxu0 0.0
    %3080 = vmatprep.subr.mxu0 0.0
    %3081 = vmatpush1.msra.mxu0 0.0
    %3082 = vmatprep.subr.mxu0 0.0
    %3083 = vmatpush1.msra.mxu0 0.0
    %3084 = vmatprep.subr.mxu0 0.0
    %3085 = vmatpush1.msra.mxu0 0.0
    %3086 = vmatprep.subr.mxu0 0.0
    %3087 = vmatpush1.msra.mxu0 0.0
    %3088 = vmatprep.subr.mxu0 0.0
    %3089 = vmatpush1.msra.mxu0 0.0
    %3090 = vmatprep.subr.mxu0 0.0
    %3091 = vmatpush1.msra.mxu0 0.0
    %3092 = vmatprep.subr.mxu0 0.0
    %3093 = vmatpush1.msra.mxu0 0.0
    %3094 = vmatprep.subr.mxu0 0.0
    %3095 = vmatpush1.msra.mxu0 0.0
    %3096 = vmatprep.subr.mxu0 0.0
    %3097 = vmatpush1.msra.mxu0 0.0
    %3098 = vmatprep.subr.mxu0 0.0
    %3099 = vmatpush1.msra.mxu0 0.0
    %3100 = vmatprep.subr.mxu0 0.0
    %3101 = vmatpush1.msra.mxu0 0.0
    %3102 = vmatprep.subr.mxu0 0.0
    %3103 = vmatpush1.msra.mxu0 0.0
    %3104 = vmatprep.subr.mxu0 0.0
    %3105 = vmatpush1.msra.mxu0 0.0
    %3106 = vmatprep.subr.mxu0 0.0
    %3107 = vmatpush1.msra.mxu0 0.0
    %3108 = vmatprep.subr.mxu0 0.0
    %3109 = vmatpush1.msra.mxu0 0.0
    %3110 = vmatprep.subr.mxu0 0.0
    %3111 = vmatpush1.msra.mxu0 0.0
    %3112 = vmatprep.subr.mxu0 0.0
    %3113 = vmatpush1.msra.mxu0 0.0
    %3114 = vmatprep.subr.mxu0 0.0
    %3115 = vmatpush1.msra.mxu0 0.0
    %3116 = vmatprep.subr.mxu0 0.0
    %3117 = vmatpush1.msra.mxu0 0.0
    %3118 = vmatprep.mubr.f32.mxu0 0.0
    %v3119 = vand.u32 %v2679, 4294901760
    %3120 = vmatmul.mubr.f32.gmra.mrb[0].mxu0 %v3119
    %v3121 = vpop.f32.mrb[0].mxu0
    %v3122 = vadd.f32 %v3031, %v3121
    %v3123 = vpop.f32.mrb[0].mxu0
    %3124 = vmatprep.mubr.f32.mxu0 0.0
    %v3125 = vand.u32 %v2682, 4294901760
    %3126 = vmatmul.mubr.f32.gmra.mrb[0].mxu0 %v3125
    %v3127 = vpop.f32.mrb[0].mxu0
    %v3128 = vadd.f32 %v3039, %v3127
    %v3129 = vpop.f32.mrb[0].mxu0
    %3130 = vdwg.mxu0
    %3131 = vmatprep.subr.mxu0 0.0
    %v3132 = vand.u32 %v2674, 4294901760
    %3133 = vmatpush1.msra.mxu0 %v3132
    %3134 = vmatprep.subr.mxu0 0.0
    %v3135 = vand.u32 %v2675, 4294901760
    %3136 = vmatpush1.msra.mxu0 %v3135
    %3137 = vmatprep.subr.mxu0 0.0
    %v3138 = vand.u32 %v2676, 4294901760
    %3139 = vmatpush1.msra.mxu0 %v3138
    %3140 = vmatprep.subr.mxu0 0.0
    %v3141 = vand.u32 %v2677, 4294901760
    %3142 = vmatpush1.msra.mxu0 %v3141
    %3143 = vmatprep.subr.mxu0 0.0
    %3144 = vmatpush1.msra.mxu0 0.0
    %3145 = vmatprep.subr.mxu0 0.0
    %3146 = vmatpush1.msra.mxu0 0.0
    %3147 = vmatprep.subr.mxu0 0.0
    %3148 = vmatpush1.msra.mxu0 0.0
    %3149 = vmatprep.subr.mxu0 0.0
    %3150 = vmatpush1.msra.mxu0 0.0
    %3151 = vmatprep.subr.mxu0 0.0
    %3152 = vmatpush1.msra.mxu0 0.0
    %3153 = vmatprep.subr.mxu0 0.0
    %3154 = vmatpush1.msra.mxu0 0.0
    %3155 = vmatprep.subr.mxu0 0.0
    %3156 = vmatpush1.msra.mxu0 0.0
    %3157 = vmatprep.subr.mxu0 0.0
    %3158 = vmatpush1.msra.mxu0 0.0
    %3159 = vmatprep.subr.mxu0 0.0
    %3160 = vmatpush1.msra.mxu0 0.0
    %3161 = vmatprep.subr.mxu0 0.0
    %3162 = vmatpush1.msra.mxu0 0.0
    %3163 = vmatprep.subr.mxu0 0.0
    %3164 = vmatpush1.msra.mxu0 0.0
    %3165 = vmatprep.subr.mxu0 0.0
    %3166 = vmatpush1.msra.mxu0 0.0
    %3167 = vmatprep.subr.mxu0 0.0
    %3168 = vmatpush1.msra.mxu0 0.0
    %3169 = vmatprep.subr.mxu0 0.0
    %3170 = vmatpush1.msra.mxu0 0.0
    %3171 = vmatprep.subr.mxu0 0.0
    %3172 = vmatpush1.msra.mxu0 0.0
    %3173 = vmatprep.subr.mxu0 0.0
    %3174 = vmatpush1.msra.mxu0 0.0
    %3175 = vmatprep.subr.mxu0 0.0
    %3176 = vmatpush1.msra.mxu0 0.0
    %3177 = vmatprep.subr.mxu0 0.0
    %3178 = vmatpush1.msra.mxu0 0.0
    %3179 = vmatprep.subr.mxu0 0.0
    %3180 = vmatpush1.msra.mxu0 0.0
    %3181 = vmatprep.subr.mxu0 0.0
    %3182 = vmatpush1.msra.mxu0 0.0
    %3183 = vmatprep.subr.mxu0 0.0
    %3184 = vmatpush1.msra.mxu0 0.0
    %3185 = vmatprep.subr.mxu0 0.0
    %3186 = vmatpush1.msra.mxu0 0.0
    %3187 = vmatprep.subr.mxu0 0.0
    %3188 = vmatpush1.msra.mxu0 0.0
    %3189 = vmatprep.subr.mxu0 0.0
    %3190 = vmatpush1.msra.mxu0 0.0
    %3191 = vmatprep.subr.mxu0 0.0
    %3192 = vmatpush1.msra.mxu0 0.0
    %3193 = vmatprep.subr.mxu0 0.0
    %3194 = vmatpush1.msra.mxu0 0.0
    %3195 = vmatprep.subr.mxu0 0.0
    %3196 = vmatpush1.msra.mxu0 0.0
    %3197 = vmatprep.subr.mxu0 0.0
    %3198 = vmatpush1.msra.mxu0 0.0
    %3199 = vmatprep.mubr.f32.mxu0 0.0
    %v3200 = vand.u32 %v2679, 4294901760
    %3201 = vmatmul.mubr.f32.gmra.mrb[0].mxu0 %v3200
    %v3202 = vpop.f32.mrb[0].mxu0
    %v3203 = vadd.f32 %v3122, %v3202
    %v3204 = vpop.f32.mrb[0].mxu0
    %3205 = vmatprep.mubr.f32.mxu0 0.0
    %v3206 = vand.u32 %v2682, 4294901760
    %3207 = vmatmul.mubr.f32.gmra.mrb[0].mxu0 %v3206
    %v3208 = vpop.f32.mrb[0].mxu0
    %v3209 = vadd.f32 %v3128, %v3208
    %v3210 = vpop.f32.mrb[0].mxu0
    %3211 = vdwg.mxu0
    %v3212 = vadd.f32 %v2153, %v3203
    %v3213 = vadd.f32 %v2159, %v3209
    %s3214 = scalar_lea.vmem [#allocation6], 48
    %v3215 = vld [vmem:[%s3214] sm:$0xff]
    %v3216 = vld [vmem:[%s3214 + $0x8] sm:$0xff]
    %v3218 = vsel %vm64, %v3215, 0
    %v3221 = vsel %vm64, %v3216, 0
    %3223 = vmatprep.subr.mxu0 0.0
    %v3224 = vand.u32 %v60, 4294901760
    %3225 = vmatpush1.msra.mxu0 %v3224
    %3226 = vmatprep.subr.mxu0 0.0
    %v3227 = vand.u32 %v61, 4294901760
    %3228 = vmatpush1.msra.mxu0 %v3227
    %3229 = vmatprep.subr.mxu0 0.0
    %3230 = vmatpush1.msra.mxu0 0.0
    %3231 = vmatprep.subr.mxu0 0.0
    %3232 = vmatpush1.msra.mxu0 0.0
    %3233 = vmatprep.subr.mxu0 0.0
    %3234 = vmatpush1.msra.mxu0 0.0
    %3235 = vmatprep.subr.mxu0 0.0
    %3236 = vmatpush1.msra.mxu0 0.0
    %3237 = vmatprep.subr.mxu0 0.0
    %3238 = vmatpush1.msra.mxu0 0.0
    %3239 = vmatprep.subr.mxu0 0.0
    %3240 = vmatpush1.msra.mxu0 0.0
    %3241 = vmatprep.subr.mxu0 0.0
    %3242 = vmatpush1.msra.mxu0 0.0
    %3243 = vmatprep.subr.mxu0 0.0
    %3244 = vmatpush1.msra.mxu0 0.0
    %3245 = vmatprep.subr.mxu0 0.0
    %3246 = vmatpush1.msra.mxu0 0.0
    %3247 = vmatprep.subr.mxu0 0.0
    %3248 = vmatpush1.msra.mxu0 0.0
    %3249 = vmatprep.subr.mxu0 0.0
    %3250 = vmatpush1.msra.mxu0 0.0
    %3251 = vmatprep.subr.mxu0 0.0
    %3252 = vmatpush1.msra.mxu0 0.0
    %3253 = vmatprep.subr.mxu0 0.0
    %3254 = vmatpush1.msra.mxu0 0.0
    %3255 = vmatprep.subr.mxu0 0.0
    %3256 = vmatpush1.msra.mxu0 0.0
    %3257 = vmatprep.subr.mxu0 0.0
    %3258 = vmatpush1.msra.mxu0 0.0
    %3259 = vmatprep.subr.mxu0 0.0
    %3260 = vmatpush1.msra.mxu0 0.0
    %3261 = vmatprep.subr.mxu0 0.0
    %3262 = vmatpush1.msra.mxu0 0.0
    %3263 = vmatprep.subr.mxu0 0.0
    %3264 = vmatpush1.msra.mxu0 0.0
    %3265 = vmatprep.subr.mxu0 0.0
    %3266 = vmatpush1.msra.mxu0 0.0
    %3267 = vmatprep.subr.mxu0 0.0
    %3268 = vmatpush1.msra.mxu0 0.0
    %3269 = vmatprep.subr.mxu0 0.0
    %3270 = vmatpush1.msra.mxu0 0.0
    %3271 = vmatprep.subr.mxu0 0.0
    %3272 = vmatpush1.msra.mxu0 0.0
    %3273 = vmatprep.subr.mxu0 0.0
    %3274 = vmatpush1.msra.mxu0 0.0
    %3275 = vmatprep.subr.mxu0 0.0
    %3276 = vmatpush1.msra.mxu0 0.0
    %3277 = vmatprep.subr.mxu0 0.0
    %3278 = vmatpush1.msra.mxu0 0.0
    %3279 = vmatprep.subr.mxu0 0.0
    %3280 = vmatpush1.msra.mxu0 0.0
    %3281 = vmatprep.subr.mxu0 0.0
    %3282 = vmatpush1.msra.mxu0 0.0
    %3283 = vmatprep.subr.mxu0 0.0
    %3284 = vmatpush1.msra.mxu0 0.0
    %3285 = vmatprep.subr.mxu0 0.0
    %3286 = vmatpush1.msra.mxu0 0.0
    %3287 = vmatprep.subr.mxu0 0.0
    %3288 = vmatpush1.msra.mxu0 0.0
    %3289 = vmatprep.mubr.f32.mxu0 0.0
    %v3290 = vand.u32 %v3218, 4294901760
    %v3291 = vsub.f32 %v3218, %v3290
    %v3292 = vand.u32 %v3291, 4294901760
    %v3293 = vsub.f32 %v3291, %v3292
    %v3294 = vand.u32 %v3293, 4294901760
    %3295 = vmatmul.mubr.f32.gmra.mrb[0].mxu0 %v3294
    %v3296 = vpop.f32.mrb[0].mxu0
    %v3297 = vadd.f32 0.0, %v3296
    %v3298 = vpop.f32.mrb[0].mxu0
    %3299 = vmatprep.mubr.f32.mxu0 0.0
    %v3300 = vand.u32 %v3221, 4294901760
    %v3301 = vsub.f32 %v3221, %v3300
    %v3302 = vand.u32 %v3301, 4294901760
    %v3303 = vsub.f32 %v3301, %v3302
    %v3304 = vand.u32 %v3303, 4294901760
    %3305 = vmatmul.mubr.f32.gmra.mrb[0].mxu0 %v3304
    %v3306 = vpop.f32.mrb[0].mxu0
    %v3307 = vadd.f32 0.0, %v3306
    %v3308 = vpop.f32.mrb[0].mxu0
    %3309 = vdwg.mxu0
    %3310 = vmatprep.subr.mxu0 0.0
    %v3311 = vand.u32 %v60, 4294901760
    %v3312 = vsub.f32 %v60, %v3311
    %v3313 = vand.u32 %v3312, 4294901760
    %v3314 = vsub.f32 %v3312, %v3313
    %v3315 = vand.u32 %v3314, 4294901760
    %3316 = vmatpush1.msra.mxu0 %v3315
    %3317 = vmatprep.subr.mxu0 0.0
    %v3318 = vand.u32 %v61, 4294901760
    %v3319 = vsub.f32 %v61, %v3318
    %v3320 = vand.u32 %v3319, 4294901760
    %v3321 = vsub.f32 %v3319, %v3320
    %v3322 = vand.u32 %v3321, 4294901760
    %3323 = vmatpush1.msra.mxu0 %v3322
    %3324 = vmatprep.subr.mxu0 0.0
    %3325 = vmatpush1.msra.mxu0 0.0
    %3326 = vmatprep.subr.mxu0 0.0
    %3327 = vmatpush1.msra.mxu0 0.0
    %3328 = vmatprep.subr.mxu0 0.0
    %3329 = vmatpush1.msra.mxu0 0.0
    %3330 = vmatprep.subr.mxu0 0.0
    %3331 = vmatpush1.msra.mxu0 0.0
    %3332 = vmatprep.subr.mxu0 0.0
    %3333 = vmatpush1.msra.mxu0 0.0
    %3334 = vmatprep.subr.mxu0 0.0
    %3335 = vmatpush1.msra.mxu0 0.0
    %3336 = vmatprep.subr.mxu0 0.0
    %3337 = vmatpush1.msra.mxu0 0.0
    %3338 = vmatprep.subr.mxu0 0.0
    %3339 = vmatpush1.msra.mxu0 0.0
    %3340 = vmatprep.subr.mxu0 0.0
    %3341 = vmatpush1.msra.mxu0 0.0
    %3342 = vmatprep.subr.mxu0 0.0
    %3343 = vmatpush1.msra.mxu0 0.0
    %3344 = vmatprep.subr.mxu0 0.0
    %3345 = vmatpush1.msra.mxu0 0.0
    %3346 = vmatprep.subr.mxu0 0.0
    %3347 = vmatpush1.msra.mxu0 0.0
    %3348 = vmatprep.subr.mxu0 0.0
    %3349 = vmatpush1.msra.mxu0 0.0
    %3350 = vmatprep.subr.mxu0 0.0
    %3351 = vmatpush1.msra.mxu0 0.0
    %3352 = vmatprep.subr.mxu0 0.0
    %3353 = vmatpush1.msra.mxu0 0.0
    %3354 = vmatprep.subr.mxu0 0.0
    %3355 = vmatpush1.msra.mxu0 0.0
    %3356 = vmatprep.subr.mxu0 0.0
    %3357 = vmatpush1.msra.mxu0 0.0
    %3358 = vmatprep.subr.mxu0 0.0
    %3359 = vmatpush1.msra.mxu0 0.0
    %3360 = vmatprep.subr.mxu0 0.0
    %3361 = vmatpush1.msra.mxu0 0.0
    %3362 = vmatprep.subr.mxu0 0.0
    %3363 = vmatpush1.msra.mxu0 0.0
    %3364 = vmatprep.subr.mxu0 0.0
    %3365 = vmatpush1.msra.mxu0 0.0
    %3366 = vmatprep.subr.mxu0 0.0
    %3367 = vmatpush1.msra.mxu0 0.0
    %3368 = vmatprep.subr.mxu0 0.0
    %3369 = vmatpush1.msra.mxu0 0.0
    %3370 = vmatprep.subr.mxu0 0.0
    %3371 = vmatpush1.msra.mxu0 0.0
    %3372 = vmatprep.subr.mxu0 0.0
    %3373 = vmatpush1.msra.mxu0 0.0
    %3374 = vmatprep.subr.mxu0 0.0
    %3375 = vmatpush1.msra.mxu0 0.0
    %3376 = vmatprep.subr.mxu0 0.0
    %3377 = vmatpush1.msra.mxu0 0.0
    %3378 = vmatprep.subr.mxu0 0.0
    %3379 = vmatpush1.msra.mxu0 0.0
    %3380 = vmatprep.subr.mxu0 0.0
    %3381 = vmatpush1.msra.mxu0 0.0
    %3382 = vmatprep.subr.mxu0 0.0
    %3383 = vmatpush1.msra.mxu0 0.0
    %3384 = vmatprep.mubr.f32.mxu0 0.0
    %v3385 = vand.u32 %v3218, 4294901760
    %3386 = vmatmul.mubr.f32.gmra.mrb[0].mxu0 %v3385
    %v3387 = vpop.f32.mrb[0].mxu0
    %v3388 = vadd.f32 %v3297, %v3387
    %v3389 = vpop.f32.mrb[0].mxu0
    %3390 = vmatprep.mubr.f32.mxu0 0.0
    %v3391 = vand.u32 %v3221, 4294901760
    %3392 = vmatmul.mubr.f32.gmra.mrb[0].mxu0 %v3391
    %v3393 = vpop.f32.mrb[0].mxu0
    %v3394 = vadd.f32 %v3307, %v3393
    %v3395 = vpop.f32.mrb[0].mxu0
    %3396 = vdwg.mxu0
    %3397 = vmatprep.subr.mxu0 0.0
    %v3398 = vand.u32 %v60, 4294901760
    %v3399 = vsub.f32 %v60, %v3398
    %3400 = vmatpush1.msra.mxu0 %v3399
    %3401 = vmatprep.subr.mxu0 0.0
    %v3402 = vand.u32 %v61, 4294901760
    %v3403 = vsub.f32 %v61, %v3402
    %3404 = vmatpush1.msra.mxu0 %v3403
    %3405 = vmatprep.subr.mxu0 0.0
    %3406 = vmatpush1.msra.mxu0 0.0
    %3407 = vmatprep.subr.mxu0 0.0
    %3408 = vmatpush1.msra.mxu0 0.0
    %3409 = vmatprep.subr.mxu0 0.0
    %3410 = vmatpush1.msra.mxu0 0.0
    %3411 = vmatprep.subr.mxu0 0.0
    %3412 = vmatpush1.msra.mxu0 0.0
    %3413 = vmatprep.subr.mxu0 0.0
    %3414 = vmatpush1.msra.mxu0 0.0
    %3415 = vmatprep.subr.mxu0 0.0
    %3416 = vmatpush1.msra.mxu0 0.0
    %3417 = vmatprep.subr.mxu0 0.0
    %3418 = vmatpush1.msra.mxu0 0.0
    %3419 = vmatprep.subr.mxu0 0.0
    %3420 = vmatpush1.msra.mxu0 0.0
    %3421 = vmatprep.subr.mxu0 0.0
    %3422 = vmatpush1.msra.mxu0 0.0
    %3423 = vmatprep.subr.mxu0 0.0
    %3424 = vmatpush1.msra.mxu0 0.0
    %3425 = vmatprep.subr.mxu0 0.0
    %3426 = vmatpush1.msra.mxu0 0.0
    %3427 = vmatprep.subr.mxu0 0.0
    %3428 = vmatpush1.msra.mxu0 0.0
    %3429 = vmatprep.subr.mxu0 0.0
    %3430 = vmatpush1.msra.mxu0 0.0
    %3431 = vmatprep.subr.mxu0 0.0
    %3432 = vmatpush1.msra.mxu0 0.0
    %3433 = vmatprep.subr.mxu0 0.0
    %3434 = vmatpush1.msra.mxu0 0.0
    %3435 = vmatprep.subr.mxu0 0.0
    %3436 = vmatpush1.msra.mxu0 0.0
    %3437 = vmatprep.subr.mxu0 0.0
    %3438 = vmatpush1.msra.mxu0 0.0
    %3439 = vmatprep.subr.mxu0 0.0
    %3440 = vmatpush1.msra.mxu0 0.0
    %3441 = vmatprep.subr.mxu0 0.0
    %3442 = vmatpush1.msra.mxu0 0.0
    %3443 = vmatprep.subr.mxu0 0.0
    %3444 = vmatpush1.msra.mxu0 0.0
    %3445 = vmatprep.subr.mxu0 0.0
    %3446 = vmatpush1.msra.mxu0 0.0
    %3447 = vmatprep.subr.mxu0 0.0
    %3448 = vmatpush1.msra.mxu0 0.0
    %3449 = vmatprep.subr.mxu0 0.0
    %3450 = vmatpush1.msra.mxu0 0.0
    %3451 = vmatprep.subr.mxu0 0.0
    %3452 = vmatpush1.msra.mxu0 0.0
    %3453 = vmatprep.subr.mxu0 0.0
    %3454 = vmatpush1.msra.mxu0 0.0
    %3455 = vmatprep.subr.mxu0 0.0
    %3456 = vmatpush1.msra.mxu0 0.0
    %3457 = vmatprep.subr.mxu0 0.0
    %3458 = vmatpush1.msra.mxu0 0.0
    %3459 = vmatprep.subr.mxu0 0.0
    %3460 = vmatpush1.msra.mxu0 0.0
    %3461 = vmatprep.subr.mxu0 0.0
    %3462 = vmatpush1.msra.mxu0 0.0
    %3463 = vmatprep.subr.mxu0 0.0
    %3464 = vmatpush1.msra.mxu0 0.0
    %3465 = vmatprep.mubr.f32.mxu0 0.0
    %v3466 = vand.u32 %v3218, 4294901760
    %v3467 = vsub.f32 %v3218, %v3466
    %3468 = vmatmul.mubr.f32.gmra.mrb[0].mxu0 %v3467
    %v3469 = vpop.f32.mrb[0].mxu0
    %v3470 = vadd.f32 %v3388, %v3469
    %v3471 = vpop.f32.mrb[0].mxu0
    %3472 = vmatprep.mubr.f32.mxu0 0.0
    %v3473 = vand.u32 %v3221, 4294901760
    %v3474 = vsub.f32 %v3221, %v3473
    %3475 = vmatmul.mubr.f32.gmra.mrb[0].mxu0 %v3474
    %v3476 = vpop.f32.mrb[0].mxu0
    %v3477 = vadd.f32 %v3394, %v3476
    %v3478 = vpop.f32.mrb[0].mxu0
    %3479 = vdwg.mxu0
    %3480 = vmatprep.subr.mxu0 0.0
    %v3481 = vand.u32 %v60, 4294901760
    %3482 = vmatpush1.msra.mxu0 %v3481
    %3483 = vmatprep.subr.mxu0 0.0
    %v3484 = vand.u32 %v61, 4294901760
    %3485 = vmatpush1.msra.mxu0 %v3484
    %3486 = vmatprep.subr.mxu0 0.0
    %3487 = vmatpush1.msra.mxu0 0.0
    %3488 = vmatprep.subr.mxu0 0.0
    %3489 = vmatpush1.msra.mxu0 0.0
    %3490 = vmatprep.subr.mxu0 0.0
    %3491 = vmatpush1.msra.mxu0 0.0
    %3492 = vmatprep.subr.mxu0 0.0
    %3493 = vmatpush1.msra.mxu0 0.0
    %3494 = vmatprep.subr.mxu0 0.0
    %3495 = vmatpush1.msra.mxu0 0.0
    %3496 = vmatprep.subr.mxu0 0.0
    %3497 = vmatpush1.msra.mxu0 0.0
    %3498 = vmatprep.subr.mxu0 0.0
    %3499 = vmatpush1.msra.mxu0 0.0
    %3500 = vmatprep.subr.mxu0 0.0
    %3501 = vmatpush1.msra.mxu0 0.0
    %3502 = vmatprep.subr.mxu0 0.0
    %3503 = vmatpush1.msra.mxu0 0.0
    %3504 = vmatprep.subr.mxu0 0.0
    %3505 = vmatpush1.msra.mxu0 0.0
    %3506 = vmatprep.subr.mxu0 0.0
    %3507 = vmatpush1.msra.mxu0 0.0
    %3508 = vmatprep.subr.mxu0 0.0
    %3509 = vmatpush1.msra.mxu0 0.0
    %3510 = vmatprep.subr.mxu0 0.0
    %3511 = vmatpush1.msra.mxu0 0.0
    %3512 = vmatprep.subr.mxu0 0.0
    %3513 = vmatpush1.msra.mxu0 0.0
    %3514 = vmatprep.subr.mxu0 0.0
    %3515 = vmatpush1.msra.mxu0 0.0
    %3516 = vmatprep.subr.mxu0 0.0
    %3517 = vmatpush1.msra.mxu0 0.0
    %3518 = vmatprep.subr.mxu0 0.0
    %3519 = vmatpush1.msra.mxu0 0.0
    %3520 = vmatprep.subr.mxu0 0.0
    %3521 = vmatpush1.msra.mxu0 0.0
    %3522 = vmatprep.subr.mxu0 0.0
    %3523 = vmatpush1.msra.mxu0 0.0
    %3524 = vmatprep.subr.mxu0 0.0
    %3525 = vmatpush1.msra.mxu0 0.0
    %3526 = vmatprep.subr.mxu0 0.0
    %3527 = vmatpush1.msra.mxu0 0.0
    %3528 = vmatprep.subr.mxu0 0.0
    %3529 = vmatpush1.msra.mxu0 0.0
    %3530 = vmatprep.subr.mxu0 0.0
    %3531 = vmatpush1.msra.mxu0 0.0
    %3532 = vmatprep.subr.mxu0 0.0
    %3533 = vmatpush1.msra.mxu0 0.0
    %3534 = vmatprep.subr.mxu0 0.0
    %3535 = vmatpush1.msra.mxu0 0.0
    %3536 = vmatprep.subr.mxu0 0.0
    %3537 = vmatpush1.msra.mxu0 0.0
    %3538 = vmatprep.subr.mxu0 0.0
    %3539 = vmatpush1.msra.mxu0 0.0
    %3540 = vmatprep.subr.mxu0 0.0
    %3541 = vmatpush1.msra.mxu0 0.0
    %3542 = vmatprep.subr.mxu0 0.0
    %3543 = vmatpush1.msra.mxu0 0.0
    %3544 = vmatprep.subr.mxu0 0.0
    %3545 = vmatpush1.msra.mxu0 0.0
    %3546 = vmatprep.mubr.f32.mxu0 0.0
    %v3547 = vand.u32 %v3218, 4294901760
    %v3548 = vsub.f32 %v3218, %v3547
    %v3549 = vand.u32 %v3548, 4294901760
    %3550 = vmatmul.mubr.f32.gmra.mrb[0].mxu0 %v3549
    %v3551 = vpop.f32.mrb[0].mxu0
    %v3552 = vadd.f32 %v3470, %v3551
    %v3553 = vpop.f32.mrb[0].mxu0
    %3554 = vmatprep.mubr.f32.mxu0 0.0
    %v3555 = vand.u32 %v3221, 4294901760
    %v3556 = vsub.f32 %v3221, %v3555
    %v3557 = vand.u32 %v3556, 4294901760
    %3558 = vmatmul.mubr.f32.gmra.mrb[0].mxu0 %v3557
    %v3559 = vpop.f32.mrb[0].mxu0
    %v3560 = vadd.f32 %v3477, %v3559
    %v3561 = vpop.f32.mrb[0].mxu0
    %3562 = vdwg.mxu0
    %3563 = vmatprep.subr.mxu0 0.0
    %v3564 = vand.u32 %v60, 4294901760
    %v3565 = vsub.f32 %v60, %v3564
    %v3566 = vand.u32 %v3565, 4294901760
    %3567 = vmatpush1.msra.mxu0 %v3566
    %3568 = vmatprep.subr.mxu0 0.0
    %v3569 = vand.u32 %v61, 4294901760
    %v3570 = vsub.f32 %v61, %v3569
    %v3571 = vand.u32 %v3570, 4294901760
    %3572 = vmatpush1.msra.mxu0 %v3571
    %3573 = vmatprep.subr.mxu0 0.0
    %3574 = vmatpush1.msra.mxu0 0.0
    %3575 = vmatprep.subr.mxu0 0.0
    %3576 = vmatpush1.msra.mxu0 0.0
    %3577 = vmatprep.subr.mxu0 0.0
    %3578 = vmatpush1.msra.mxu0 0.0
    %3579 = vmatprep.subr.mxu0 0.0
    %3580 = vmatpush1.msra.mxu0 0.0
    %3581 = vmatprep.subr.mxu0 0.0
    %3582 = vmatpush1.msra.mxu0 0.0
    %3583 = vmatprep.subr.mxu0 0.0
    %3584 = vmatpush1.msra.mxu0 0.0
    %3585 = vmatprep.subr.mxu0 0.0
    %3586 = vmatpush1.msra.mxu0 0.0
    %3587 = vmatprep.subr.mxu0 0.0
    %3588 = vmatpush1.msra.mxu0 0.0
    %3589 = vmatprep.subr.mxu0 0.0
    %3590 = vmatpush1.msra.mxu0 0.0
    %3591 = vmatprep.subr.mxu0 0.0
    %3592 = vmatpush1.msra.mxu0 0.0
    %3593 = vmatprep.subr.mxu0 0.0
    %3594 = vmatpush1.msra.mxu0 0.0
    %3595 = vmatprep.subr.mxu0 0.0
    %3596 = vmatpush1.msra.mxu0 0.0
    %3597 = vmatprep.subr.mxu0 0.0
    %3598 = vmatpush1.msra.mxu0 0.0
    %3599 = vmatprep.subr.mxu0 0.0
    %3600 = vmatpush1.msra.mxu0 0.0
    %3601 = vmatprep.subr.mxu0 0.0
    %3602 = vmatpush1.msra.mxu0 0.0
    %3603 = vmatprep.subr.mxu0 0.0
    %3604 = vmatpush1.msra.mxu0 0.0
    %3605 = vmatprep.subr.mxu0 0.0
    %3606 = vmatpush1.msra.mxu0 0.0
    %3607 = vmatprep.subr.mxu0 0.0
    %3608 = vmatpush1.msra.mxu0 0.0
    %3609 = vmatprep.subr.mxu0 0.0
    %3610 = vmatpush1.msra.mxu0 0.0
    %3611 = vmatprep.subr.mxu0 0.0
    %3612 = vmatpush1.msra.mxu0 0.0
    %3613 = vmatprep.subr.mxu0 0.0
    %3614 = vmatpush1.msra.mxu0 0.0
    %3615 = vmatprep.subr.mxu0 0.0
    %3616 = vmatpush1.msra.mxu0 0.0
    %3617 = vmatprep.subr.mxu0 0.0
    %3618 = vmatpush1.msra.mxu0 0.0
    %3619 = vmatprep.subr.mxu0 0.0
    %3620 = vmatpush1.msra.mxu0 0.0
    %3621 = vmatprep.subr.mxu0 0.0
    %3622 = vmatpush1.msra.mxu0 0.0
    %3623 = vmatprep.subr.mxu0 0.0
    %3624 = vmatpush1.msra.mxu0 0.0
    %3625 = vmatprep.subr.mxu0 0.0
    %3626 = vmatpush1.msra.mxu0 0.0
    %3627 = vmatprep.subr.mxu0 0.0
    %3628 = vmatpush1.msra.mxu0 0.0
    %3629 = vmatprep.subr.mxu0 0.0
    %3630 = vmatpush1.msra.mxu0 0.0
    %3631 = vmatprep.subr.mxu0 0.0
    %3632 = vmatpush1.msra.mxu0 0.0
    %3633 = vmatprep.mubr.f32.mxu0 0.0
    %v3634 = vand.u32 %v3218, 4294901760
    %3635 = vmatmul.mubr.f32.gmra.mrb[0].mxu0 %v3634
    %v3636 = vpop.f32.mrb[0].mxu0
    %v3637 = vadd.f32 %v3552, %v3636
    %v3638 = vpop.f32.mrb[0].mxu0
    %3639 = vmatprep.mubr.f32.mxu0 0.0
    %v3640 = vand.u32 %v3221, 4294901760
    %3641 = vmatmul.mubr.f32.gmra.mrb[0].mxu0 %v3640
    %v3642 = vpop.f32.mrb[0].mxu0
    %v3643 = vadd.f32 %v3560, %v3642
    %v3644 = vpop.f32.mrb[0].mxu0
    %3645 = vdwg.mxu0
    %3646 = vmatprep.subr.mxu0 0.0
    %v3647 = vand.u32 %v60, 4294901760
    %3648 = vmatpush1.msra.mxu0 %v3647
    %3649 = vmatprep.subr.mxu0 0.0
    %v3650 = vand.u32 %v61, 4294901760
    %3651 = vmatpush1.msra.mxu0 %v3650
    %3652 = vmatprep.subr.mxu0 0.0
    %3653 = vmatpush1.msra.mxu0 0.0
    %3654 = vmatprep.subr.mxu0 0.0
    %3655 = vmatpush1.msra.mxu0 0.0
    %3656 = vmatprep.subr.mxu0 0.0
    %3657 = vmatpush1.msra.mxu0 0.0
    %3658 = vmatprep.subr.mxu0 0.0
    %3659 = vmatpush1.msra.mxu0 0.0
    %3660 = vmatprep.subr.mxu0 0.0
    %3661 = vmatpush1.msra.mxu0 0.0
    %3662 = vmatprep.subr.mxu0 0.0
    %3663 = vmatpush1.msra.mxu0 0.0
    %3664 = vmatprep.subr.mxu0 0.0
    %3665 = vmatpush1.msra.mxu0 0.0
    %3666 = vmatprep.subr.mxu0 0.0
    %3667 = vmatpush1.msra.mxu0 0.0
    %3668 = vmatprep.subr.mxu0 0.0
    %3669 = vmatpush1.msra.mxu0 0.0
    %3670 = vmatprep.subr.mxu0 0.0
    %3671 = vmatpush1.msra.mxu0 0.0
    %3672 = vmatprep.subr.mxu0 0.0
    %3673 = vmatpush1.msra.mxu0 0.0
    %3674 = vmatprep.subr.mxu0 0.0
    %3675 = vmatpush1.msra.mxu0 0.0
    %3676 = vmatprep.subr.mxu0 0.0
    %3677 = vmatpush1.msra.mxu0 0.0
    %3678 = vmatprep.subr.mxu0 0.0
    %3679 = vmatpush1.msra.mxu0 0.0
    %3680 = vmatprep.subr.mxu0 0.0
    %3681 = vmatpush1.msra.mxu0 0.0
    %3682 = vmatprep.subr.mxu0 0.0
    %3683 = vmatpush1.msra.mxu0 0.0
    %3684 = vmatprep.subr.mxu0 0.0
    %3685 = vmatpush1.msra.mxu0 0.0
    %3686 = vmatprep.subr.mxu0 0.0
    %3687 = vmatpush1.msra.mxu0 0.0
    %3688 = vmatprep.subr.mxu0 0.0
    %3689 = vmatpush1.msra.mxu0 0.0
    %3690 = vmatprep.subr.mxu0 0.0
    %3691 = vmatpush1.msra.mxu0 0.0
    %3692 = vmatprep.subr.mxu0 0.0
    %3693 = vmatpush1.msra.mxu0 0.0
    %3694 = vmatprep.subr.mxu0 0.0
    %3695 = vmatpush1.msra.mxu0 0.0
    %3696 = vmatprep.subr.mxu0 0.0
    %3697 = vmatpush1.msra.mxu0 0.0
    %3698 = vmatprep.subr.mxu0 0.0
    %3699 = vmatpush1.msra.mxu0 0.0
    %3700 = vmatprep.subr.mxu0 0.0
    %3701 = vmatpush1.msra.mxu0 0.0
    %3702 = vmatprep.subr.mxu0 0.0
    %3703 = vmatpush1.msra.mxu0 0.0
    %3704 = vmatprep.subr.mxu0 0.0
    %3705 = vmatpush1.msra.mxu0 0.0
    %3706 = vmatprep.subr.mxu0 0.0
    %3707 = vmatpush1.msra.mxu0 0.0
    %3708 = vmatprep.subr.mxu0 0.0
    %3709 = vmatpush1.msra.mxu0 0.0
    %3710 = vmatprep.subr.mxu0 0.0
    %3711 = vmatpush1.msra.mxu0 0.0
    %3712 = vmatprep.mubr.f32.mxu0 0.0
    %v3713 = vand.u32 %v3218, 4294901760
    %3714 = vmatmul.mubr.f32.gmra.mrb[0].mxu0 %v3713
    %v3715 = vpop.f32.mrb[0].mxu0
    %v3716 = vadd.f32 %v3637, %v3715
    %v3717 = vpop.f32.mrb[0].mxu0
    %3718 = vmatprep.mubr.f32.mxu0 0.0
    %v3719 = vand.u32 %v3221, 4294901760
    %3720 = vmatmul.mubr.f32.gmra.mrb[0].mxu0 %v3719
    %v3721 = vpop.f32.mrb[0].mxu0
    %v3722 = vadd.f32 %v3643, %v3721
    %v3723 = vpop.f32.mrb[0].mxu0
    %3724 = vdwg.mxu0
    %s3725 = scalar_lea.vmem [#allocation8], 96
    %v3726 = vld [vmem:[%s3725] sm:$0xff]
    %v3727 = vld [vmem:[%s3725 + $0x8] sm:$0xff]
    %v3728 = vld [vmem:[%s3725 + $0x10] sm:$0xff]
    %v3729 = vld [vmem:[%s3725 + $0x18] sm:$0xff]
    %v3731 = vsel %vm1093, %v3716, 0
    %v3734 = vsel %vm1093, %v3722, 0
    %3736 = vmatprep.subr.mxu0 0.0
    %v3737 = vand.u32 %v3726, 4294901760
    %3738 = vmatpush1.msra.mxu0 %v3737
    %3739 = vmatprep.subr.mxu0 0.0
    %v3740 = vand.u32 %v3727, 4294901760
    %3741 = vmatpush1.msra.mxu0 %v3740
    %3742 = vmatprep.subr.mxu0 0.0
    %v3743 = vand.u32 %v3728, 4294901760
    %3744 = vmatpush1.msra.mxu0 %v3743
    %3745 = vmatprep.subr.mxu0 0.0
    %v3746 = vand.u32 %v3729, 4294901760
    %3747 = vmatpush1.msra.mxu0 %v3746
    %3748 = vmatprep.subr.mxu0 0.0
    %3749 = vmatpush1.msra.mxu0 0.0
    %3750 = vmatprep.subr.mxu0 0.0
    %3751 = vmatpush1.msra.mxu0 0.0
    %3752 = vmatprep.subr.mxu0 0.0
    %3753 = vmatpush1.msra.mxu0 0.0
    %3754 = vmatprep.subr.mxu0 0.0
    %3755 = vmatpush1.msra.mxu0 0.0
    %3756 = vmatprep.subr.mxu0 0.0
    %3757 = vmatpush1.msra.mxu0 0.0
    %3758 = vmatprep.subr.mxu0 0.0
    %3759 = vmatpush1.msra.mxu0 0.0
    %3760 = vmatprep.subr.mxu0 0.0
    %3761 = vmatpush1.msra.mxu0 0.0
    %3762 = vmatprep.subr.mxu0 0.0
    %3763 = vmatpush1.msra.mxu0 0.0
    %3764 = vmatprep.subr.mxu0 0.0
    %3765 = vmatpush1.msra.mxu0 0.0
    %3766 = vmatprep.subr.mxu0 0.0
    %3767 = vmatpush1.msra.mxu0 0.0
    %3768 = vmatprep.subr.mxu0 0.0
    %3769 = vmatpush1.msra.mxu0 0.0
    %3770 = vmatprep.subr.mxu0 0.0
    %3771 = vmatpush1.msra.mxu0 0.0
    %3772 = vmatprep.subr.mxu0 0.0
    %3773 = vmatpush1.msra.mxu0 0.0
    %3774 = vmatprep.subr.mxu0 0.0
    %3775 = vmatpush1.msra.mxu0 0.0
    %3776 = vmatprep.subr.mxu0 0.0
    %3777 = vmatpush1.msra.mxu0 0.0
    %3778 = vmatprep.subr.mxu0 0.0
    %3779 = vmatpush1.msra.mxu0 0.0
    %3780 = vmatprep.subr.mxu0 0.0
    %3781 = vmatpush1.msra.mxu0 0.0
    %3782 = vmatprep.subr.mxu0 0.0
    %3783 = vmatpush1.msra.mxu0 0.0
    %3784 = vmatprep.subr.mxu0 0.0
    %3785 = vmatpush1.msra.mxu0 0.0
    %3786 = vmatprep.subr.mxu0 0.0
    %3787 = vmatpush1.msra.mxu0 0.0
    %3788 = vmatprep.subr.mxu0 0.0
    %3789 = vmatpush1.msra.mxu0 0.0
    %3790 = vmatprep.subr.mxu0 0.0
    %3791 = vmatpush1.msra.mxu0 0.0
    %3792 = vmatprep.subr.mxu0 0.0
    %3793 = vmatpush1.msra.mxu0 0.0
    %3794 = vmatprep.subr.mxu0 0.0
    %3795 = vmatpush1.msra.mxu0 0.0
    %3796 = vmatprep.subr.mxu0 0.0
    %3797 = vmatpush1.msra.mxu0 0.0
    %3798 = vmatprep.subr.mxu0 0.0
    %3799 = vmatpush1.msra.mxu0 0.0
    %3800 = vmatprep.subr.mxu0 0.0
    %3801 = vmatpush1.msra.mxu0 0.0
    %3802 = vmatprep.subr.mxu0 0.0
    %3803 = vmatpush1.msra.mxu0 0.0
    %3804 = vmatprep.mubr.f32.mxu0 0.0
    %v3805 = vand.u32 %v3731, 4294901760
    %v3806 = vsub.f32 %v3731, %v3805
    %v3807 = vand.u32 %v3806, 4294901760
    %v3808 = vsub.f32 %v3806, %v3807
    %v3809 = vand.u32 %v3808, 4294901760
    %3810 = vmatmul.mubr.f32.gmra.mrb[0].mxu0 %v3809
    %v3811 = vpop.f32.mrb[0].mxu0
    %v3812 = vadd.f32 0.0, %v3811
    %v3813 = vpop.f32.mrb[0].mxu0
    %3814 = vmatprep.mubr.f32.mxu0 0.0
    %v3815 = vand.u32 %v3734, 4294901760
    %v3816 = vsub.f32 %v3734, %v3815
    %v3817 = vand.u32 %v3816, 4294901760
    %v3818 = vsub.f32 %v3816, %v3817
    %v3819 = vand.u32 %v3818, 4294901760
    %3820 = vmatmul.mubr.f32.gmra.mrb[0].mxu0 %v3819
    %v3821 = vpop.f32.mrb[0].mxu0
    %v3822 = vadd.f32 0.0, %v3821
    %v3823 = vpop.f32.mrb[0].mxu0
    %3824 = vdwg.mxu0
    %3825 = vmatprep.subr.mxu0 0.0
    %v3826 = vand.u32 %v3726, 4294901760
    %v3827 = vsub.f32 %v3726, %v3826
    %v3828 = vand.u32 %v3827, 4294901760
    %v3829 = vsub.f32 %v3827, %v3828
    %v3830 = vand.u32 %v3829, 4294901760
    %3831 = vmatpush1.msra.mxu0 %v3830
    %3832 = vmatprep.subr.mxu0 0.0
    %v3833 = vand.u32 %v3727, 4294901760
    %v3834 = vsub.f32 %v3727, %v3833
    %v3835 = vand.u32 %v3834, 4294901760
    %v3836 = vsub.f32 %v3834, %v3835
    %v3837 = vand.u32 %v3836, 4294901760
    %3838 = vmatpush1.msra.mxu0 %v3837
    %3839 = vmatprep.subr.mxu0 0.0
    %v3840 = vand.u32 %v3728, 4294901760
    %v3841 = vsub.f32 %v3728, %v3840
    %v3842 = vand.u32 %v3841, 4294901760
    %v3843 = vsub.f32 %v3841, %v3842
    %v3844 = vand.u32 %v3843, 4294901760
    %3845 = vmatpush1.msra.mxu0 %v3844
    %3846 = vmatprep.subr.mxu0 0.0
    %v3847 = vand.u32 %v3729, 4294901760
    %v3848 = vsub.f32 %v3729, %v3847
    %v3849 = vand.u32 %v3848, 4294901760
    %v3850 = vsub.f32 %v3848, %v3849
    %v3851 = vand.u32 %v3850, 4294901760
    %3852 = vmatpush1.msra.mxu0 %v3851
    %3853 = vmatprep.subr.mxu0 0.0
    %3854 = vmatpush1.msra.mxu0 0.0
    %3855 = vmatprep.subr.mxu0 0.0
    %3856 = vmatpush1.msra.mxu0 0.0
    %3857 = vmatprep.subr.mxu0 0.0
    %3858 = vmatpush1.msra.mxu0 0.0
    %3859 = vmatprep.subr.mxu0 0.0
    %3860 = vmatpush1.msra.mxu0 0.0
    %3861 = vmatprep.subr.mxu0 0.0
    %3862 = vmatpush1.msra.mxu0 0.0
    %3863 = vmatprep.subr.mxu0 0.0
    %3864 = vmatpush1.msra.mxu0 0.0
    %3865 = vmatprep.subr.mxu0 0.0
    %3866 = vmatpush1.msra.mxu0 0.0
    %3867 = vmatprep.subr.mxu0 0.0
    %3868 = vmatpush1.msra.mxu0 0.0
    %3869 = vmatprep.subr.mxu0 0.0
    %3870 = vmatpush1.msra.mxu0 0.0
    %3871 = vmatprep.subr.mxu0 0.0
    %3872 = vmatpush1.msra.mxu0 0.0
    %3873 = vmatprep.subr.mxu0 0.0
    %3874 = vmatpush1.msra.mxu0 0.0
    %3875 = vmatprep.subr.mxu0 0.0
    %3876 = vmatpush1.msra.mxu0 0.0
    %3877 = vmatprep.subr.mxu0 0.0
    %3878 = vmatpush1.msra.mxu0 0.0
    %3879 = vmatprep.subr.mxu0 0.0
    %3880 = vmatpush1.msra.mxu0 0.0
    %3881 = vmatprep.subr.mxu0 0.0
    %3882 = vmatpush1.msra.mxu0 0.0
    %3883 = vmatprep.subr.mxu0 0.0
    %3884 = vmatpush1.msra.mxu0 0.0
    %3885 = vmatprep.subr.mxu0 0.0
    %3886 = vmatpush1.msra.mxu0 0.0
    %3887 = vmatprep.subr.mxu0 0.0
    %3888 = vmatpush1.msra.mxu0 0.0
    %3889 = vmatprep.subr.mxu0 0.0
    %3890 = vmatpush1.msra.mxu0 0.0
    %3891 = vmatprep.subr.mxu0 0.0
    %3892 = vmatpush1.msra.mxu0 0.0
    %3893 = vmatprep.subr.mxu0 0.0
    %3894 = vmatpush1.msra.mxu0 0.0
    %3895 = vmatprep.subr.mxu0 0.0
    %3896 = vmatpush1.msra.mxu0 0.0
    %3897 = vmatprep.subr.mxu0 0.0
    %3898 = vmatpush1.msra.mxu0 0.0
    %3899 = vmatprep.subr.mxu0 0.0
    %3900 = vmatpush1.msra.mxu0 0.0
    %3901 = vmatprep.subr.mxu0 0.0
    %3902 = vmatpush1.msra.mxu0 0.0
    %3903 = vmatprep.subr.mxu0 0.0
    %3904 = vmatpush1.msra.mxu0 0.0
    %3905 = vmatprep.subr.mxu0 0.0
    %3906 = vmatpush1.msra.mxu0 0.0
    %3907 = vmatprep.subr.mxu0 0.0
    %3908 = vmatpush1.msra.mxu0 0.0
    %3909 = vmatprep.mubr.f32.mxu0 0.0
    %v3910 = vand.u32 %v3731, 4294901760
    %3911 = vmatmul.mubr.f32.gmra.mrb[0].mxu0 %v3910
    %v3912 = vpop.f32.mrb[0].mxu0
    %v3913 = vadd.f32 %v3812, %v3912
    %v3914 = vpop.f32.mrb[0].mxu0
    %3915 = vmatprep.mubr.f32.mxu0 0.0
    %v3916 = vand.u32 %v3734, 4294901760
    %3917 = vmatmul.mubr.f32.gmra.mrb[0].mxu0 %v3916
    %v3918 = vpop.f32.mrb[0].mxu0
    %v3919 = vadd.f32 %v3822, %v3918
    %v3920 = vpop.f32.mrb[0].mxu0
    %3921 = vdwg.mxu0
    %3922 = vmatprep.subr.mxu0 0.0
    %v3923 = vand.u32 %v3726, 4294901760
    %v3924 = vsub.f32 %v3726, %v3923
    %3925 = vmatpush1.msra.mxu0 %v3924
    %3926 = vmatprep.subr.mxu0 0.0
    %v3927 = vand.u32 %v3727, 4294901760
    %v3928 = vsub.f32 %v3727, %v3927
    %3929 = vmatpush1.msra.mxu0 %v3928
    %3930 = vmatprep.subr.mxu0 0.0
    %v3931 = vand.u32 %v3728, 4294901760
    %v3932 = vsub.f32 %v3728, %v3931
    %3933 = vmatpush1.msra.mxu0 %v3932
    %3934 = vmatprep.subr.mxu0 0.0
    %v3935 = vand.u32 %v3729, 4294901760
    %v3936 = vsub.f32 %v3729, %v3935
    %3937 = vmatpush1.msra.mxu0 %v3936
    %3938 = vmatprep.subr.mxu0 0.0
    %3939 = vmatpush1.msra.mxu0 0.0
    %3940 = vmatprep.subr.mxu0 0.0
    %3941 = vmatpush1.msra.mxu0 0.0
    %3942 = vmatprep.subr.mxu0 0.0
    %3943 = vmatpush1.msra.mxu0 0.0
    %3944 = vmatprep.subr.mxu0 0.0
    %3945 = vmatpush1.msra.mxu0 0.0
    %3946 = vmatprep.subr.mxu0 0.0
    %3947 = vmatpush1.msra.mxu0 0.0
    %3948 = vmatprep.subr.mxu0 0.0
    %3949 = vmatpush1.msra.mxu0 0.0
    %3950 = vmatprep.subr.mxu0 0.0
    %3951 = vmatpush1.msra.mxu0 0.0
    %3952 = vmatprep.subr.mxu0 0.0
    %3953 = vmatpush1.msra.mxu0 0.0
    %3954 = vmatprep.subr.mxu0 0.0
    %3955 = vmatpush1.msra.mxu0 0.0
    %3956 = vmatprep.subr.mxu0 0.0
    %3957 = vmatpush1.msra.mxu0 0.0
    %3958 = vmatprep.subr.mxu0 0.0
    %3959 = vmatpush1.msra.mxu0 0.0
    %3960 = vmatprep.subr.mxu0 0.0
    %3961 = vmatpush1.msra.mxu0 0.0
    %3962 = vmatprep.subr.mxu0 0.0
    %3963 = vmatpush1.msra.mxu0 0.0
    %3964 = vmatprep.subr.mxu0 0.0
    %3965 = vmatpush1.msra.mxu0 0.0
    %3966 = vmatprep.subr.mxu0 0.0
    %3967 = vmatpush1.msra.mxu0 0.0
    %3968 = vmatprep.subr.mxu0 0.0
    %3969 = vmatpush1.msra.mxu0 0.0
    %3970 = vmatprep.subr.mxu0 0.0
    %3971 = vmatpush1.msra.mxu0 0.0
    %3972 = vmatprep.subr.mxu0 0.0
    %3973 = vmatpush1.msra.mxu0 0.0
    %3974 = vmatprep.subr.mxu0 0.0
    %3975 = vmatpush1.msra.mxu0 0.0
    %3976 = vmatprep.subr.mxu0 0.0
    %3977 = vmatpush1.msra.mxu0 0.0
    %3978 = vmatprep.subr.mxu0 0.0
    %3979 = vmatpush1.msra.mxu0 0.0
    %3980 = vmatprep.subr.mxu0 0.0
    %3981 = vmatpush1.msra.mxu0 0.0
    %3982 = vmatprep.subr.mxu0 0.0
    %3983 = vmatpush1.msra.mxu0 0.0
    %3984 = vmatprep.subr.mxu0 0.0
    %3985 = vmatpush1.msra.mxu0 0.0
    %3986 = vmatprep.subr.mxu0 0.0
    %3987 = vmatpush1.msra.mxu0 0.0
    %3988 = vmatprep.subr.mxu0 0.0
    %3989 = vmatpush1.msra.mxu0 0.0
    %3990 = vmatprep.subr.mxu0 0.0
    %3991 = vmatpush1.msra.mxu0 0.0
    %3992 = vmatprep.subr.mxu0 0.0
    %3993 = vmatpush1.msra.mxu0 0.0
    %3994 = vmatprep.mubr.f32.mxu0 0.0
    %v3995 = vand.u32 %v3731, 4294901760
    %v3996 = vsub.f32 %v3731, %v3995
    %3997 = vmatmul.mubr.f32.gmra.mrb[0].mxu0 %v3996
    %v3998 = vpop.f32.mrb[0].mxu0
    %v3999 = vadd.f32 %v3913, %v3998
    %v4000 = vpop.f32.mrb[0].mxu0
    %4001 = vmatprep.mubr.f32.mxu0 0.0
    %v4002 = vand.u32 %v3734, 4294901760
    %v4003 = vsub.f32 %v3734, %v4002
    %4004 = vmatmul.mubr.f32.gmra.mrb[0].mxu0 %v4003
    %v4005 = vpop.f32.mrb[0].mxu0
    %v4006 = vadd.f32 %v3919, %v4005
    %v4007 = vpop.f32.mrb[0].mxu0
    %4008 = vdwg.mxu0
    %4009 = vmatprep.subr.mxu0 0.0
    %v4010 = vand.u32 %v3726, 4294901760
    %4011 = vmatpush1.msra.mxu0 %v4010
    %4012 = vmatprep.subr.mxu0 0.0
    %v4013 = vand.u32 %v3727, 4294901760
    %4014 = vmatpush1.msra.mxu0 %v4013
    %4015 = vmatprep.subr.mxu0 0.0
    %v4016 = vand.u32 %v3728, 4294901760
    %4017 = vmatpush1.msra.mxu0 %v4016
    %4018 = vmatprep.subr.mxu0 0.0
    %v4019 = vand.u32 %v3729, 4294901760
    %4020 = vmatpush1.msra.mxu0 %v4019
    %4021 = vmatprep.subr.mxu0 0.0
    %4022 = vmatpush1.msra.mxu0 0.0
    %4023 = vmatprep.subr.mxu0 0.0
    %4024 = vmatpush1.msra.mxu0 0.0
    %4025 = vmatprep.subr.mxu0 0.0
    %4026 = vmatpush1.msra.mxu0 0.0
    %4027 = vmatprep.subr.mxu0 0.0
    %4028 = vmatpush1.msra.mxu0 0.0
    %4029 = vmatprep.subr.mxu0 0.0
    %4030 = vmatpush1.msra.mxu0 0.0
    %4031 = vmatprep.subr.mxu0 0.0
    %4032 = vmatpush1.msra.mxu0 0.0
    %4033 = vmatprep.subr.mxu0 0.0
    %4034 = vmatpush1.msra.mxu0 0.0
    %4035 = vmatprep.subr.mxu0 0.0
    %4036 = vmatpush1.msra.mxu0 0.0
    %4037 = vmatprep.subr.mxu0 0.0
    %4038 = vmatpush1.msra.mxu0 0.0
    %4039 = vmatprep.subr.mxu0 0.0
    %4040 = vmatpush1.msra.mxu0 0.0
    %4041 = vmatprep.subr.mxu0 0.0
    %4042 = vmatpush1.msra.mxu0 0.0
    %4043 = vmatprep.subr.mxu0 0.0
    %4044 = vmatpush1.msra.mxu0 0.0
    %4045 = vmatprep.subr.mxu0 0.0
    %4046 = vmatpush1.msra.mxu0 0.0
    %4047 = vmatprep.subr.mxu0 0.0
    %4048 = vmatpush1.msra.mxu0 0.0
    %4049 = vmatprep.subr.mxu0 0.0
    %4050 = vmatpush1.msra.mxu0 0.0
    %4051 = vmatprep.subr.mxu0 0.0
    %4052 = vmatpush1.msra.mxu0 0.0
    %4053 = vmatprep.subr.mxu0 0.0
    %4054 = vmatpush1.msra.mxu0 0.0
    %4055 = vmatprep.subr.mxu0 0.0
    %4056 = vmatpush1.msra.mxu0 0.0
    %4057 = vmatprep.subr.mxu0 0.0
    %4058 = vmatpush1.msra.mxu0 0.0
    %4059 = vmatprep.subr.mxu0 0.0
    %4060 = vmatpush1.msra.mxu0 0.0
    %4061 = vmatprep.subr.mxu0 0.0
    %4062 = vmatpush1.msra.mxu0 0.0
    %4063 = vmatprep.subr.mxu0 0.0
    %4064 = vmatpush1.msra.mxu0 0.0
    %4065 = vmatprep.subr.mxu0 0.0
    %4066 = vmatpush1.msra.mxu0 0.0
    %4067 = vmatprep.subr.mxu0 0.0
    %4068 = vmatpush1.msra.mxu0 0.0
    %4069 = vmatprep.subr.mxu0 0.0
    %4070 = vmatpush1.msra.mxu0 0.0
    %4071 = vmatprep.subr.mxu0 0.0
    %4072 = vmatpush1.msra.mxu0 0.0
    %4073 = vmatprep.subr.mxu0 0.0
    %4074 = vmatpush1.msra.mxu0 0.0
    %4075 = vmatprep.subr.mxu0 0.0
    %4076 = vmatpush1.msra.mxu0 0.0
    %4077 = vmatprep.mubr.f32.mxu0 0.0
    %v4078 = vand.u32 %v3731, 4294901760
    %v4079 = vsub.f32 %v3731, %v4078
    %v4080 = vand.u32 %v4079, 4294901760
    %4081 = vmatmul.mubr.f32.gmra.mrb[0].mxu0 %v4080
    %v4082 = vpop.f32.mrb[0].mxu0
    %v4083 = vadd.f32 %v3999, %v4082
    %v4084 = vpop.f32.mrb[0].mxu0
    %4085 = vmatprep.mubr.f32.mxu0 0.0
    %v4086 = vand.u32 %v3734, 4294901760
    %v4087 = vsub.f32 %v3734, %v4086
    %v4088 = vand.u32 %v4087, 4294901760
    %4089 = vmatmul.mubr.f32.gmra.mrb[0].mxu0 %v4088
    %v4090 = vpop.f32.mrb[0].mxu0
    %v4091 = vadd.f32 %v4006, %v4090
    %v4092 = vpop.f32.mrb[0].mxu0
    %4093 = vdwg.mxu0
    %4094 = vmatprep.subr.mxu0 0.0
    %v4095 = vand.u32 %v3726, 4294901760
    %v4096 = vsub.f32 %v3726, %v4095
    %v4097 = vand.u32 %v4096, 4294901760
    %4098 = vmatpush1.msra.mxu0 %v4097
    %4099 = vmatprep.subr.mxu0 0.0
    %v4100 = vand.u32 %v3727, 4294901760
    %v4101 = vsub.f32 %v3727, %v4100
    %v4102 = vand.u32 %v4101, 4294901760
    %4103 = vmatpush1.msra.mxu0 %v4102
    %4104 = vmatprep.subr.mxu0 0.0
    %v4105 = vand.u32 %v3728, 4294901760
    %v4106 = vsub.f32 %v3728, %v4105
    %v4107 = vand.u32 %v4106, 4294901760
    %4108 = vmatpush1.msra.mxu0 %v4107
    %4109 = vmatprep.subr.mxu0 0.0
    %v4110 = vand.u32 %v3729, 4294901760
    %v4111 = vsub.f32 %v3729, %v4110
    %v4112 = vand.u32 %v4111, 4294901760
    %4113 = vmatpush1.msra.mxu0 %v4112
    %4114 = vmatprep.subr.mxu0 0.0
    %4115 = vmatpush1.msra.mxu0 0.0
    %4116 = vmatprep.subr.mxu0 0.0
    %4117 = vmatpush1.msra.mxu0 0.0
    %4118 = vmatprep.subr.mxu0 0.0
    %4119 = vmatpush1.msra.mxu0 0.0
    %4120 = vmatprep.subr.mxu0 0.0
    %4121 = vmatpush1.msra.mxu0 0.0
    %4122 = vmatprep.subr.mxu0 0.0
    %4123 = vmatpush1.msra.mxu0 0.0
    %4124 = vmatprep.subr.mxu0 0.0
    %4125 = vmatpush1.msra.mxu0 0.0
    %4126 = vmatprep.subr.mxu0 0.0
    %4127 = vmatpush1.msra.mxu0 0.0
    %4128 = vmatprep.subr.mxu0 0.0
    %4129 = vmatpush1.msra.mxu0 0.0
    %4130 = vmatprep.subr.mxu0 0.0
    %4131 = vmatpush1.msra.mxu0 0.0
    %4132 = vmatprep.subr.mxu0 0.0
    %4133 = vmatpush1.msra.mxu0 0.0
    %4134 = vmatprep.subr.mxu0 0.0
    %4135 = vmatpush1.msra.mxu0 0.0
    %4136 = vmatprep.subr.mxu0 0.0
    %4137 = vmatpush1.msra.mxu0 0.0
    %4138 = vmatprep.subr.mxu0 0.0
    %4139 = vmatpush1.msra.mxu0 0.0
    %4140 = vmatprep.subr.mxu0 0.0
    %4141 = vmatpush1.msra.mxu0 0.0
    %4142 = vmatprep.subr.mxu0 0.0
    %4143 = vmatpush1.msra.mxu0 0.0
    %4144 = vmatprep.subr.mxu0 0.0
    %4145 = vmatpush1.msra.mxu0 0.0
    %4146 = vmatprep.subr.mxu0 0.0
    %4147 = vmatpush1.msra.mxu0 0.0
    %4148 = vmatprep.subr.mxu0 0.0
    %4149 = vmatpush1.msra.mxu0 0.0
    %4150 = vmatprep.subr.mxu0 0.0
    %4151 = vmatpush1.msra.mxu0 0.0
    %4152 = vmatprep.subr.mxu0 0.0
    %4153 = vmatpush1.msra.mxu0 0.0
    %4154 = vmatprep.subr.mxu0 0.0
    %4155 = vmatpush1.msra.mxu0 0.0
    %4156 = vmatprep.subr.mxu0 0.0
    %4157 = vmatpush1.msra.mxu0 0.0
    %4158 = vmatprep.subr.mxu0 0.0
    %4159 = vmatpush1.msra.mxu0 0.0
    %4160 = vmatprep.subr.mxu0 0.0
    %4161 = vmatpush1.msra.mxu0 0.0
    %4162 = vmatprep.subr.mxu0 0.0
    %4163 = vmatpush1.msra.mxu0 0.0
    %4164 = vmatprep.subr.mxu0 0.0
    %4165 = vmatpush1.msra.mxu0 0.0
    %4166 = vmatprep.subr.mxu0 0.0
    %4167 = vmatpush1.msra.mxu0 0.0
    %4168 = vmatprep.subr.mxu0 0.0
    %4169 = vmatpush1.msra.mxu0 0.0
    %4170 = vmatprep.mubr.f32.mxu0 0.0
    %v4171 = vand.u32 %v3731, 4294901760
    %4172 = vmatmul.mubr.f32.gmra.mrb[0].mxu0 %v4171
    %v4173 = vpop.f32.mrb[0].mxu0
    %v4174 = vadd.f32 %v4083, %v4173
    %v4175 = vpop.f32.mrb[0].mxu0
    %4176 = vmatprep.mubr.f32.mxu0 0.0
    %v4177 = vand.u32 %v3734, 4294901760
    %4178 = vmatmul.mubr.f32.gmra.mrb[0].mxu0 %v4177
    %v4179 = vpop.f32.mrb[0].mxu0
    %v4180 = vadd.f32 %v4091, %v4179
    %v4181 = vpop.f32.mrb[0].mxu0
    %4182 = vdwg.mxu0
    %4183 = vmatprep.subr.mxu0 0.0
    %v4184 = vand.u32 %v3726, 4294901760
    %4185 = vmatpush1.msra.mxu0 %v4184
    %4186 = vmatprep.subr.mxu0 0.0
    %v4187 = vand.u32 %v3727, 4294901760
    %4188 = vmatpush1.msra.mxu0 %v4187
    %4189 = vmatprep.subr.mxu0 0.0
    %v4190 = vand.u32 %v3728, 4294901760
    %4191 = vmatpush1.msra.mxu0 %v4190
    %4192 = vmatprep.subr.mxu0 0.0
    %v4193 = vand.u32 %v3729, 4294901760
    %4194 = vmatpush1.msra.mxu0 %v4193
    %4195 = vmatprep.subr.mxu0 0.0
    %4196 = vmatpush1.msra.mxu0 0.0
    %4197 = vmatprep.subr.mxu0 0.0
    %4198 = vmatpush1.msra.mxu0 0.0
    %4199 = vmatprep.subr.mxu0 0.0
    %4200 = vmatpush1.msra.mxu0 0.0
    %4201 = vmatprep.subr.mxu0 0.0
    %4202 = vmatpush1.msra.mxu0 0.0
    %4203 = vmatprep.subr.mxu0 0.0
    %4204 = vmatpush1.msra.mxu0 0.0
    %4205 = vmatprep.subr.mxu0 0.0
    %4206 = vmatpush1.msra.mxu0 0.0
    %4207 = vmatprep.subr.mxu0 0.0
    %4208 = vmatpush1.msra.mxu0 0.0
    %4209 = vmatprep.subr.mxu0 0.0
    %4210 = vmatpush1.msra.mxu0 0.0
    %4211 = vmatprep.subr.mxu0 0.0
    %4212 = vmatpush1.msra.mxu0 0.0
    %4213 = vmatprep.subr.mxu0 0.0
    %4214 = vmatpush1.msra.mxu0 0.0
    %4215 = vmatprep.subr.mxu0 0.0
    %4216 = vmatpush1.msra.mxu0 0.0
    %4217 = vmatprep.subr.mxu0 0.0
    %4218 = vmatpush1.msra.mxu0 0.0
    %4219 = vmatprep.subr.mxu0 0.0
    %4220 = vmatpush1.msra.mxu0 0.0
    %4221 = vmatprep.subr.mxu0 0.0
    %4222 = vmatpush1.msra.mxu0 0.0
    %4223 = vmatprep.subr.mxu0 0.0
    %4224 = vmatpush1.msra.mxu0 0.0
    %4225 = vmatprep.subr.mxu0 0.0
    %4226 = vmatpush1.msra.mxu0 0.0
    %4227 = vmatprep.subr.mxu0 0.0
    %4228 = vmatpush1.msra.mxu0 0.0
    %4229 = vmatprep.subr.mxu0 0.0
    %4230 = vmatpush1.msra.mxu0 0.0
    %4231 = vmatprep.subr.mxu0 0.0
    %4232 = vmatpush1.msra.mxu0 0.0
    %4233 = vmatprep.subr.mxu0 0.0
    %4234 = vmatpush1.msra.mxu0 0.0
    %4235 = vmatprep.subr.mxu0 0.0
    %4236 = vmatpush1.msra.mxu0 0.0
    %4237 = vmatprep.subr.mxu0 0.0
    %4238 = vmatpush1.msra.mxu0 0.0
    %4239 = vmatprep.subr.mxu0 0.0
    %4240 = vmatpush1.msra.mxu0 0.0
    %4241 = vmatprep.subr.mxu0 0.0
    %4242 = vmatpush1.msra.mxu0 0.0
    %4243 = vmatprep.subr.mxu0 0.0
    %4244 = vmatpush1.msra.mxu0 0.0
    %4245 = vmatprep.subr.mxu0 0.0
    %4246 = vmatpush1.msra.mxu0 0.0
    %4247 = vmatprep.subr.mxu0 0.0
    %4248 = vmatpush1.msra.mxu0 0.0
    %4249 = vmatprep.subr.mxu0 0.0
    %4250 = vmatpush1.msra.mxu0 0.0
    %4251 = vmatprep.mubr.f32.mxu0 0.0
    %v4252 = vand.u32 %v3731, 4294901760
    %4253 = vmatmul.mubr.f32.gmra.mrb[0].mxu0 %v4252
    %v4254 = vpop.f32.mrb[0].mxu0
    %v4255 = vadd.f32 %v4174, %v4254
    %v4256 = vpop.f32.mrb[0].mxu0
    %4257 = vmatprep.mubr.f32.mxu0 0.0
    %v4258 = vand.u32 %v3734, 4294901760
    %4259 = vmatmul.mubr.f32.gmra.mrb[0].mxu0 %v4258
    %v4260 = vpop.f32.mrb[0].mxu0
    %v4261 = vadd.f32 %v4180, %v4260
    %v4262 = vpop.f32.mrb[0].mxu0
    %4263 = vdwg.mxu0
    %v4264 = vadd.f32 %v3212, %v4255
    %v4265 = vadd.f32 %v3213, %v4261
    %s4266 = scalar_lea.vmem [#allocation6], 64
    %v4267 = vld [vmem:[%s4266] sm:$0xff]
    %v4268 = vld [vmem:[%s4266 + $0x8] sm:$0xff]
    %v4270 = vsel %vm64, %v4267, 0
    %v4273 = vsel %vm64, %v4268, 0
    %4275 = vmatprep.subr.mxu0 0.0
    %v4276 = vand.u32 %v60, 4294901760
    %4277 = vmatpush1.msra.mxu0 %v4276
    %4278 = vmatprep.subr.mxu0 0.0
    %v4279 = vand.u32 %v61, 4294901760
    %4280 = vmatpush1.msra.mxu0 %v4279
    %4281 = vmatprep.subr.mxu0 0.0
    %4282 = vmatpush1.msra.mxu0 0.0
    %4283 = vmatprep.subr.mxu0 0.0
    %4284 = vmatpush1.msra.mxu0 0.0
    %4285 = vmatprep.subr.mxu0 0.0
    %4286 = vmatpush1.msra.mxu0 0.0
    %4287 = vmatprep.subr.mxu0 0.0
    %4288 = vmatpush1.msra.mxu0 0.0
    %4289 = vmatprep.subr.mxu0 0.0
    %4290 = vmatpush1.msra.mxu0 0.0
    %4291 = vmatprep.subr.mxu0 0.0
    %4292 = vmatpush1.msra.mxu0 0.0
    %4293 = vmatprep.subr.mxu0 0.0
    %4294 = vmatpush1.msra.mxu0 0.0
    %4295 = vmatprep.subr.mxu0 0.0
    %4296 = vmatpush1.msra.mxu0 0.0
    %4297 = vmatprep.subr.mxu0 0.0
    %4298 = vmatpush1.msra.mxu0 0.0
    %4299 = vmatprep.subr.mxu0 0.0
    %4300 = vmatpush1.msra.mxu0 0.0
    %4301 = vmatprep.subr.mxu0 0.0
    %4302 = vmatpush1.msra.mxu0 0.0
    %4303 = vmatprep.subr.mxu0 0.0
    %4304 = vmatpush1.msra.mxu0 0.0
    %4305 = vmatprep.subr.mxu0 0.0
    %4306 = vmatpush1.msra.mxu0 0.0
    %4307 = vmatprep.subr.mxu0 0.0
    %4308 = vmatpush1.msra.mxu0 0.0
    %4309 = vmatprep.subr.mxu0 0.0
    %4310 = vmatpush1.msra.mxu0 0.0
    %4311 = vmatprep.subr.mxu0 0.0
    %4312 = vmatpush1.msra.mxu0 0.0
    %4313 = vmatprep.subr.mxu0 0.0
    %4314 = vmatpush1.msra.mxu0 0.0
    %4315 = vmatprep.subr.mxu0 0.0
    %4316 = vmatpush1.msra.mxu0 0.0
    %4317 = vmatprep.subr.mxu0 0.0
    %4318 = vmatpush1.msra.mxu0 0.0
    %4319 = vmatprep.subr.mxu0 0.0
    %4320 = vmatpush1.msra.mxu0 0.0
    %4321 = vmatprep.subr.mxu0 0.0
    %4322 = vmatpush1.msra.mxu0 0.0
    %4323 = vmatprep.subr.mxu0 0.0
    %4324 = vmatpush1.msra.mxu0 0.0
    %4325 = vmatprep.subr.mxu0 0.0
    %4326 = vmatpush1.msra.mxu0 0.0
    %4327 = vmatprep.subr.mxu0 0.0
    %4328 = vmatpush1.msra.mxu0 0.0
    %4329 = vmatprep.subr.mxu0 0.0
    %4330 = vmatpush1.msra.mxu0 0.0
    %4331 = vmatprep.subr.mxu0 0.0
    %4332 = vmatpush1.msra.mxu0 0.0
    %4333 = vmatprep.subr.mxu0 0.0
    %4334 = vmatpush1.msra.mxu0 0.0
    %4335 = vmatprep.subr.mxu0 0.0
    %4336 = vmatpush1.msra.mxu0 0.0
    %4337 = vmatprep.subr.mxu0 0.0
    %4338 = vmatpush1.msra.mxu0 0.0
    %4339 = vmatprep.subr.mxu0 0.0
    %4340 = vmatpush1.msra.mxu0 0.0
    %4341 = vmatprep.mubr.f32.mxu0 0.0
    %v4342 = vand.u32 %v4270, 4294901760
    %v4343 = vsub.f32 %v4270, %v4342
    %v4344 = vand.u32 %v4343, 4294901760
    %v4345 = vsub.f32 %v4343, %v4344
    %v4346 = vand.u32 %v4345, 4294901760
    %4347 = vmatmul.mubr.f32.gmra.mrb[0].mxu0 %v4346
    %v4348 = vpop.f32.mrb[0].mxu0
    %v4349 = vadd.f32 0.0, %v4348
    %v4350 = vpop.f32.mrb[0].mxu0
    %4351 = vmatprep.mubr.f32.mxu0 0.0
    %v4352 = vand.u32 %v4273, 4294901760
    %v4353 = vsub.f32 %v4273, %v4352
    %v4354 = vand.u32 %v4353, 4294901760
    %v4355 = vsub.f32 %v4353, %v4354
    %v4356 = vand.u32 %v4355, 4294901760
    %4357 = vmatmul.mubr.f32.gmra.mrb[0].mxu0 %v4356
    %v4358 = vpop.f32.mrb[0].mxu0
    %v4359 = vadd.f32 0.0, %v4358
    %v4360 = vpop.f32.mrb[0].mxu0
    %4361 = vdwg.mxu0
    %4362 = vmatprep.subr.mxu0 0.0
    %v4363 = vand.u32 %v60, 4294901760
    %v4364 = vsub.f32 %v60, %v4363
    %v4365 = vand.u32 %v4364, 4294901760
    %v4366 = vsub.f32 %v4364, %v4365
    %v4367 = vand.u32 %v4366, 4294901760
    %4368 = vmatpush1.msra.mxu0 %v4367
    %4369 = vmatprep.subr.mxu0 0.0
    %v4370 = vand.u32 %v61, 4294901760
    %v4371 = vsub.f32 %v61, %v4370
    %v4372 = vand.u32 %v4371, 4294901760
    %v4373 = vsub.f32 %v4371, %v4372
    %v4374 = vand.u32 %v4373, 4294901760
    %4375 = vmatpush1.msra.mxu0 %v4374
    %4376 = vmatprep.subr.mxu0 0.0
    %4377 = vmatpush1.msra.mxu0 0.0
    %4378 = vmatprep.subr.mxu0 0.0
    %4379 = vmatpush1.msra.mxu0 0.0
    %4380 = vmatprep.subr.mxu0 0.0
    %4381 = vmatpush1.msra.mxu0 0.0
    %4382 = vmatprep.subr.mxu0 0.0
    %4383 = vmatpush1.msra.mxu0 0.0
    %4384 = vmatprep.subr.mxu0 0.0
    %4385 = vmatpush1.msra.mxu0 0.0
    %4386 = vmatprep.subr.mxu0 0.0
    %4387 = vmatpush1.msra.mxu0 0.0
    %4388 = vmatprep.subr.mxu0 0.0
    %4389 = vmatpush1.msra.mxu0 0.0
    %4390 = vmatprep.subr.mxu0 0.0
    %4391 = vmatpush1.msra.mxu0 0.0
    %4392 = vmatprep.subr.mxu0 0.0
    %4393 = vmatpush1.msra.mxu0 0.0
    %4394 = vmatprep.subr.mxu0 0.0
    %4395 = vmatpush1.msra.mxu0 0.0
    %4396 = vmatprep.subr.mxu0 0.0
    %4397 = vmatpush1.msra.mxu0 0.0
    %4398 = vmatprep.subr.mxu0 0.0
    %4399 = vmatpush1.msra.mxu0 0.0
    %4400 = vmatprep.subr.mxu0 0.0
    %4401 = vmatpush1.msra.mxu0 0.0
    %4402 = vmatprep.subr.mxu0 0.0
    %4403 = vmatpush1.msra.mxu0 0.0
    %4404 = vmatprep.subr.mxu0 0.0
    %4405 = vmatpush1.msra.mxu0 0.0
    %4406 = vmatprep.subr.mxu0 0.0
    %4407 = vmatpush1.msra.mxu0 0.0
    %4408 = vmatprep.subr.mxu0 0.0
    %4409 = vmatpush1.msra.mxu0 0.0
    %4410 = vmatprep.subr.mxu0 0.0
    %4411 = vmatpush1.msra.mxu0 0.0
    %4412 = vmatprep.subr.mxu0 0.0
    %4413 = vmatpush1.msra.mxu0 0.0
    %4414 = vmatprep.subr.mxu0 0.0
    %4415 = vmatpush1.msra.mxu0 0.0
    %4416 = vmatprep.subr.mxu0 0.0
    %4417 = vmatpush1.msra.mxu0 0.0
    %4418 = vmatprep.subr.mxu0 0.0
    %4419 = vmatpush1.msra.mxu0 0.0
    %4420 = vmatprep.subr.mxu0 0.0
    %4421 = vmatpush1.msra.mxu0 0.0
    %4422 = vmatprep.subr.mxu0 0.0
    %4423 = vmatpush1.msra.mxu0 0.0
    %4424 = vmatprep.subr.mxu0 0.0
    %4425 = vmatpush1.msra.mxu0 0.0
    %4426 = vmatprep.subr.mxu0 0.0
    %4427 = vmatpush1.msra.mxu0 0.0
    %4428 = vmatprep.subr.mxu0 0.0
    %4429 = vmatpush1.msra.mxu0 0.0
    %4430 = vmatprep.subr.mxu0 0.0
    %4431 = vmatpush1.msra.mxu0 0.0
    %4432 = vmatprep.subr.mxu0 0.0
    %4433 = vmatpush1.msra.mxu0 0.0
    %4434 = vmatprep.subr.mxu0 0.0
    %4435 = vmatpush1.msra.mxu0 0.0
    %4436 = vmatprep.mubr.f32.mxu0 0.0
    %v4437 = vand.u32 %v4270, 4294901760
    %4438 = vmatmul.mubr.f32.gmra.mrb[0].mxu0 %v4437
    %v4439 = vpop.f32.mrb[0].mxu0
    %v4440 = vadd.f32 %v4349, %v4439
    %v4441 = vpop.f32.mrb[0].mxu0
    %4442 = vmatprep.mubr.f32.mxu0 0.0
    %v4443 = vand.u32 %v4273, 4294901760
    %4444 = vmatmul.mubr.f32.gmra.mrb[0].mxu0 %v4443
    %v4445 = vpop.f32.mrb[0].mxu0
    %v4446 = vadd.f32 %v4359, %v4445
    %v4447 = vpop.f32.mrb[0].mxu0
    %4448 = vdwg.mxu0
    %4449 = vmatprep.subr.mxu0 0.0
    %v4450 = vand.u32 %v60, 4294901760
    %v4451 = vsub.f32 %v60, %v4450
    %4452 = vmatpush1.msra.mxu0 %v4451
    %4453 = vmatprep.subr.mxu0 0.0
    %v4454 = vand.u32 %v61, 4294901760
    %v4455 = vsub.f32 %v61, %v4454
    %4456 = vmatpush1.msra.mxu0 %v4455
    %4457 = vmatprep.subr.mxu0 0.0
    %4458 = vmatpush1.msra.mxu0 0.0
    %4459 = vmatprep.subr.mxu0 0.0
    %4460 = vmatpush1.msra.mxu0 0.0
    %4461 = vmatprep.subr.mxu0 0.0
    %4462 = vmatpush1.msra.mxu0 0.0
    %4463 = vmatprep.subr.mxu0 0.0
    %4464 = vmatpush1.msra.mxu0 0.0
    %4465 = vmatprep.subr.mxu0 0.0
    %4466 = vmatpush1.msra.mxu0 0.0
    %4467 = vmatprep.subr.mxu0 0.0
    %4468 = vmatpush1.msra.mxu0 0.0
    %4469 = vmatprep.subr.mxu0 0.0
    %4470 = vmatpush1.msra.mxu0 0.0
    %4471 = vmatprep.subr.mxu0 0.0
    %4472 = vmatpush1.msra.mxu0 0.0
    %4473 = vmatprep.subr.mxu0 0.0
    %4474 = vmatpush1.msra.mxu0 0.0
    %4475 = vmatprep.subr.mxu0 0.0
    %4476 = vmatpush1.msra.mxu0 0.0
    %4477 = vmatprep.subr.mxu0 0.0
    %4478 = vmatpush1.msra.mxu0 0.0
    %4479 = vmatprep.subr.mxu0 0.0
    %4480 = vmatpush1.msra.mxu0 0.0
    %4481 = vmatprep.subr.mxu0 0.0
    %4482 = vmatpush1.msra.mxu0 0.0
    %4483 = vmatprep.subr.mxu0 0.0
    %4484 = vmatpush1.msra.mxu0 0.0
    %4485 = vmatprep.subr.mxu0 0.0
    %4486 = vmatpush1.msra.mxu0 0.0
    %4487 = vmatprep.subr.mxu0 0.0
    %4488 = vmatpush1.msra.mxu0 0.0
    %4489 = vmatprep.subr.mxu0 0.0
    %4490 = vmatpush1.msra.mxu0 0.0
    %4491 = vmatprep.subr.mxu0 0.0
    %4492 = vmatpush1.msra.mxu0 0.0
    %4493 = vmatprep.subr.mxu0 0.0
    %4494 = vmatpush1.msra.mxu0 0.0
    %4495 = vmatprep.subr.mxu0 0.0
    %4496 = vmatpush1.msra.mxu0 0.0
    %4497 = vmatprep.subr.mxu0 0.0
    %4498 = vmatpush1.msra.mxu0 0.0
    %4499 = vmatprep.subr.mxu0 0.0
    %4500 = vmatpush1.msra.mxu0 0.0
    %4501 = vmatprep.subr.mxu0 0.0
    %4502 = vmatpush1.msra.mxu0 0.0
    %4503 = vmatprep.subr.mxu0 0.0
    %4504 = vmatpush1.msra.mxu0 0.0
    %4505 = vmatprep.subr.mxu0 0.0
    %4506 = vmatpush1.msra.mxu0 0.0
    %4507 = vmatprep.subr.mxu0 0.0
    %4508 = vmatpush1.msra.mxu0 0.0
    %4509 = vmatprep.subr.mxu0 0.0
    %4510 = vmatpush1.msra.mxu0 0.0
    %4511 = vmatprep.subr.mxu0 0.0
    %4512 = vmatpush1.msra.mxu0 0.0
    %4513 = vmatprep.subr.mxu0 0.0
    %4514 = vmatpush1.msra.mxu0 0.0
    %4515 = vmatprep.subr.mxu0 0.0
    %4516 = vmatpush1.msra.mxu0 0.0
    %4517 = vmatprep.mubr.f32.mxu0 0.0
    %v4518 = vand.u32 %v4270, 4294901760
    %v4519 = vsub.f32 %v4270, %v4518
    %4520 = vmatmul.mubr.f32.gmra.mrb[0].mxu0 %v4519
    %v4521 = vpop.f32.mrb[0].mxu0
    %v4522 = vadd.f32 %v4440, %v4521
    %v4523 = vpop.f32.mrb[0].mxu0
    %4524 = vmatprep.mubr.f32.mxu0 0.0
    %v4525 = vand.u32 %v4273, 4294901760
    %v4526 = vsub.f32 %v4273, %v4525
    %4527 = vmatmul.mubr.f32.gmra.mrb[0].mxu0 %v4526
    %v4528 = vpop.f32.mrb[0].mxu0
    %v4529 = vadd.f32 %v4446, %v4528
    %v4530 = vpop.f32.mrb[0].mxu0
    %4531 = vdwg.mxu0
    %4532 = vmatprep.subr.mxu0 0.0
    %v4533 = vand.u32 %v60, 4294901760
    %4534 = vmatpush1.msra.mxu0 %v4533
    %4535 = vmatprep.subr.mxu0 0.0
    %v4536 = vand.u32 %v61, 4294901760
    %4537 = vmatpush1.msra.mxu0 %v4536
    %4538 = vmatprep.subr.mxu0 0.0
    %4539 = vmatpush1.msra.mxu0 0.0
    %4540 = vmatprep.subr.mxu0 0.0
    %4541 = vmatpush1.msra.mxu0 0.0
    %4542 = vmatprep.subr.mxu0 0.0
    %4543 = vmatpush1.msra.mxu0 0.0
    %4544 = vmatprep.subr.mxu0 0.0
    %4545 = vmatpush1.msra.mxu0 0.0
    %4546 = vmatprep.subr.mxu0 0.0
    %4547 = vmatpush1.msra.mxu0 0.0
    %4548 = vmatprep.subr.mxu0 0.0
    %4549 = vmatpush1.msra.mxu0 0.0
    %4550 = vmatprep.subr.mxu0 0.0
    %4551 = vmatpush1.msra.mxu0 0.0
    %4552 = vmatprep.subr.mxu0 0.0
    %4553 = vmatpush1.msra.mxu0 0.0
    %4554 = vmatprep.subr.mxu0 0.0
    %4555 = vmatpush1.msra.mxu0 0.0
    %4556 = vmatprep.subr.mxu0 0.0
    %4557 = vmatpush1.msra.mxu0 0.0
    %4558 = vmatprep.subr.mxu0 0.0
    %4559 = vmatpush1.msra.mxu0 0.0
    %4560 = vmatprep.subr.mxu0 0.0
    %4561 = vmatpush1.msra.mxu0 0.0
    %4562 = vmatprep.subr.mxu0 0.0
    %4563 = vmatpush1.msra.mxu0 0.0
    %4564 = vmatprep.subr.mxu0 0.0
    %4565 = vmatpush1.msra.mxu0 0.0
    %4566 = vmatprep.subr.mxu0 0.0
    %4567 = vmatpush1.msra.mxu0 0.0
    %4568 = vmatprep.subr.mxu0 0.0
    %4569 = vmatpush1.msra.mxu0 0.0
    %4570 = vmatprep.subr.mxu0 0.0
    %4571 = vmatpush1.msra.mxu0 0.0
    %4572 = vmatprep.subr.mxu0 0.0
    %4573 = vmatpush1.msra.mxu0 0.0
    %4574 = vmatprep.subr.mxu0 0.0
    %4575 = vmatpush1.msra.mxu0 0.0
    %4576 = vmatprep.subr.mxu0 0.0
    %4577 = vmatpush1.msra.mxu0 0.0
    %4578 = vmatprep.subr.mxu0 0.0
    %4579 = vmatpush1.msra.mxu0 0.0
    %4580 = vmatprep.subr.mxu0 0.0
    %4581 = vmatpush1.msra.mxu0 0.0
    %4582 = vmatprep.subr.mxu0 0.0
    %4583 = vmatpush1.msra.mxu0 0.0
    %4584 = vmatprep.subr.mxu0 0.0
    %4585 = vmatpush1.msra.mxu0 0.0
    %4586 = vmatprep.subr.mxu0 0.0
    %4587 = vmatpush1.msra.mxu0 0.0
    %4588 = vmatprep.subr.mxu0 0.0
    %4589 = vmatpush1.msra.mxu0 0.0
    %4590 = vmatprep.subr.mxu0 0.0
    %4591 = vmatpush1.msra.mxu0 0.0
    %4592 = vmatprep.subr.mxu0 0.0
    %4593 = vmatpush1.msra.mxu0 0.0
    %4594 = vmatprep.subr.mxu0 0.0
    %4595 = vmatpush1.msra.mxu0 0.0
    %4596 = vmatprep.subr.mxu0 0.0
    %4597 = vmatpush1.msra.mxu0 0.0
    %4598 = vmatprep.mubr.f32.mxu0 0.0
    %v4599 = vand.u32 %v4270, 4294901760
    %v4600 = vsub.f32 %v4270, %v4599
    %v4601 = vand.u32 %v4600, 4294901760
    %4602 = vmatmul.mubr.f32.gmra.mrb[0].mxu0 %v4601
    %v4603 = vpop.f32.mrb[0].mxu0
    %v4604 = vadd.f32 %v4522, %v4603
    %v4605 = vpop.f32.mrb[0].mxu0
    %4606 = vmatprep.mubr.f32.mxu0 0.0
    %v4607 = vand.u32 %v4273, 4294901760
    %v4608 = vsub.f32 %v4273, %v4607
    %v4609 = vand.u32 %v4608, 4294901760
    %4610 = vmatmul.mubr.f32.gmra.mrb[0].mxu0 %v4609
    %v4611 = vpop.f32.mrb[0].mxu0
    %v4612 = vadd.f32 %v4529, %v4611
    %v4613 = vpop.f32.mrb[0].mxu0
    %4614 = vdwg.mxu0
    %4615 = vmatprep.subr.mxu0 0.0
    %v4616 = vand.u32 %v60, 4294901760
    %v4617 = vsub.f32 %v60, %v4616
    %v4618 = vand.u32 %v4617, 4294901760
    %4619 = vmatpush1.msra.mxu0 %v4618
    %4620 = vmatprep.subr.mxu0 0.0
    %v4621 = vand.u32 %v61, 4294901760
    %v4622 = vsub.f32 %v61, %v4621
    %v4623 = vand.u32 %v4622, 4294901760
    %4624 = vmatpush1.msra.mxu0 %v4623
    %4625 = vmatprep.subr.mxu0 0.0
    %4626 = vmatpush1.msra.mxu0 0.0
    %4627 = vmatprep.subr.mxu0 0.0
    %4628 = vmatpush1.msra.mxu0 0.0
    %4629 = vmatprep.subr.mxu0 0.0
    %4630 = vmatpush1.msra.mxu0 0.0
    %4631 = vmatprep.subr.mxu0 0.0
    %4632 = vmatpush1.msra.mxu0 0.0
    %4633 = vmatprep.subr.mxu0 0.0
    %4634 = vmatpush1.msra.mxu0 0.0
    %4635 = vmatprep.subr.mxu0 0.0
    %4636 = vmatpush1.msra.mxu0 0.0
    %4637 = vmatprep.subr.mxu0 0.0
    %4638 = vmatpush1.msra.mxu0 0.0
    %4639 = vmatprep.subr.mxu0 0.0
    %4640 = vmatpush1.msra.mxu0 0.0
    %4641 = vmatprep.subr.mxu0 0.0
    %4642 = vmatpush1.msra.mxu0 0.0
    %4643 = vmatprep.subr.mxu0 0.0
    %4644 = vmatpush1.msra.mxu0 0.0
    %4645 = vmatprep.subr.mxu0 0.0
    %4646 = vmatpush1.msra.mxu0 0.0
    %4647 = vmatprep.subr.mxu0 0.0
    %4648 = vmatpush1.msra.mxu0 0.0
    %4649 = vmatprep.subr.mxu0 0.0
    %4650 = vmatpush1.msra.mxu0 0.0
    %4651 = vmatprep.subr.mxu0 0.0
    %4652 = vmatpush1.msra.mxu0 0.0
    %4653 = vmatprep.subr.mxu0 0.0
    %4654 = vmatpush1.msra.mxu0 0.0
    %4655 = vmatprep.subr.mxu0 0.0
    %4656 = vmatpush1.msra.mxu0 0.0
    %4657 = vmatprep.subr.mxu0 0.0
    %4658 = vmatpush1.msra.mxu0 0.0
    %4659 = vmatprep.subr.mxu0 0.0
    %4660 = vmatpush1.msra.mxu0 0.0
    %4661 = vmatprep.subr.mxu0 0.0
    %4662 = vmatpush1.msra.mxu0 0.0
    %4663 = vmatprep.subr.mxu0 0.0
    %4664 = vmatpush1.msra.mxu0 0.0
    %4665 = vmatprep.subr.mxu0 0.0
    %4666 = vmatpush1.msra.mxu0 0.0
    %4667 = vmatprep.subr.mxu0 0.0
    %4668 = vmatpush1.msra.mxu0 0.0
    %4669 = vmatprep.subr.mxu0 0.0
    %4670 = vmatpush1.msra.mxu0 0.0
    %4671 = vmatprep.subr.mxu0 0.0
    %4672 = vmatpush1.msra.mxu0 0.0
    %4673 = vmatprep.subr.mxu0 0.0
    %4674 = vmatpush1.msra.mxu0 0.0
    %4675 = vmatprep.subr.mxu0 0.0
    %4676 = vmatpush1.msra.mxu0 0.0
    %4677 = vmatprep.subr.mxu0 0.0
    %4678 = vmatpush1.msra.mxu0 0.0
    %4679 = vmatprep.subr.mxu0 0.0
    %4680 = vmatpush1.msra.mxu0 0.0
    %4681 = vmatprep.subr.mxu0 0.0
    %4682 = vmatpush1.msra.mxu0 0.0
    %4683 = vmatprep.subr.mxu0 0.0
    %4684 = vmatpush1.msra.mxu0 0.0
    %4685 = vmatprep.mubr.f32.mxu0 0.0
    %v4686 = vand.u32 %v4270, 4294901760
    %4687 = vmatmul.mubr.f32.gmra.mrb[0].mxu0 %v4686
    %v4688 = vpop.f32.mrb[0].mxu0
    %v4689 = vadd.f32 %v4604, %v4688
    %v4690 = vpop.f32.mrb[0].mxu0
    %4691 = vmatprep.mubr.f32.mxu0 0.0
    %v4692 = vand.u32 %v4273, 4294901760
    %4693 = vmatmul.mubr.f32.gmra.mrb[0].mxu0 %v4692
    %v4694 = vpop.f32.mrb[0].mxu0
    %v4695 = vadd.f32 %v4612, %v4694
    %v4696 = vpop.f32.mrb[0].mxu0
    %4697 = vdwg.mxu0
    %4698 = vmatprep.subr.mxu0 0.0
    %v4699 = vand.u32 %v60, 4294901760
    %4700 = vmatpush1.msra.mxu0 %v4699
    %4701 = vmatprep.subr.mxu0 0.0
    %v4702 = vand.u32 %v61, 4294901760
    %4703 = vmatpush1.msra.mxu0 %v4702
    %4704 = vmatprep.subr.mxu0 0.0
    %4705 = vmatpush1.msra.mxu0 0.0
    %4706 = vmatprep.subr.mxu0 0.0
    %4707 = vmatpush1.msra.mxu0 0.0
    %4708 = vmatprep.subr.mxu0 0.0
    %4709 = vmatpush1.msra.mxu0 0.0
    %4710 = vmatprep.subr.mxu0 0.0
    %4711 = vmatpush1.msra.mxu0 0.0
    %4712 = vmatprep.subr.mxu0 0.0
    %4713 = vmatpush1.msra.mxu0 0.0
    %4714 = vmatprep.subr.mxu0 0.0
    %4715 = vmatpush1.msra.mxu0 0.0
    %4716 = vmatprep.subr.mxu0 0.0
    %4717 = vmatpush1.msra.mxu0 0.0
    %4718 = vmatprep.subr.mxu0 0.0
    %4719 = vmatpush1.msra.mxu0 0.0
    %4720 = vmatprep.subr.mxu0 0.0
    %4721 = vmatpush1.msra.mxu0 0.0
    %4722 = vmatprep.subr.mxu0 0.0
    %4723 = vmatpush1.msra.mxu0 0.0
    %4724 = vmatprep.subr.mxu0 0.0
    %4725 = vmatpush1.msra.mxu0 0.0
    %4726 = vmatprep.subr.mxu0 0.0
    %4727 = vmatpush1.msra.mxu0 0.0
    %4728 = vmatprep.subr.mxu0 0.0
    %4729 = vmatpush1.msra.mxu0 0.0
    %4730 = vmatprep.subr.mxu0 0.0
    %4731 = vmatpush1.msra.mxu0 0.0
    %4732 = vmatprep.subr.mxu0 0.0
    %4733 = vmatpush1.msra.mxu0 0.0
    %4734 = vmatprep.subr.mxu0 0.0
    %4735 = vmatpush1.msra.mxu0 0.0
    %4736 = vmatprep.subr.mxu0 0.0
    %4737 = vmatpush1.msra.mxu0 0.0
    %4738 = vmatprep.subr.mxu0 0.0
    %4739 = vmatpush1.msra.mxu0 0.0
    %4740 = vmatprep.subr.mxu0 0.0
    %4741 = vmatpush1.msra.mxu0 0.0
    %4742 = vmatprep.subr.mxu0 0.0
    %4743 = vmatpush1.msra.mxu0 0.0
    %4744 = vmatprep.subr.mxu0 0.0
    %4745 = vmatpush1.msra.mxu0 0.0
    %4746 = vmatprep.subr.mxu0 0.0
    %4747 = vmatpush1.msra.mxu0 0.0
    %4748 = vmatprep.subr.mxu0 0.0
    %4749 = vmatpush1.msra.mxu0 0.0
    %4750 = vmatprep.subr.mxu0 0.0
    %4751 = vmatpush1.msra.mxu0 0.0
    %4752 = vmatprep.subr.mxu0 0.0
    %4753 = vmatpush1.msra.mxu0 0.0
    %4754 = vmatprep.subr.mxu0 0.0
    %4755 = vmatpush1.msra.mxu0 0.0
    %4756 = vmatprep.subr.mxu0 0.0
    %4757 = vmatpush1.msra.mxu0 0.0
    %4758 = vmatprep.subr.mxu0 0.0
    %4759 = vmatpush1.msra.mxu0 0.0
    %4760 = vmatprep.subr.mxu0 0.0
    %4761 = vmatpush1.msra.mxu0 0.0
    %4762 = vmatprep.subr.mxu0 0.0
    %4763 = vmatpush1.msra.mxu0 0.0
    %4764 = vmatprep.mubr.f32.mxu0 0.0
    %v4765 = vand.u32 %v4270, 4294901760
    %4766 = vmatmul.mubr.f32.gmra.mrb[0].mxu0 %v4765
    %v4767 = vpop.f32.mrb[0].mxu0
    %v4768 = vadd.f32 %v4689, %v4767
    %v4769 = vpop.f32.mrb[0].mxu0
    %4770 = vmatprep.mubr.f32.mxu0 0.0
    %v4771 = vand.u32 %v4273, 4294901760
    %4772 = vmatmul.mubr.f32.gmra.mrb[0].mxu0 %v4771
    %v4773 = vpop.f32.mrb[0].mxu0
    %v4774 = vadd.f32 %v4695, %v4773
    %v4775 = vpop.f32.mrb[0].mxu0
    %4776 = vdwg.mxu0
    %s4777 = scalar_lea.vmem [#allocation8], 128
    %v4778 = vld [vmem:[%s4777] sm:$0xff]
    %v4779 = vld [vmem:[%s4777 + $0x8] sm:$0xff]
    %v4780 = vld [vmem:[%s4777 + $0x10] sm:$0xff]
    %v4781 = vld [vmem:[%s4777 + $0x18] sm:$0xff]
    %v4783 = vsel %vm1093, %v4768, 0
    %v4786 = vsel %vm1093, %v4774, 0
    %4788 = vmatprep.subr.mxu0 0.0
    %v4789 = vand.u32 %v4778, 4294901760
    %4790 = vmatpush1.msra.mxu0 %v4789
    %4791 = vmatprep.subr.mxu0 0.0
    %v4792 = vand.u32 %v4779, 4294901760
    %4793 = vmatpush1.msra.mxu0 %v4792
    %4794 = vmatprep.subr.mxu0 0.0
    %v4795 = vand.u32 %v4780, 4294901760
    %4796 = vmatpush1.msra.mxu0 %v4795
    %4797 = vmatprep.subr.mxu0 0.0
    %v4798 = vand.u32 %v4781, 4294901760
    %4799 = vmatpush1.msra.mxu0 %v4798
    %4800 = vmatprep.subr.mxu0 0.0
    %4801 = vmatpush1.msra.mxu0 0.0
    %4802 = vmatprep.subr.mxu0 0.0
    %4803 = vmatpush1.msra.mxu0 0.0
    %4804 = vmatprep.subr.mxu0 0.0
    %4805 = vmatpush1.msra.mxu0 0.0
    %4806 = vmatprep.subr.mxu0 0.0
    %4807 = vmatpush1.msra.mxu0 0.0
    %4808 = vmatprep.subr.mxu0 0.0
    %4809 = vmatpush1.msra.mxu0 0.0
    %4810 = vmatprep.subr.mxu0 0.0
    %4811 = vmatpush1.msra.mxu0 0.0
    %4812 = vmatprep.subr.mxu0 0.0
    %4813 = vmatpush1.msra.mxu0 0.0
    %4814 = vmatprep.subr.mxu0 0.0
    %4815 = vmatpush1.msra.mxu0 0.0
    %4816 = vmatprep.subr.mxu0 0.0
    %4817 = vmatpush1.msra.mxu0 0.0
    %4818 = vmatprep.subr.mxu0 0.0
    %4819 = vmatpush1.msra.mxu0 0.0
    %4820 = vmatprep.subr.mxu0 0.0
    %4821 = vmatpush1.msra.mxu0 0.0
    %4822 = vmatprep.subr.mxu0 0.0
    %4823 = vmatpush1.msra.mxu0 0.0
    %4824 = vmatprep.subr.mxu0 0.0
    %4825 = vmatpush1.msra.mxu0 0.0
    %4826 = vmatprep.subr.mxu0 0.0
    %4827 = vmatpush1.msra.mxu0 0.0
    %4828 = vmatprep.subr.mxu0 0.0
    %4829 = vmatpush1.msra.mxu0 0.0
    %4830 = vmatprep.subr.mxu0 0.0
    %4831 = vmatpush1.msra.mxu0 0.0
    %4832 = vmatprep.subr.mxu0 0.0
    %4833 = vmatpush1.msra.mxu0 0.0
    %4834 = vmatprep.subr.mxu0 0.0
    %4835 = vmatpush1.msra.mxu0 0.0
    %4836 = vmatprep.subr.mxu0 0.0
    %4837 = vmatpush1.msra.mxu0 0.0
    %4838 = vmatprep.subr.mxu0 0.0
    %4839 = vmatpush1.msra.mxu0 0.0
    %4840 = vmatprep.subr.mxu0 0.0
    %4841 = vmatpush1.msra.mxu0 0.0
    %4842 = vmatprep.subr.mxu0 0.0
    %4843 = vmatpush1.msra.mxu0 0.0
    %4844 = vmatprep.subr.mxu0 0.0
    %4845 = vmatpush1.msra.mxu0 0.0
    %4846 = vmatprep.subr.mxu0 0.0
    %4847 = vmatpush1.msra.mxu0 0.0
    %4848 = vmatprep.subr.mxu0 0.0
    %4849 = vmatpush1.msra.mxu0 0.0
    %4850 = vmatprep.subr.mxu0 0.0
    %4851 = vmatpush1.msra.mxu0 0.0
    %4852 = vmatprep.subr.mxu0 0.0
    %4853 = vmatpush1.msra.mxu0 0.0
    %4854 = vmatprep.subr.mxu0 0.0
    %4855 = vmatpush1.msra.mxu0 0.0
    %4856 = vmatprep.mubr.f32.mxu0 0.0
    %v4857 = vand.u32 %v4783, 4294901760
    %v4858 = vsub.f32 %v4783, %v4857
    %v4859 = vand.u32 %v4858, 4294901760
    %v4860 = vsub.f32 %v4858, %v4859
    %v4861 = vand.u32 %v4860, 4294901760
    %4862 = vmatmul.mubr.f32.gmra.mrb[0].mxu0 %v4861
    %v4863 = vpop.f32.mrb[0].mxu0
    %v4864 = vadd.f32 0.0, %v4863
    %v4865 = vpop.f32.mrb[0].mxu0
    %4866 = vmatprep.mubr.f32.mxu0 0.0
    %v4867 = vand.u32 %v4786, 4294901760
    %v4868 = vsub.f32 %v4786, %v4867
    %v4869 = vand.u32 %v4868, 4294901760
    %v4870 = vsub.f32 %v4868, %v4869
    %v4871 = vand.u32 %v4870, 4294901760
    %4872 = vmatmul.mubr.f32.gmra.mrb[0].mxu0 %v4871
    %v4873 = vpop.f32.mrb[0].mxu0
    %v4874 = vadd.f32 0.0, %v4873
    %v4875 = vpop.f32.mrb[0].mxu0
    %4876 = vdwg.mxu0
    %4877 = vmatprep.subr.mxu0 0.0
    %v4878 = vand.u32 %v4778, 4294901760
    %v4879 = vsub.f32 %v4778, %v4878
    %v4880 = vand.u32 %v4879, 4294901760
    %v4881 = vsub.f32 %v4879, %v4880
    %v4882 = vand.u32 %v4881, 4294901760
    %4883 = vmatpush1.msra.mxu0 %v4882
    %4884 = vmatprep.subr.mxu0 0.0
    %v4885 = vand.u32 %v4779, 4294901760
    %v4886 = vsub.f32 %v4779, %v4885
    %v4887 = vand.u32 %v4886, 4294901760
    %v4888 = vsub.f32 %v4886, %v4887
    %v4889 = vand.u32 %v4888, 4294901760
    %4890 = vmatpush1.msra.mxu0 %v4889
    %4891 = vmatprep.subr.mxu0 0.0
    %v4892 = vand.u32 %v4780, 4294901760
    %v4893 = vsub.f32 %v4780, %v4892
    %v4894 = vand.u32 %v4893, 4294901760
    %v4895 = vsub.f32 %v4893, %v4894
    %v4896 = vand.u32 %v4895, 4294901760
    %4897 = vmatpush1.msra.mxu0 %v4896
    %4898 = vmatprep.subr.mxu0 0.0
    %v4899 = vand.u32 %v4781, 4294901760
    %v4900 = vsub.f32 %v4781, %v4899
    %v4901 = vand.u32 %v4900, 4294901760
    %v4902 = vsub.f32 %v4900, %v4901
    %v4903 = vand.u32 %v4902, 4294901760
    %4904 = vmatpush1.msra.mxu0 %v4903
    %4905 = vmatprep.subr.mxu0 0.0
    %4906 = vmatpush1.msra.mxu0 0.0
    %4907 = vmatprep.subr.mxu0 0.0
    %4908 = vmatpush1.msra.mxu0 0.0
    %4909 = vmatprep.subr.mxu0 0.0
    %4910 = vmatpush1.msra.mxu0 0.0
    %4911 = vmatprep.subr.mxu0 0.0
    %4912 = vmatpush1.msra.mxu0 0.0
    %4913 = vmatprep.subr.mxu0 0.0
    %4914 = vmatpush1.msra.mxu0 0.0
    %4915 = vmatprep.subr.mxu0 0.0
    %4916 = vmatpush1.msra.mxu0 0.0
    %4917 = vmatprep.subr.mxu0 0.0
    %4918 = vmatpush1.msra.mxu0 0.0
    %4919 = vmatprep.subr.mxu0 0.0
    %4920 = vmatpush1.msra.mxu0 0.0
    %4921 = vmatprep.subr.mxu0 0.0
    %4922 = vmatpush1.msra.mxu0 0.0
    %4923 = vmatprep.subr.mxu0 0.0
    %4924 = vmatpush1.msra.mxu0 0.0
    %4925 = vmatprep.subr.mxu0 0.0
    %4926 = vmatpush1.msra.mxu0 0.0
    %4927 = vmatprep.subr.mxu0 0.0
    %4928 = vmatpush1.msra.mxu0 0.0
    %4929 = vmatprep.subr.mxu0 0.0
    %4930 = vmatpush1.msra.mxu0 0.0
    %4931 = vmatprep.subr.mxu0 0.0
    %4932 = vmatpush1.msra.mxu0 0.0
    %4933 = vmatprep.subr.mxu0 0.0
    %4934 = vmatpush1.msra.mxu0 0.0
    %4935 = vmatprep.subr.mxu0 0.0
    %4936 = vmatpush1.msra.mxu0 0.0
    %4937 = vmatprep.subr.mxu0 0.0
    %4938 = vmatpush1.msra.mxu0 0.0
    %4939 = vmatprep.subr.mxu0 0.0
    %4940 = vmatpush1.msra.mxu0 0.0
    %4941 = vmatprep.subr.mxu0 0.0
    %4942 = vmatpush1.msra.mxu0 0.0
    %4943 = vmatprep.subr.mxu0 0.0
    %4944 = vmatpush1.msra.mxu0 0.0
    %4945 = vmatprep.subr.mxu0 0.0
    %4946 = vmatpush1.msra.mxu0 0.0
    %4947 = vmatprep.subr.mxu0 0.0
    %4948 = vmatpush1.msra.mxu0 0.0
    %4949 = vmatprep.subr.mxu0 0.0
    %4950 = vmatpush1.msra.mxu0 0.0
    %4951 = vmatprep.subr.mxu0 0.0
    %4952 = vmatpush1.msra.mxu0 0.0
    %4953 = vmatprep.subr.mxu0 0.0
    %4954 = vmatpush1.msra.mxu0 0.0
    %4955 = vmatprep.subr.mxu0 0.0
    %4956 = vmatpush1.msra.mxu0 0.0
    %4957 = vmatprep.subr.mxu0 0.0
    %4958 = vmatpush1.msra.mxu0 0.0
    %4959 = vmatprep.subr.mxu0 0.0
    %4960 = vmatpush1.msra.mxu0 0.0
    %4961 = vmatprep.mubr.f32.mxu0 0.0
    %v4962 = vand.u32 %v4783, 4294901760
    %4963 = vmatmul.mubr.f32.gmra.mrb[0].mxu0 %v4962
    %v4964 = vpop.f32.mrb[0].mxu0
    %v4965 = vadd.f32 %v4864, %v4964
    %v4966 = vpop.f32.mrb[0].mxu0
    %4967 = vmatprep.mubr.f32.mxu0 0.0
    %v4968 = vand.u32 %v4786, 4294901760
    %4969 = vmatmul.mubr.f32.gmra.mrb[0].mxu0 %v4968
    %v4970 = vpop.f32.mrb[0].mxu0
    %v4971 = vadd.f32 %v4874, %v4970
    %v4972 = vpop.f32.mrb[0].mxu0
    %4973 = vdwg.mxu0
    %4974 = vmatprep.subr.mxu0 0.0
    %v4975 = vand.u32 %v4778, 4294901760
    %v4976 = vsub.f32 %v4778, %v4975
    %4977 = vmatpush1.msra.mxu0 %v4976
    %4978 = vmatprep.subr.mxu0 0.0
    %v4979 = vand.u32 %v4779, 4294901760
    %v4980 = vsub.f32 %v4779, %v4979
    %4981 = vmatpush1.msra.mxu0 %v4980
    %4982 = vmatprep.subr.mxu0 0.0
    %v4983 = vand.u32 %v4780, 4294901760
    %v4984 = vsub.f32 %v4780, %v4983
    %4985 = vmatpush1.msra.mxu0 %v4984
    %4986 = vmatprep.subr.mxu0 0.0
    %v4987 = vand.u32 %v4781, 4294901760
    %v4988 = vsub.f32 %v4781, %v4987
    %4989 = vmatpush1.msra.mxu0 %v4988
    %4990 = vmatprep.subr.mxu0 0.0
    %4991 = vmatpush1.msra.mxu0 0.0
    %4992 = vmatprep.subr.mxu0 0.0
    %4993 = vmatpush1.msra.mxu0 0.0
    %4994 = vmatprep.subr.mxu0 0.0
    %4995 = vmatpush1.msra.mxu0 0.0
    %4996 = vmatprep.subr.mxu0 0.0
    %4997 = vmatpush1.msra.mxu0 0.0
    %4998 = vmatprep.subr.mxu0 0.0
    %4999 = vmatpush1.msra.mxu0 0.0
    %5000 = vmatprep.subr.mxu0 0.0
    %5001 = vmatpush1.msra.mxu0 0.0
    %5002 = vmatprep.subr.mxu0 0.0
    %5003 = vmatpush1.msra.mxu0 0.0
    %5004 = vmatprep.subr.mxu0 0.0
    %5005 = vmatpush1.msra.mxu0 0.0
    %5006 = vmatprep.subr.mxu0 0.0
    %5007 = vmatpush1.msra.mxu0 0.0
    %5008 = vmatprep.subr.mxu0 0.0
    %5009 = vmatpush1.msra.mxu0 0.0
    %5010 = vmatprep.subr.mxu0 0.0
    %5011 = vmatpush1.msra.mxu0 0.0
    %5012 = vmatprep.subr.mxu0 0.0
    %5013 = vmatpush1.msra.mxu0 0.0
    %5014 = vmatprep.subr.mxu0 0.0
    %5015 = vmatpush1.msra.mxu0 0.0
    %5016 = vmatprep.subr.mxu0 0.0
    %5017 = vmatpush1.msra.mxu0 0.0
    %5018 = vmatprep.subr.mxu0 0.0
    %5019 = vmatpush1.msra.mxu0 0.0
    %5020 = vmatprep.subr.mxu0 0.0
    %5021 = vmatpush1.msra.mxu0 0.0
    %5022 = vmatprep.subr.mxu0 0.0
    %5023 = vmatpush1.msra.mxu0 0.0
    %5024 = vmatprep.subr.mxu0 0.0
    %5025 = vmatpush1.msra.mxu0 0.0
    %5026 = vmatprep.subr.mxu0 0.0
    %5027 = vmatpush1.msra.mxu0 0.0
    %5028 = vmatprep.subr.mxu0 0.0
    %5029 = vmatpush1.msra.mxu0 0.0
    %5030 = vmatprep.subr.mxu0 0.0
    %5031 = vmatpush1.msra.mxu0 0.0
    %5032 = vmatprep.subr.mxu0 0.0
    %5033 = vmatpush1.msra.mxu0 0.0
    %5034 = vmatprep.subr.mxu0 0.0
    %5035 = vmatpush1.msra.mxu0 0.0
    %5036 = vmatprep.subr.mxu0 0.0
    %5037 = vmatpush1.msra.mxu0 0.0
    %5038 = vmatprep.subr.mxu0 0.0
    %5039 = vmatpush1.msra.mxu0 0.0
    %5040 = vmatprep.subr.mxu0 0.0
    %5041 = vmatpush1.msra.mxu0 0.0
    %5042 = vmatprep.subr.mxu0 0.0
    %5043 = vmatpush1.msra.mxu0 0.0
    %5044 = vmatprep.subr.mxu0 0.0
    %5045 = vmatpush1.msra.mxu0 0.0
    %5046 = vmatprep.mubr.f32.mxu0 0.0
    %v5047 = vand.u32 %v4783, 4294901760
    %v5048 = vsub.f32 %v4783, %v5047
    %5049 = vmatmul.mubr.f32.gmra.mrb[0].mxu0 %v5048
    %v5050 = vpop.f32.mrb[0].mxu0
    %v5051 = vadd.f32 %v4965, %v5050
    %v5052 = vpop.f32.mrb[0].mxu0
    %5053 = vmatprep.mubr.f32.mxu0 0.0
    %v5054 = vand.u32 %v4786, 4294901760
    %v5055 = vsub.f32 %v4786, %v5054
    %5056 = vmatmul.mubr.f32.gmra.mrb[0].mxu0 %v5055
    %v5057 = vpop.f32.mrb[0].mxu0
    %v5058 = vadd.f32 %v4971, %v5057
    %v5059 = vpop.f32.mrb[0].mxu0
    %5060 = vdwg.mxu0
    %5061 = vmatprep.subr.mxu0 0.0
    %v5062 = vand.u32 %v4778, 4294901760
    %5063 = vmatpush1.msra.mxu0 %v5062
    %5064 = vmatprep.subr.mxu0 0.0
    %v5065 = vand.u32 %v4779, 4294901760
    %5066 = vmatpush1.msra.mxu0 %v5065
    %5067 = vmatprep.subr.mxu0 0.0
    %v5068 = vand.u32 %v4780, 4294901760
    %5069 = vmatpush1.msra.mxu0 %v5068
    %5070 = vmatprep.subr.mxu0 0.0
    %v5071 = vand.u32 %v4781, 4294901760
    %5072 = vmatpush1.msra.mxu0 %v5071
    %5073 = vmatprep.subr.mxu0 0.0
    %5074 = vmatpush1.msra.mxu0 0.0
    %5075 = vmatprep.subr.mxu0 0.0
    %5076 = vmatpush1.msra.mxu0 0.0
    %5077 = vmatprep.subr.mxu0 0.0
    %5078 = vmatpush1.msra.mxu0 0.0
    %5079 = vmatprep.subr.mxu0 0.0
    %5080 = vmatpush1.msra.mxu0 0.0
    %5081 = vmatprep.subr.mxu0 0.0
    %5082 = vmatpush1.msra.mxu0 0.0
    %5083 = vmatprep.subr.mxu0 0.0
    %5084 = vmatpush1.msra.mxu0 0.0
    %5085 = vmatprep.subr.mxu0 0.0
    %5086 = vmatpush1.msra.mxu0 0.0
    %5087 = vmatprep.subr.mxu0 0.0
    %5088 = vmatpush1.msra.mxu0 0.0
    %5089 = vmatprep.subr.mxu0 0.0
    %5090 = vmatpush1.msra.mxu0 0.0
    %5091 = vmatprep.subr.mxu0 0.0
    %5092 = vmatpush1.msra.mxu0 0.0
    %5093 = vmatprep.subr.mxu0 0.0
    %5094 = vmatpush1.msra.mxu0 0.0
    %5095 = vmatprep.subr.mxu0 0.0
    %5096 = vmatpush1.msra.mxu0 0.0
    %5097 = vmatprep.subr.mxu0 0.0
    %5098 = vmatpush1.msra.mxu0 0.0
    %5099 = vmatprep.subr.mxu0 0.0
    %5100 = vmatpush1.msra.mxu0 0.0
    %5101 = vmatprep.subr.mxu0 0.0
    %5102 = vmatpush1.msra.mxu0 0.0
    %5103 = vmatprep.subr.mxu0 0.0
    %5104 = vmatpush1.msra.mxu0 0.0
    %5105 = vmatprep.subr.mxu0 0.0
    %5106 = vmatpush1.msra.mxu0 0.0
    %5107 = vmatprep.subr.mxu0 0.0
    %5108 = vmatpush1.msra.mxu0 0.0
    %5109 = vmatprep.subr.mxu0 0.0
    %5110 = vmatpush1.msra.mxu0 0.0
    %5111 = vmatprep.subr.mxu0 0.0
    %5112 = vmatpush1.msra.mxu0 0.0
    %5113 = vmatprep.subr.mxu0 0.0
    %5114 = vmatpush1.msra.mxu0 0.0
    %5115 = vmatprep.subr.mxu0 0.0
    %5116 = vmatpush1.msra.mxu0 0.0
    %5117 = vmatprep.subr.mxu0 0.0
    %5118 = vmatpush1.msra.mxu0 0.0
    %5119 = vmatprep.subr.mxu0 0.0
    %5120 = vmatpush1.msra.mxu0 0.0
    %5121 = vmatprep.subr.mxu0 0.0
    %5122 = vmatpush1.msra.mxu0 0.0
    %5123 = vmatprep.subr.mxu0 0.0
    %5124 = vmatpush1.msra.mxu0 0.0
    %5125 = vmatprep.subr.mxu0 0.0
    %5126 = vmatpush1.msra.mxu0 0.0
    %5127 = vmatprep.subr.mxu0 0.0
    %5128 = vmatpush1.msra.mxu0 0.0
    %5129 = vmatprep.mubr.f32.mxu0 0.0
    %v5130 = vand.u32 %v4783, 4294901760
    %v5131 = vsub.f32 %v4783, %v5130
    %v5132 = vand.u32 %v5131, 4294901760
    %5133 = vmatmul.mubr.f32.gmra.mrb[0].mxu0 %v5132
    %v5134 = vpop.f32.mrb[0].mxu0
    %v5135 = vadd.f32 %v5051, %v5134
    %v5136 = vpop.f32.mrb[0].mxu0
    %5137 = vmatprep.mubr.f32.mxu0 0.0
    %v5138 = vand.u32 %v4786, 4294901760
    %v5139 = vsub.f32 %v4786, %v5138
    %v5140 = vand.u32 %v5139, 4294901760
    %5141 = vmatmul.mubr.f32.gmra.mrb[0].mxu0 %v5140
    %v5142 = vpop.f32.mrb[0].mxu0
    %v5143 = vadd.f32 %v5058, %v5142
    %v5144 = vpop.f32.mrb[0].mxu0
    %5145 = vdwg.mxu0
    %5146 = vmatprep.subr.mxu0 0.0
    %v5147 = vand.u32 %v4778, 4294901760
    %v5148 = vsub.f32 %v4778, %v5147
    %v5149 = vand.u32 %v5148, 4294901760
    %5150 = vmatpush1.msra.mxu0 %v5149
    %5151 = vmatprep.subr.mxu0 0.0
    %v5152 = vand.u32 %v4779, 4294901760
    %v5153 = vsub.f32 %v4779, %v5152
    %v5154 = vand.u32 %v5153, 4294901760
    %5155 = vmatpush1.msra.mxu0 %v5154
    %5156 = vmatprep.subr.mxu0 0.0
    %v5157 = vand.u32 %v4780, 4294901760
    %v5158 = vsub.f32 %v4780, %v5157
    %v5159 = vand.u32 %v5158, 4294901760
    %5160 = vmatpush1.msra.mxu0 %v5159
    %5161 = vmatprep.subr.mxu0 0.0
    %v5162 = vand.u32 %v4781, 4294901760
    %v5163 = vsub.f32 %v4781, %v5162
    %v5164 = vand.u32 %v5163, 4294901760
    %5165 = vmatpush1.msra.mxu0 %v5164
    %5166 = vmatprep.subr.mxu0 0.0
    %5167 = vmatpush1.msra.mxu0 0.0
    %5168 = vmatprep.subr.mxu0 0.0
    %5169 = vmatpush1.msra.mxu0 0.0
    %5170 = vmatprep.subr.mxu0 0.0
    %5171 = vmatpush1.msra.mxu0 0.0
    %5172 = vmatprep.subr.mxu0 0.0
    %5173 = vmatpush1.msra.mxu0 0.0
    %5174 = vmatprep.subr.mxu0 0.0
    %5175 = vmatpush1.msra.mxu0 0.0
    %5176 = vmatprep.subr.mxu0 0.0
    %5177 = vmatpush1.msra.mxu0 0.0
    %5178 = vmatprep.subr.mxu0 0.0
    %5179 = vmatpush1.msra.mxu0 0.0
    %5180 = vmatprep.subr.mxu0 0.0
    %5181 = vmatpush1.msra.mxu0 0.0
    %5182 = vmatprep.subr.mxu0 0.0
    %5183 = vmatpush1.msra.mxu0 0.0
    %5184 = vmatprep.subr.mxu0 0.0
    %5185 = vmatpush1.msra.mxu0 0.0
    %5186 = vmatprep.subr.mxu0 0.0
    %5187 = vmatpush1.msra.mxu0 0.0
    %5188 = vmatprep.subr.mxu0 0.0
    %5189 = vmatpush1.msra.mxu0 0.0
    %5190 = vmatprep.subr.mxu0 0.0
    %5191 = vmatpush1.msra.mxu0 0.0
    %5192 = vmatprep.subr.mxu0 0.0
    %5193 = vmatpush1.msra.mxu0 0.0
    %5194 = vmatprep.subr.mxu0 0.0
    %5195 = vmatpush1.msra.mxu0 0.0
    %5196 = vmatprep.subr.mxu0 0.0
    %5197 = vmatpush1.msra.mxu0 0.0
    %5198 = vmatprep.subr.mxu0 0.0
    %5199 = vmatpush1.msra.mxu0 0.0
    %5200 = vmatprep.subr.mxu0 0.0
    %5201 = vmatpush1.msra.mxu0 0.0
    %5202 = vmatprep.subr.mxu0 0.0
    %5203 = vmatpush1.msra.mxu0 0.0
    %5204 = vmatprep.subr.mxu0 0.0
    %5205 = vmatpush1.msra.mxu0 0.0
    %5206 = vmatprep.subr.mxu0 0.0
    %5207 = vmatpush1.msra.mxu0 0.0
    %5208 = vmatprep.subr.mxu0 0.0
    %5209 = vmatpush1.msra.mxu0 0.0
    %5210 = vmatprep.subr.mxu0 0.0
    %5211 = vmatpush1.msra.mxu0 0.0
    %5212 = vmatprep.subr.mxu0 0.0
    %5213 = vmatpush1.msra.mxu0 0.0
    %5214 = vmatprep.subr.mxu0 0.0
    %5215 = vmatpush1.msra.mxu0 0.0
    %5216 = vmatprep.subr.mxu0 0.0
    %5217 = vmatpush1.msra.mxu0 0.0
    %5218 = vmatprep.subr.mxu0 0.0
    %5219 = vmatpush1.msra.mxu0 0.0
    %5220 = vmatprep.subr.mxu0 0.0
    %5221 = vmatpush1.msra.mxu0 0.0
    %5222 = vmatprep.mubr.f32.mxu0 0.0
    %v5223 = vand.u32 %v4783, 4294901760
    %5224 = vmatmul.mubr.f32.gmra.mrb[0].mxu0 %v5223
    %v5225 = vpop.f32.mrb[0].mxu0
    %v5226 = vadd.f32 %v5135, %v5225
    %v5227 = vpop.f32.mrb[0].mxu0
    %5228 = vmatprep.mubr.f32.mxu0 0.0
    %v5229 = vand.u32 %v4786, 4294901760
    %5230 = vmatmul.mubr.f32.gmra.mrb[0].mxu0 %v5229
    %v5231 = vpop.f32.mrb[0].mxu0
    %v5232 = vadd.f32 %v5143, %v5231
    %v5233 = vpop.f32.mrb[0].mxu0
    %5234 = vdwg.mxu0
    %5235 = vmatprep.subr.mxu0 0.0
    %v5236 = vand.u32 %v4778, 4294901760
    %5237 = vmatpush1.msra.mxu0 %v5236
    %5238 = vmatprep.subr.mxu0 0.0
    %v5239 = vand.u32 %v4779, 4294901760
    %5240 = vmatpush1.msra.mxu0 %v5239
    %5241 = vmatprep.subr.mxu0 0.0
    %v5242 = vand.u32 %v4780, 4294901760
    %5243 = vmatpush1.msra.mxu0 %v5242
    %5244 = vmatprep.subr.mxu0 0.0
    %v5245 = vand.u32 %v4781, 4294901760
    %5246 = vmatpush1.msra.mxu0 %v5245
    %5247 = vmatprep.subr.mxu0 0.0
    %5248 = vmatpush1.msra.mxu0 0.0
    %5249 = vmatprep.subr.mxu0 0.0
    %5250 = vmatpush1.msra.mxu0 0.0
    %5251 = vmatprep.subr.mxu0 0.0
    %5252 = vmatpush1.msra.mxu0 0.0
    %5253 = vmatprep.subr.mxu0 0.0
    %5254 = vmatpush1.msra.mxu0 0.0
    %5255 = vmatprep.subr.mxu0 0.0
    %5256 = vmatpush1.msra.mxu0 0.0
    %5257 = vmatprep.subr.mxu0 0.0
    %5258 = vmatpush1.msra.mxu0 0.0
    %5259 = vmatprep.subr.mxu0 0.0
    %5260 = vmatpush1.msra.mxu0 0.0
    %5261 = vmatprep.subr.mxu0 0.0
    %5262 = vmatpush1.msra.mxu0 0.0
    %5263 = vmatprep.subr.mxu0 0.0
    %5264 = vmatpush1.msra.mxu0 0.0
    %5265 = vmatprep.subr.mxu0 0.0
    %5266 = vmatpush1.msra.mxu0 0.0
    %5267 = vmatprep.subr.mxu0 0.0
    %5268 = vmatpush1.msra.mxu0 0.0
    %5269 = vmatprep.subr.mxu0 0.0
    %5270 = vmatpush1.msra.mxu0 0.0
    %5271 = vmatprep.subr.mxu0 0.0
    %5272 = vmatpush1.msra.mxu0 0.0
    %5273 = vmatprep.subr.mxu0 0.0
    %5274 = vmatpush1.msra.mxu0 0.0
    %5275 = vmatprep.subr.mxu0 0.0
    %5276 = vmatpush1.msra.mxu0 0.0
    %5277 = vmatprep.subr.mxu0 0.0
    %5278 = vmatpush1.msra.mxu0 0.0
    %5279 = vmatprep.subr.mxu0 0.0
    %5280 = vmatpush1.msra.mxu0 0.0
    %5281 = vmatprep.subr.mxu0 0.0
    %5282 = vmatpush1.msra.mxu0 0.0
    %5283 = vmatprep.subr.mxu0 0.0
    %5284 = vmatpush1.msra.mxu0 0.0
    %5285 = vmatprep.subr.mxu0 0.0
    %5286 = vmatpush1.msra.mxu0 0.0
    %5287 = vmatprep.subr.mxu0 0.0
    %5288 = vmatpush1.msra.mxu0 0.0
    %5289 = vmatprep.subr.mxu0 0.0
    %5290 = vmatpush1.msra.mxu0 0.0
    %5291 = vmatprep.subr.mxu0 0.0
    %5292 = vmatpush1.msra.mxu0 0.0
    %5293 = vmatprep.subr.mxu0 0.0
    %5294 = vmatpush1.msra.mxu0 0.0
    %5295 = vmatprep.subr.mxu0 0.0
    %5296 = vmatpush1.msra.mxu0 0.0
    %5297 = vmatprep.subr.mxu0 0.0
    %5298 = vmatpush1.msra.mxu0 0.0
    %5299 = vmatprep.subr.mxu0 0.0
    %5300 = vmatpush1.msra.mxu0 0.0
    %5301 = vmatprep.subr.mxu0 0.0
    %5302 = vmatpush1.msra.mxu0 0.0
    %5303 = vmatprep.mubr.f32.mxu0 0.0
    %v5304 = vand.u32 %v4783, 4294901760
    %5305 = vmatmul.mubr.f32.gmra.mrb[0].mxu0 %v5304
    %v5306 = vpop.f32.mrb[0].mxu0
    %v5307 = vadd.f32 %v5226, %v5306
    %v5308 = vpop.f32.mrb[0].mxu0
    %5309 = vmatprep.mubr.f32.mxu0 0.0
    %v5310 = vand.u32 %v4786, 4294901760
    %5311 = vmatmul.mubr.f32.gmra.mrb[0].mxu0 %v5310
    %v5312 = vpop.f32.mrb[0].mxu0
    %v5313 = vadd.f32 %v5232, %v5312
    %v5314 = vpop.f32.mrb[0].mxu0
    %5315 = vdwg.mxu0
    %v5316 = vadd.f32 %v4264, %v5307
    %v5317 = vadd.f32 %v4265, %v5313
    %s5318 = sld [smem:[#allocation2]]
    %v5319 = vsub.f32 0.0, %v5316
    %v5320 = vsub.f32 0.0, %v5317
    %v5321 = vmul.f32 %v5319, 1.442695
    %v5322 = vpow.pop %v5321
    %v5323 = vmul.f32 %v5320, 1.442695
    %v5324 = vpow.pop %v5323
    %v5325 = vadd.f32 %v5322, 1.0
    %v5326 = vadd.f32 %v5324, 1.0
    %v5327 = vrcp.pop %v5325
    %v5328 = vmul.f32 1.0, %v5327
    %v5329 = vrcp.pop %v5326
    %v5330 = vmul.f32 1.0, %v5329
    %v5331 = vstv %s5318
    %v5332 = vmul.f32 %v5328, %v5331
    %v5333 = vmul.f32 %v5330, %v5331
    %s5334 = ssub.f32 1.0, %s5318
    %v5335 = vstv %s5334
    %v5336 = vadd.f32 %v5332, %v5335
    %v5337 = vadd.f32 %v5333, %v5335
    %5338 = vst.msk [vmem:[#allocation9] sm:$0xff] %vm1093, %v5336
    %5339 = vst.msk [vmem:[#allocation9 + $0x8] sm:$0xff] %vm1093, %v5337
    // Predicated region
    $region30: #{tpu_custom_call.1} parent=1 // pred_check
      _
    $region31: #{tpu_custom_call.1} parent=1 // pred_check_branch
      %5341 = sbr.rel (0) target = $region33
    $region32: #{tpu_custom_call.1} parent=1 // pred_region
      %s5343 = ssub.s32 256, 256
      %5344 = vsyncadd [#allocation5], %s5343
      %s5345 = sshll.u32 [#allocation9], 4
      %s5346 = int_to_ptr.vmem [resolvable:$true] %s5345
      %5351 = dma.vmem_to_hbm [thread:$0]  %s5346, 256, %s4, [#allocation5], 128, 128, 8
    $region33: #{tpu_custom_call.1} parent=1 // pred_fallthru
      _
    // Predicated region
    $region34: #{tpu_custom_call.1} parent=1 // pred_check
      _
    $region35: #{tpu_custom_call.1} parent=1 // pred_check_branch
      %5353 = sbr.rel (0) target = $region37
    $region36: #{tpu_custom_call.1} parent=1 // pred_region
      %5354 = dma.done [#allocation5], 256
    $region37: #{tpu_custom_call.1} parent=1 // pred_fallthru
      _
    %5355 = vsyncpa [#allocation4], 1
    %5356 = vsyncpa [#allocation7], 1
    %5357 = vsyncpa [#allocation5], 1

</llo_original>
